<compile_context>
chip_gen: v5e
topology: v5e:2x2
jax: 0.10.0
libtpu: 0.0.40
codegen_flags: <defaults>
</compile_context>

<pallas_src>
import functools

import jax
import jax.numpy as jnp
from jax import lax
from jax.experimental import pallas as pl
from jax.experimental.pallas import tpu as pltpu


def _cca_kernel(x_ref, w_ref, b_ref, gamma_ref, o_ref, *, H, W, C, Dp):
    S = H * W
    P = 2 * Dp + C
    x_cs = x_ref[0]                                   # (C, S) bf16, channel-first, lane-dense

    # Packed q|k|v projection without materializing x^T: lhs contracting dim 0
    # (the MXU consumes a transposed LHS natively).  bf16 in, f32 accumulation.
    y = lax.dot_general(x_cs, w_ref[...],
                        dimension_numbers=(((0,), (0,)), ((), ())),
                        preferred_element_type=jnp.float32)             # (S, P) f32
    y = y + b_ref[...]                                                  # bias in f32
    y3 = y.reshape(H, W, P)                            # row-major (h-leading) view; free reshape

    qf = y3[:, :, :Dp]                                 # 128-lane-aligned slices (Dp padded)
    kf = y3[:, :, Dp:2 * Dp]
    vf = y3[:, :, 2 * Dp:]                             # (H, W, C) f32 value slab

    q1 = qf.astype(jnp.bfloat16)                       # (H, W, Dp)  row-path operands
    k1 = kf.astype(jnp.bfloat16)
    # Column path: transpose only the THIN q/k slabs (not the fat value slab too).
    q2 = jnp.transpose(qf, (1, 0, 2)).astype(jnp.bfloat16)              # (W, H, Dp)
    k2 = jnp.transpose(kf, (1, 0, 2)).astype(jnp.bfloat16)              # (W, H, Dp)

    # Criss-cross energies (f32 out of the MXU); -inf on the h == g diagonal of the
    # column path, exactly like the PyTorch INF() term.
    e_w = jnp.einsum('hwd,hgd->hwg', q1, k1,
                     preferred_element_type=jnp.float32)                # (H, W, W)
    e_h = jnp.einsum('whd,wgd->whg', q2, k2,
                     preferred_element_type=jnp.float32)                # (W, H, H)
    ii = lax.broadcasted_iota(jnp.int32, (1, H, H), 1)
    jj = lax.broadcasted_iota(jnp.int32, (1, H, H), 2)
    e_h = jnp.where(ii == jj, -jnp.inf, e_h)

    # Joint softmax over the concatenated (H + W) key axis, fully in f32, without
    # materializing the concat (the halves live in different batch-leading layouts).
    # The row-path max keeps m finite, so the -inf diagonal never produces NaNs.
    m = jnp.maximum(jnp.max(e_w, axis=-1), jnp.max(e_h, axis=-1).T)     # (H, W)
    m_t = m.T                                                           # (W, H) small
    p_w = jnp.exp(e_w - m[:, :, None])                                  # (H, W, W)
    p_h = jnp.exp(e_h - m_t[:, :, None])                                # (W, H, H)
    denom = jnp.sum(p_w, axis=-1) + jnp.sum(p_h, axis=-1).T             # (H, W)
    inv = pl.reciprocal(denom, approx=True)                             # EUP slot
    att_w = (p_w * inv[:, :, None]).astype(jnp.bfloat16)                # (H, W, W)
    att_h = (p_h * inv.T[:, :, None]).astype(jnp.bfloat16)              # (W, H, H)

    # Attention application: bf16 operands, f32 accumulation. The column path needs
    # w-leading v and a back-transpose of its output — the only fat relayouts left.
    v1 = vf.astype(jnp.bfloat16)                                        # (H, W, C)
    v2 = jnp.transpose(vf, (1, 0, 2)).astype(jnp.bfloat16)              # (W, H, C)
    out_w = jnp.einsum('hwg,hgc->hwc', att_w, v1,
                       preferred_element_type=jnp.float32)              # (H, W, C)
    out_h = jnp.einsum('whg,wgc->whc', att_h, v2,
                       preferred_element_type=jnp.float32)              # (W, H, C)
    out = out_w + jnp.transpose(out_h, (1, 0, 2))                       # (H, W, C)

    # gamma scale in-kernel; store channel-last so no (S, C) -> (C, S) transpose is
    # needed. NHWC->NCHW flip + residual fuse into one XLA pass in the wrapper.
    o_ref[0] = (gamma_ref[0, 0] * out).reshape(S, C)


def criss_cross_attention(x_nchw, wq, bq, wk, bk, wv, bv, gamma):
    B, C, H, W = x_nchw.shape
    D = wq.shape[1]
    S = H * W
    Dp = ((D + 127) // 128) * 128        # pad q/k channels to a full 128-lane tile
    P = 2 * Dp + C
    f32, bf16 = jnp.float32, jnp.bfloat16

    # Input stays NCHW (free reshape to (B, C, S)); cast to bf16 halves the x DMA.
    x_flat = x_nchw.reshape(B, C, S).astype(bf16)

    # Packed + lane-padded weights [q | 0.. | k | 0.. | v]; zero pad keeps q·kᵀ exact.
    wq_p = jnp.zeros((C, Dp), f32).at[:, :D].set(wq.astype(f32))
    wk_p = jnp.zeros((C, Dp), f32).at[:, :D].set(wk.astype(f32))
    w_pack = jnp.concatenate([wq_p, wk_p, wv.astype(f32)], axis=1).astype(bf16)   # (C, P)
    bq_p = jnp.zeros((Dp,), f32).at[:D].set(bq.astype(f32))
    bk_p = jnp.zeros((Dp,), f32).at[:D].set(bk.astype(f32))
    b_pack = jnp.concatenate([bq_p, bk_p, bv.astype(f32)]).reshape(1, P)           # f32 bias
    gamma2 = gamma.reshape(1, 1).astype(f32)

    kernel = functools.partial(_cca_kernel, H=H, W=W, C=C, Dp=Dp)

    # NOTE: at these toy shapes per-step overhead dominates and one could fold the
    # whole batch into a single grid step; grid=(B,) is kept so the batch axis can be
    # sharded across TensorCores ("parallel") and matches the production design.
    out_slc = pl.pallas_call(
        kernel,
        out_shape=jax.ShapeDtypeStruct((B, S, C), f32),
        grid_spec=pltpu.PrefetchScalarGridSpec(
            num_scalar_prefetch=0,
            grid=(B,),
            in_specs=[
                pl.BlockSpec((1, C, S), lambda b: (b, 0, 0)),           # x, lane-dense (S)
                pl.BlockSpec((C, P), lambda b: (0, 0)),                 # packed bf16 weights
                pl.BlockSpec((1, P), lambda b: (0, 0)),                 # packed f32 biases
                pl.BlockSpec(memory_space=pltpu.MemorySpace.SMEM),      # gamma scalar
            ],
            out_specs=pl.BlockSpec((1, S, C), lambda b: (b, 0, 0)),     # channel-last out
        ),
        compiler_params=pltpu.CompilerParams(
            dimension_semantics=("parallel",),
            vmem_limit_bytes=48 * 1024 * 1024,
        ),
    )(x_flat, w_pack, b_pack, gamma2)

    # Fused XLA pass: NHWC -> NCHW flip + residual add (gamma was applied in-kernel).
    out_nchw = out_slc.reshape(B, H, W, C).transpose(0, 3, 1, 2)
    return (out_nchw + x_nchw.astype(f32)).astype(x_nchw.dtype)


def ref_forward(x, wq, bq, wk, bk, wv, bv, gamma):
    """Pure-JAX f32 reference mirroring the PyTorch forward (NCHW)."""
    B, C, H, W = x.shape
    q = jnp.einsum('bchw,cd->bdhw', x, wq) + bq[None, :, None, None]
    k = jnp.einsum('bchw,cd->bdhw', x, wk) + bk[None, :, None, None]
    v = jnp.einsum('bchw,cd->bdhw', x, wv) + bv[None, :, None, None]
    e_h = jnp.einsum('bdhw,bdgw->bhwg', q, k)
    diag = jnp.eye(H, dtype=bool)[None, :, None, :]
    e_h = jnp.where(diag, -jnp.inf, e_h)
    e_w = jnp.einsum('bdhw,bdhg->bhwg', q, k)
    att = jax.nn.softmax(jnp.concatenate([e_h, e_w], axis=-1), axis=-1)
    out_H = jnp.einsum('bhwg,bcgw->bchw', att[..., :H], v)
    out_W = jnp.einsum('bhwg,bchg->bchw', att[..., H:], v)
    return gamma[0] * (out_H + out_W) + x


if __name__ == "__main__":
    B, C, H, W = 2, 16, 16, 16          # in_dim must be >= 8 (query/key dim = in_dim // 8)
    D = C // 8
    key = jax.random.PRNGKey(0)
    ks = jax.random.split(key, 7)
    x = jax.random.normal(ks[0], (B, C, H, W), jnp.float32)
    wq = jax.random.normal(ks[1], (C, D), jnp.float32) * 0.2
    bq = jax.random.normal(ks[2], (D,), jnp.float32) * 0.1
    wk = jax.random.normal(ks[3], (C, D), jnp.float32) * 0.2
    bk = jax.random.normal(ks[4], (D,), jnp.float32) * 0.1
    wv = jax.random.normal(ks[5], (C, C), jnp.float32) * 0.2
    bv = jax.random.normal(ks[6], (C,), jnp.float32) * 0.1
    # Module __init__ sets gamma = 0 (output would be exactly x); use a nonzero
    # value so the attention path is actually exercised.
    gamma = jnp.array([0.5], jnp.float32)

    out = jax.block_until_ready(
        criss_cross_attention(x, wq, bq, wk, bk, wv, bv, gamma))
    ref = ref_forward(x, wq, bq, wk, bk, wv, bv, gamma)

    assert out.shape == x.shape and out.dtype == x.dtype
    # Tolerance accounts for bf16 MXU operands (f32 accumulation) and the EUP
    # approx reciprocal vs the pure-f32 reference.
    assert jnp.allclose(out, ref, atol=5e-2, rtol=5e-2), \
        float(jnp.max(jnp.abs(out - ref)))
    print("KERNEL_OK")
</pallas_src>

<mosaic_0001>
module attributes {stable_mosaic.version = 11 : i64} {
  func.func @_cca_kernel(%arg0: i32, %arg1: memref<1x16x256xbf16, #tpu.memory_space<vmem>>, %arg2: memref<16x272xbf16, #tpu.memory_space<vmem>>, %arg3: memref<1x272xf32, #tpu.memory_space<vmem>>, %arg4: memref<1x1xf32, #tpu.memory_space<smem>>, %arg5: memref<1x256x16xf32, #tpu.memory_space<vmem>>) attributes {dimension_semantics = [#tpu.dimension_semantics<parallel>], iteration_bounds = array<i64: 2>, scalar_prefetch = 0 : i64, scratch_operands = 0 : i64, tpu.core_type = #tpu.core_type<tc>, window_params = [{transform_indices = @transform_0, window_bounds = array<i64: 1, 16, 256>}, {pipeline_mode = #tpu.pipeline_mode<synchronous>, transform_indices = @transform_1, window_bounds = array<i64: 16, 272>}, {pipeline_mode = #tpu.pipeline_mode<synchronous>, transform_indices = @transform_2, window_bounds = array<i64: 1, 272>}, {transform_indices = @transform_3, window_bounds = array<i64: 1, 1>}, {transform_indices = @transform_4, window_bounds = array<i64: 1, 256, 16>}]} {
    %c0 = arith.constant 0 : index
    %c0_0 = arith.constant 0 : index
    %c0_1 = arith.constant 0 : index
    %0 = vector.load %arg1[%c0, %c0_0, %c0_1] : memref<1x16x256xbf16, #tpu.memory_space<vmem>>, vector<1x16x256xbf16>
    %1 = vector.shape_cast %0 : vector<1x16x256xbf16> to vector<16x256xbf16>
    %c0_2 = arith.constant 0 : index
    %c0_3 = arith.constant 0 : index
    %2 = vector.load %arg2[%c0_2, %c0_3] : memref<16x272xbf16, #tpu.memory_space<vmem>>, vector<16x272xbf16>
    %cst = arith.constant dense<0.000000e+00> : vector<256x272xf32>
    %3 = tpu.matmul %1, %2, %cst {dimension_numbers = #tpu.dot_dimension_numbers<[0], [0], [1], [1], [0, 1, 1, 1], [], []>} : vector<16x256xbf16>, vector<16x272xbf16>, vector<256x272xf32> -> vector<256x272xf32>
    %c0_4 = arith.constant 0 : index
    %c0_5 = arith.constant 0 : index
    %4 = vector.load %arg3[%c0_4, %c0_5] : memref<1x272xf32, #tpu.memory_space<vmem>>, vector<1x272xf32>
    %5 = vector.broadcast %4 : vector<1x272xf32> to vector<256x272xf32>
    %6 = arith.addf %3, %5 : vector<256x272xf32>
    %7 = vector.shape_cast %6 : vector<256x272xf32> to vector<16x16x272xf32>
    %8 = vector.extract_strided_slice %7 {offsets = [0, 0, 0], sizes = [16, 16, 128], strides = [1, 1, 1]} : vector<16x16x272xf32> to vector<16x16x128xf32>
    %9 = vector.extract_strided_slice %7 {offsets = [0, 0, 128], sizes = [16, 16, 128], strides = [1, 1, 1]} : vector<16x16x272xf32> to vector<16x16x128xf32>
    %10 = vector.extract_strided_slice %7 {offsets = [0, 0, 256], sizes = [16, 16, 16], strides = [1, 1, 1]} : vector<16x16x272xf32> to vector<16x16x16xf32>
    %11 = arith.truncf %8 : vector<16x16x128xf32> to vector<16x16x128xbf16>
    %12 = arith.truncf %9 : vector<16x16x128xf32> to vector<16x16x128xbf16>
    %13 = tpu.transpose %8, [1, 0, 2] : vector<16x16x128xf32> -> vector<16x16x128xf32>
    %14 = arith.truncf %13 : vector<16x16x128xf32> to vector<16x16x128xbf16>
    %15 = tpu.transpose %9, [1, 0, 2] : vector<16x16x128xf32> -> vector<16x16x128xf32>
    %16 = arith.truncf %15 : vector<16x16x128xf32> to vector<16x16x128xbf16>
    "tpu.trace_start"() <{level = 10 : i32, message = "hwd,hgd->hwg"}> : () -> ()
    %cst_6 = arith.constant dense<0.000000e+00> : vector<16x16x16xf32>
    %17 = tpu.matmul %11, %12, %cst_6 {dimension_numbers = #tpu.dot_dimension_numbers<[2], [2], [1], [1], [0, 0, 0, 1, 1, 1], [0], [0]>} : vector<16x16x128xbf16>, vector<16x16x128xbf16>, vector<16x16x16xf32> -> vector<16x16x16xf32>
    "tpu.trace_stop"() : () -> ()
    "tpu.trace_start"() <{level = 10 : i32, message = "whd,wgd->whg"}> : () -> ()
    %cst_7 = arith.constant dense<0.000000e+00> : vector<16x16x16xf32>
    %18 = tpu.matmul %14, %16, %cst_7 {dimension_numbers = #tpu.dot_dimension_numbers<[2], [2], [1], [1], [0, 0, 0, 1, 1, 1], [0], [0]>} : vector<16x16x128xbf16>, vector<16x16x128xbf16>, vector<16x16x16xf32> -> vector<16x16x16xf32>
    "tpu.trace_stop"() : () -> ()
    %19 = tpu.iota {dimensions = array<i32: 1>} : vector<1x16x16xi32>
    %20 = tpu.iota {dimensions = array<i32: 2>} : vector<1x16x16xi32>
    %21 = arith.cmpi eq, %19, %20 : vector<1x16x16xi32>
    %cst_8 = arith.constant 0xFF800000 : f32
    %22 = vector.shape_cast %21 : vector<1x16x16xi1> to vector<1x16x16xi1>
    %23 = vector.broadcast %22 : vector<1x16x16xi1> to vector<16x16x16xi1>
    %24 = vector.broadcast %cst_8 : f32 to vector<16x16x16xf32>
    %25 = arith.select %23, %24, %18 : vector<16x16x16xi1>, vector<16x16x16xf32>
    %cst_9 = arith.constant dense<0xFF800000> : vector<16x16xf32>
    %26 = vector.multi_reduction <maximumf>, %17, %cst_9 [2] : vector<16x16x16xf32> to vector<16x16xf32>
    %cst_10 = arith.constant dense<0xFF800000> : vector<16x16xf32>
    %27 = vector.multi_reduction <maximumf>, %25, %cst_10 [2] : vector<16x16x16xf32> to vector<16x16xf32>
    %28 = tpu.transpose %27, [1, 0] : vector<16x16xf32> -> vector<16x16xf32>
    %29 = arith.maximumf %26, %28 : vector<16x16xf32>
    %30 = tpu.transpose %29, [1, 0] : vector<16x16xf32> -> vector<16x16xf32>
    %31 = vector.shape_cast %29 : vector<16x16xf32> to vector<16x16x1xf32>
    %32 = vector.broadcast %31 : vector<16x16x1xf32> to vector<16x16x16xf32>
    %33 = arith.subf %17, %32 : vector<16x16x16xf32>
    %34 = math.exp %33 : vector<16x16x16xf32>
    %35 = vector.shape_cast %30 : vector<16x16xf32> to vector<16x16x1xf32>
    %36 = vector.broadcast %35 : vector<16x16x1xf32> to vector<16x16x16xf32>
    %37 = arith.subf %25, %36 : vector<16x16x16xf32>
    %38 = math.exp %37 : vector<16x16x16xf32>
    %cst_11 = arith.constant dense<0.000000e+00> : vector<16x16xf32>
    %39 = vector.multi_reduction <add>, %34, %cst_11 [2] : vector<16x16x16xf32> to vector<16x16xf32>
    %cst_12 = arith.constant dense<0.000000e+00> : vector<16x16xf32>
    %40 = vector.multi_reduction <add>, %38, %cst_12 [2] : vector<16x16x16xf32> to vector<16x16xf32>
    %41 = tpu.transpose %40, [1, 0] : vector<16x16xf32> -> vector<16x16xf32>
    %42 = arith.addf %39, %41 : vector<16x16xf32>
    %43 = tpu.reciprocal %42 {approx = true} : vector<16x16xf32> -> vector<16x16xf32>
    %44 = vector.shape_cast %43 : vector<16x16xf32> to vector<16x16x1xf32>
    %45 = vector.broadcast %44 : vector<16x16x1xf32> to vector<16x16x16xf32>
    %46 = arith.mulf %34, %45 : vector<16x16x16xf32>
    %47 = arith.truncf %46 : vector<16x16x16xf32> to vector<16x16x16xbf16>
    %48 = tpu.transpose %43, [1, 0] : vector<16x16xf32> -> vector<16x16xf32>
    %49 = vector.shape_cast %48 : vector<16x16xf32> to vector<16x16x1xf32>
    %50 = vector.broadcast %49 : vector<16x16x1xf32> to vector<16x16x16xf32>
    %51 = arith.mulf %38, %50 : vector<16x16x16xf32>
    %52 = arith.truncf %51 : vector<16x16x16xf32> to vector<16x16x16xbf16>
    %53 = arith.truncf %10 : vector<16x16x16xf32> to vector<16x16x16xbf16>
    %54 = tpu.transpose %10, [1, 0, 2] : vector<16x16x16xf32> -> vector<16x16x16xf32>
    %55 = arith.truncf %54 : vector<16x16x16xf32> to vector<16x16x16xbf16>
    "tpu.trace_start"() <{level = 10 : i32, message = "hwg,hgc->hwc"}> : () -> ()
    %cst_13 = arith.constant dense<0.000000e+00> : vector<16x16x16xf32>
    %56 = tpu.matmul %47, %53, %cst_13 {dimension_numbers = #tpu.dot_dimension_numbers<[2], [1], [1], [2], [0, 0, 0, 1, 1, 2], [0], [0]>} : vector<16x16x16xbf16>, vector<16x16x16xbf16>, vector<16x16x16xf32> -> vector<16x16x16xf32>
    "tpu.trace_stop"() : () -> ()
    "tpu.trace_start"() <{level = 10 : i32, message = "whg,wgc->whc"}> : () -> ()
    %cst_14 = arith.constant dense<0.000000e+00> : vector<16x16x16xf32>
    %57 = tpu.matmul %52, %55, %cst_14 {dimension_numbers = #tpu.dot_dimension_numbers<[2], [1], [1], [2], [0, 0, 0, 1, 1, 2], [0], [0]>} : vector<16x16x16xbf16>, vector<16x16x16xbf16>, vector<16x16x16xf32> -> vector<16x16x16xf32>
    "tpu.trace_stop"() : () -> ()
    %58 = tpu.transpose %57, [1, 0, 2] : vector<16x16x16xf32> -> vector<16x16x16xf32>
    %59 = arith.addf %56, %58 : vector<16x16x16xf32>
    %c0_15 = arith.constant 0 : index
    %c0_16 = arith.constant 0 : index
    %60 = memref.load %arg4[%c0_15, %c0_16] : memref<1x1xf32, #tpu.memory_space<smem>>
    %61 = vector.broadcast %60 : f32 to vector<16x16x16xf32>
    %62 = arith.mulf %61, %59 : vector<16x16x16xf32>
    %63 = vector.shape_cast %62 : vector<16x16x16xf32> to vector<256x16xf32>
    %c0_17 = arith.constant 0 : index
    %c0_18 = arith.constant 0 : index
    %c0_19 = arith.constant 0 : index
    %64 = vector.load %arg5[%c0_17, %c0_18, %c0_19] : memref<1x256x16xf32, #tpu.memory_space<vmem>>, vector<1x256x16xf32>
    %65 = vector.shape_cast %64 : vector<1x256x16xf32> to vector<256x16xf32>
    %66 = vector.shape_cast %63 : vector<256x16xf32> to vector<1x256x16xf32>
    tpu.vector_store %arg5[%c0_17, %c0_18, %c0_19], %66 {strides = array<i32>} : memref<1x256x16xf32, #tpu.memory_space<vmem>>, vector<1x256x16xf32>,
    return
  }
  func.func @transform_0(%arg0: i32) -> (i32, i32, i32) {
    %c0_i32 = arith.constant 0 : i32
    %c0_i32_0 = arith.constant 0 : i32
    %c0_i32_1 = arith.constant 0 : i32
    return %arg0, %c0_i32, %c0_i32_0 : i32, i32, i32
  }
  func.func @transform_1(%arg0: i32) -> (i32, i32) {
    %c0_i32 = arith.constant 0 : i32
    %c0_i32_0 = arith.constant 0 : i32
    %c0_i32_1 = arith.constant 0 : i32
    return %c0_i32, %c0_i32_0 : i32, i32
  }
  func.func @transform_2(%arg0: i32) -> (i32, i32) {
    %c0_i32 = arith.constant 0 : i32
    %c0_i32_0 = arith.constant 0 : i32
    %c0_i32_1 = arith.constant 0 : i32
    return %c0_i32, %c0_i32_0 : i32, i32
  }
  func.func @transform_3(%arg0: i32) -> (i32, i32) {
    %c0_i32 = arith.constant 0 : i32
    %c0_i32_0 = arith.constant 0 : i32
    %c0_i32_1 = arith.constant 0 : i32
    return %c0_i32, %c0_i32_0 : i32, i32
  }
  func.func @transform_4(%arg0: i32) -> (i32, i32, i32) {
    %c0_i32 = arith.constant 0 : i32
    %c0_i32_0 = arith.constant 0 : i32
    %c0_i32_1 = arith.constant 0 : i32
    return %arg0, %c0_i32, %c0_i32_0 : i32, i32, i32
  }
}

</mosaic_0001>

<llo_original>
// kernel: tpu_custom_call.1
$region0: #{tpu_custom_call.1}
  #allocation0 [shape = 'u32[]', space=smem, size = 0x4, offset = 0x4, fixed_abs, tag = 'smem constant byte address 0x4 - core index']
  #allocation1 [shape = 'u32[72,128]{1,0:T(1,128)}', space=vmem, size = 0x9000, scoped, tag = 'internal scratch']
  #allocation2 [shape = 'f32[1,1]{1,0:T(1,128)S(6)}', space=smem, size = 0x200, scoped, tag = 'scoped memory for tpu_custom_call.1']
  %s0 = inlined_call_operand.hbm [shape: bf16[2,16,256], index: 0, kind: input, shape index: {}]
  %s1 = inlined_call_operand.hbm [shape: bf16[16,272], index: 1, kind: input, shape index: {}]
  %s2 = inlined_call_operand.vmem [shape: f32[1,272], index: 2, kind: input, shape index: {}]
  %s3 = inlined_call_operand.<no memory space> [shape: f32[1,1], index: 3, kind: input, shape index: {}]
  %s4 = inlined_call_operand.vmem [shape: f32[2,256,16], index: 4, kind: output, shape index: {}]
  %s5 = sld [smem:[#allocation0]]
  $region57: #{tpu_custom_call.1} parent=0
    _
  %s7 = ssub.s32 1, %s5
  %s8 = scalar_select 0, %s7, %s5
  %9 = sst [smem:[#allocation2]] %s3
  $region1: #{tpu_custom_call.1} parent=0
    #allocation3 [shape = 'u8[16384]{0}', space=vmem, size = 0x4000, scoped, tag = 'input window, operand 0']
    #allocation4 [shape = 's32[2]{0}', space=sflag, size = 0x8, scoped, tag = 'scoped memory for tpu_custom_call.1']
    #allocation5 [shape = 'u8[12288]{0}', space=vmem, size = 0x3000, scoped, tag = 'input window, operand 1, single buffered']
    #allocation6 [shape = 's32[1]{0}', space=sflag, size = 0x4, scoped, tag = 'scoped memory for tpu_custom_call.1']
    %10 = vsyncpa [#allocation4], 0
    %s11 = scalar_lea.sflag [#allocation4], 1
    %12 = vsyncpa %s11, 0
    %13 = vsyncpa [#allocation6], 0
    loop: start=0, step=1, limit=4
    $region2: #{tpu_custom_call.1} parent=1 // loop_pre_header
      _
    $region3: #{tpu_custom_call.1} parent=1 // loop_header
      %s15 = sphi 0, %s19
      %p16 = scmp.ge.s32.totalorder %s15, 4
      %s25 = sphi 0, %s27
      %s28 = sphi 0, %s25
      %s29 = sphi 0, %s28
      %s45 = sphi 0, %s29
      %s49 = sphi 0, %s49
      %s51 = sphi 0, %s49
      %s52 = sphi 0, %s51
      %s66 = sphi 0, %s52
      %s70 = sphi 0, %s70
      %s72 = sphi 0, %s70
      %s73 = sphi 0, %s72
      %s87 = sphi 0, %s73
      %s91 = sphi 0, %s91
      %s93 = sphi 0, %s91
      %s94 = sphi 0, %s93
      %s108 = sphi 0, %s94
      %s114 = sphi 0, %s116
      %s117 = sphi 0, %s114
      %s118 = sphi 0, %s117
      %s134 = sphi 0, %s118
    $region4: #{tpu_custom_call.1} parent=1 // loop_header_branch
      %18 = sbr.rel (%p16) target = $region8
    $region5: #{tpu_custom_call.1} parent=1 // loop_body
      %s20 = ssub.s32 %s15, 1
      %s21 = ssub.s32 %s15, 2
      %s22 = sadd.s32 %s15, 1
      %s23 = ssub.s32 %s15, %s22
      %p24 = scmp.eq.s32.totalorder %s23, 0
      %s26 = sadd.s32 %s25, 1
      %s27 = scalar_select %p24, %s25, %s26
      %p30 = pneg %p24
      %p31 = scmp.eq.s32.totalorder %s15, 1
      %p32 = por %p30, %p31
      %p33 = scmp.ne.s32.totalorder %s25, %s28
      %p34 = scmp.eq.s32.totalorder %s15, 0
      %p35 = por %p33, %p34
      %p36 = scmp.ne.s32.totalorder %s25, %s28
      %p37 = scmp.eq.s32.totalorder %s20, 1
      %p38 = por %p36, %p37
      %p39 = scmp.ne.s32.totalorder %s28, %s29
      %p40 = scmp.eq.s32.totalorder %s20, 0
      %p41 = por %p39, %p40
      %p42 = scmp.ne.s32.totalorder %s28, %s29
      %p43 = scmp.eq.s32.totalorder %s21, 1
      %p44 = por %p42, %p43
      %p46 = scmp.ne.s32.totalorder %s29, %s45
      %p47 = scmp.eq.s32.totalorder %s21, 0
      %p48 = por %p46, %p47
      %s50 = sadd.s32 %s49, 1
      %p53 = scmp.eq.s32.totalorder %s15, 1
      %p54 = scmp.ne.s32.totalorder %s49, %s51
      %p55 = scmp.eq.s32.totalorder %s15, 0
      %p56 = por %p54, %p55
      %p57 = scmp.ne.s32.totalorder %s49, %s51
      %p58 = scmp.eq.s32.totalorder %s20, 1
      %p59 = por %p57, %p58
      %p60 = scmp.ne.s32.totalorder %s51, %s52
      %p61 = scmp.eq.s32.totalorder %s20, 0
      %p62 = por %p60, %p61
      %p63 = scmp.ne.s32.totalorder %s51, %s52
      %p64 = scmp.eq.s32.totalorder %s21, 1
      %p65 = por %p63, %p64
      %p67 = scmp.ne.s32.totalorder %s52, %s66
      %p68 = scmp.eq.s32.totalorder %s21, 0
      %p69 = por %p67, %p68
      %s71 = sadd.s32 %s70, 1
      %p74 = scmp.eq.s32.totalorder %s15, 1
      %p75 = scmp.ne.s32.totalorder %s70, %s72
      %p76 = scmp.eq.s32.totalorder %s15, 0
      %p77 = por %p75, %p76
      %p78 = scmp.ne.s32.totalorder %s70, %s72
      %p79 = scmp.eq.s32.totalorder %s20, 1
      %p80 = por %p78, %p79
      %p81 = scmp.ne.s32.totalorder %s72, %s73
      %p82 = scmp.eq.s32.totalorder %s20, 0
      %p83 = por %p81, %p82
      %p84 = scmp.ne.s32.totalorder %s72, %s73
      %p85 = scmp.eq.s32.totalorder %s21, 1
      %p86 = por %p84, %p85
      %p88 = scmp.ne.s32.totalorder %s73, %s87
      %p89 = scmp.eq.s32.totalorder %s21, 0
      %p90 = por %p88, %p89
      %s92 = sadd.s32 %s91, 1
      %p95 = scmp.eq.s32.totalorder %s15, 1
      %p96 = scmp.ne.s32.totalorder %s91, %s93
      %p97 = scmp.eq.s32.totalorder %s15, 0
      %p98 = por %p96, %p97
      %p99 = scmp.ne.s32.totalorder %s91, %s93
      %p100 = scmp.eq.s32.totalorder %s20, 1
      %p101 = por %p99, %p100
      %p102 = scmp.ne.s32.totalorder %s93, %s94
      %p103 = scmp.eq.s32.totalorder %s20, 0
      %p104 = por %p102, %p103
      %p105 = scmp.ne.s32.totalorder %s93, %s94
      %p106 = scmp.eq.s32.totalorder %s21, 1
      %p107 = por %p105, %p106
      %p109 = scmp.ne.s32.totalorder %s94, %s108
      %p110 = scmp.eq.s32.totalorder %s21, 0
      %p111 = por %p109, %p110
      %s112 = ssub.s32 %s15, %s22
      %p113 = scmp.eq.s32.totalorder %s112, 0
      %s115 = sadd.s32 %s114, 1
      %s116 = scalar_select %p113, %s114, %s115
      %p119 = pneg %p113
      %p120 = scmp.eq.s32.totalorder %s15, 1
      %p121 = por %p119, %p120
      %p122 = scmp.ne.s32.totalorder %s114, %s117
      %p123 = scmp.eq.s32.totalorder %s15, 0
      %p124 = por %p122, %p123
      %p125 = scmp.ne.s32.totalorder %s114, %s117
      %p126 = scmp.eq.s32.totalorder %s20, 1
      %p127 = por %p125, %p126
      %p128 = scmp.ne.s32.totalorder %s117, %s118
      %p129 = scmp.eq.s32.totalorder %s20, 0
      %p130 = por %p128, %p129
      %p131 = scmp.ne.s32.totalorder %s117, %s118
      %p132 = scmp.eq.s32.totalorder %s21, 1
      %p133 = por %p131, %p132
      %p135 = scmp.ne.s32.totalorder %s118, %s134
      %p136 = scmp.eq.s32.totalorder %s21, 0
      %p137 = por %p135, %p136
      %p138 = scmp.le.s32.totalorder 1, %s15
      %p139 = scmp.lt.s32.totalorder %s15, 3
      %p140 = pnand %p138, %p139
      %p141 = pneg %p140
      // Predicated region
      $region9: #{tpu_custom_call.1} parent=5 // pred_check
        _
      $region10: #{tpu_custom_call.1} parent=5 // pred_check_branch
        %143 = sbr.rel (%p140) target = $region12
      $region11: #{tpu_custom_call.1} parent=5 // pred_region
        %s144 = ssub.s32 %s15, 1
        // Predicated region
        $region13: #{tpu_custom_call.1} parent=11 // pred_check
          %p145 = pneg %p62
        $region14: #{tpu_custom_call.1} parent=11 // pred_check_branch
          %147 = sbr.rel (%p145) target = $region16
        $region15: #{tpu_custom_call.1} parent=11 // pred_region
          %149 = vsyncadd [#allocation6], 0
          %s150 = sshll.u32 %s1, 4
          %s151 = int_to_ptr.hbm [resolvable:$true] %s150
          %s152 = sshll.u32 [#allocation5], 4
          %s153 = int_to_ptr.vmem [resolvable:$true] %s152
          %158 = dma.hbm_to_vmem [thread:$0]  %s151, 384, %s153, [#allocation6], 192, 192, 12
        $region16: #{tpu_custom_call.1} parent=11 // pred_fallthru
          _
        // Predicated region
        $region17: #{tpu_custom_call.1} parent=11 // pred_check
          %p159 = pneg %p83
        $region18: #{tpu_custom_call.1} parent=11 // pred_check_branch
          %161 = sbr.rel (%p159) target = $region20
        $region19: #{tpu_custom_call.1} parent=11 // pred_region
          _
        $region20: #{tpu_custom_call.1} parent=11 // pred_fallthru
          _
        // Predicated region
        $region21: #{tpu_custom_call.1} parent=11 // pred_check
          %p162 = pneg %p104
        $region22: #{tpu_custom_call.1} parent=11 // pred_check_branch
          %164 = sbr.rel (%p162) target = $region24
        $region23: #{tpu_custom_call.1} parent=11 // pred_region
          _
        $region24: #{tpu_custom_call.1} parent=11 // pred_fallthru
          _
      $region12: #{tpu_custom_call.1} parent=5 // pred_fallthru
        _
      %p165 = scmp.lt.s32.totalorder %s15, 2
      // Predicated region
      $region25: #{tpu_custom_call.1} parent=5 // pred_check
        %p166 = pneg %p165
      $region26: #{tpu_custom_call.1} parent=5 // pred_check_branch
        %168 = sbr.rel (%p166) target = $region28
      $region27: #{tpu_custom_call.1} parent=5 // pred_region
        // Predicated region
        $region29: #{tpu_custom_call.1} parent=27 // pred_check
          %p169 = pneg %p35
        $region30: #{tpu_custom_call.1} parent=27 // pred_check_branch
          %171 = sbr.rel (%p169) target = $region32
        $region31: #{tpu_custom_call.1} parent=27 // pred_region
          %s172 = sand.u32 %s25, 1
          %s173 = scalar_lea.sflag [#allocation4], %s172
          %s174 = sand.u32 %s25, 1
          %s175 = smul.addr %s174, 16
          %s176 = scalar_lea.vmem [#allocation3], %s175
          %178 = vsyncadd %s173, 0
          %s179 = smul.addr %s15, 4
          %s180 = smul.addr %s179, 4
          %s181 = scalar_lea.hbm %s0, %s180
          %s182 = sshll.u32 %s181, 4
          %s183 = int_to_ptr.hbm [resolvable:$true] %s182
          %s184 = sshll.u32 %s176, 4
          %s185 = int_to_ptr.vmem [resolvable:$true] %s184
          %190 = dma.hbm_to_vmem [thread:$0]  %s183, 256, %s185, %s173, 128, 128, 8
        $region32: #{tpu_custom_call.1} parent=27 // pred_fallthru
          _
      $region28: #{tpu_custom_call.1} parent=5 // pred_fallthru
        _
      %p191 = scmp.le.s32.totalorder 1, %s15
      %p192 = scmp.lt.s32.totalorder %s15, 3
      %p193 = pnand %p191, %p192
      %p194 = pneg %p193
      // Predicated region
      $region33: #{tpu_custom_call.1} parent=5 // pred_check
        _
      $region34: #{tpu_custom_call.1} parent=5 // pred_check_branch
        %196 = sbr.rel (%p193) target = $region36
      $region35: #{tpu_custom_call.1} parent=5 // pred_region
        %s197 = ssub.s32 %s15, 1
        %s198 = sand.u32 %s28, 1
        %s199 = scalar_lea.sflag [#allocation4], %s198
        %s200 = sand.u32 %s28, 1
        %s201 = smul.addr %s200, 16
        %s202 = scalar_lea.vmem [#allocation3], %s201
        // Predicated region
        $region37: #{tpu_custom_call.1} parent=35 // pred_check
          %p203 = pneg %p41
        $region38: #{tpu_custom_call.1} parent=35 // pred_check_branch
          %205 = sbr.rel (%p203) target = $region40
        $region39: #{tpu_custom_call.1} parent=35 // pred_region
          %207 = dma.done %s199, 256
        $region40: #{tpu_custom_call.1} parent=35 // pred_fallthru
          _
        // Predicated region
        $region41: #{tpu_custom_call.1} parent=35 // pred_check
          %p208 = pneg %p62
        $region42: #{tpu_custom_call.1} parent=35 // pred_check_branch
          %210 = sbr.rel (%p208) target = $region44
        $region43: #{tpu_custom_call.1} parent=35 // pred_region
          %212 = dma.done [#allocation6], 384
        $region44: #{tpu_custom_call.1} parent=35 // pred_fallthru
          _
        %s213 = sand.u32 %s28, 1
        %s214 = scalar_lea.sflag [#allocation4], %s213
        %s215 = sand.u32 %s28, 1
        %s216 = smul.addr %s215, 16
        %s217 = scalar_lea.vmem [#allocation3], %s216
        %p218 = pneg %p41
        %p219 = pneg %p38
        %p220 = pneg %p62
        %p221 = pneg %p59
        %p222 = pneg %p83
        %p223 = pneg %p80
        %p224 = pneg %p104
        %p225 = pneg %p101
        %p226 = pneg %p130
        %p227 = pneg %p127
        %p228 = scmp.lt.s32.totalorder %s20, 1
        %s229 = scalar_select %p228, %s20, 1
        %s230 = smul.addr %s229, 32
        %s231 = smul.addr %s230, 8
        %s232 = scalar_lea.vmem %s4, %s231
        %p233 = scmp.lt.s32.totalorder %s20, 1
        %s234 = scalar_select %p233, %s20, 1
        %s235 = smul.addr %s234, 32
        %s236 = smul.addr %s235, 8
        %s237 = scalar_lea.vmem %s4, %s236
        %v239 = vld [vmem:[%s202] sm:$0xff]
        %v240 = vld [vmem:[%s202 + $0x8] sm:$0xff]
        %v241 = vld [vmem:[#allocation5] sm:$0xff]
        %v242 = vld [vmem:[#allocation5 + $0x8] sm:$0xf]
        %v243 = vld [vmem:[#allocation5 + $0xc] sm:$0xff]
        %v244 = vld [vmem:[#allocation5 + $0x14] sm:$0xf]
        %v245 = vld [vmem:[%s2] sm:$0x7]
        %v247 = vperm.slane %v245, 0
        %v248 = vperm.slane %v245, 1
        %v249 = vperm.slane %v245, 2
        %v255 = vunpack.c.l.b16 %v239
        %v256 = vunpack.c.h.b16 %v239
        %v257 = vunpack.c.l.b16 %v240
        %v258 = vunpack.c.h.b16 %v240
        %v259 = vpack.c.b16 %v257, %v255
        %v260 = vpack.c.b16 %v258, %v256
        %263 = vxpose.binary.xlu0.c.b16.start [1/16] %v260, %v259, 128
        %264 = vxpose.binary.xlu0.c.b16.cont [2/16] 0, 0, 128
        %265 = vxpose.binary.xlu0.c.b16.cont [3/16] 0, 0, 128
        %266 = vxpose.binary.xlu0.c.b16.cont [4/16] 0, 0, 128
        %267 = vxpose.binary.xlu0.c.b16.cont [5/16] 0, 0, 128
        %268 = vxpose.binary.xlu0.c.b16.cont [6/16] 0, 0, 128
        %269 = vxpose.binary.xlu0.c.b16.cont [7/16] 0, 0, 128
        %270 = vxpose.binary.xlu0.c.b16.end [8/16] 0, 0, 128
        %v271 = vpop.trf.xlu0
        %v272 = vpop.trf.xlu0
        %v273 = vpop.trf.xlu0
        %v274 = vpop.trf.xlu0
        %v275 = vpop.trf.xlu0
        %v276 = vpop.trf.xlu0
        %v277 = vpop.trf.xlu0
        %v278 = vpop.trf.xlu0
        %v279 = vpop.trf.xlu0
        %v280 = vpop.trf.xlu0
        %v281 = vpop.trf.xlu0
        %v282 = vpop.trf.xlu0
        %v283 = vpop.trf.xlu0
        %v284 = vpop.trf.xlu0
        %v285 = vpop.trf.xlu0
        %v286 = vpop.trf.xlu0
        %v291 = vunpack.c.l.b16 %v241
        %v292 = vunpack.c.h.b16 %v241
        %v293 = vunpack.c.l.b16 %v242
        %v294 = vunpack.c.l.b16 %v243
        %v295 = vunpack.c.h.b16 %v243
        %v296 = vunpack.c.l.b16 %v244
        %v297 = vpack.c.b16 %v294, %v291
        %v298 = vpack.c.b16 %v295, %v292
        %v299 = vpack.c.b16 %v296, %v293
        %vm303 = vcmask 130048
        %v305 = vsel %vm303, %v271, 0
        %v308 = vsel %vm303, %v273, 0
        %v311 = vsel %vm303, %v275, 0
        %v314 = vsel %vm303, %v277, 0
        %v317 = vsel %vm303, %v279, 0
        %v320 = vsel %vm303, %v281, 0
        %v323 = vsel %vm303, %v283, 0
        %v326 = vsel %vm303, %v285, 0
        %v329 = vsel %vm303, %v272, 0
        %v332 = vsel %vm303, %v274, 0
        %v335 = vsel %vm303, %v276, 0
        %v338 = vsel %vm303, %v278, 0
        %v341 = vsel %vm303, %v280, 0
        %v344 = vsel %vm303, %v282, 0
        %v347 = vsel %vm303, %v284, 0
        %v350 = vsel %vm303, %v286, 0
        %352 = vmatpush.bf16.msra.mxu0 0
        %353 = vmatpush.bf16.msra.mxu0 0
        %354 = vmatpush.bf16.msra.mxu0 0
        %355 = vmatpush.bf16.msra.mxu0 0
        %356 = vmatpush.bf16.msra.mxu0 0
        %357 = vmatpush.bf16.msra.mxu0 0
        %358 = vmatpush.bf16.msra.mxu0 0
        %359 = vmatpush.bf16.msra.mxu0 %v297
        %360 = vmatmul.bf16.gmra.mxu0 %v305
        %v361 = vpop.f32.mrf.mxu0
        %v362 = vadd.f32 %v247, %v361
        %v363 = vpop.f32.mrf.mxu0
        %v364 = vadd.f32 %v247, %v363
        %365 = vmatmul.bf16.gmra.mxu0 %v308
        %v366 = vpop.f32.mrf.mxu0
        %v367 = vadd.f32 %v247, %v366
        %v368 = vpop.f32.mrf.mxu0
        %v369 = vadd.f32 %v247, %v368
        %370 = vmatmul.bf16.gmra.mxu0 %v311
        %v371 = vpop.f32.mrf.mxu0
        %v372 = vadd.f32 %v247, %v371
        %v373 = vpop.f32.mrf.mxu0
        %v374 = vadd.f32 %v247, %v373
        %375 = vmatmul.bf16.gmra.mxu0 %v314
        %v376 = vpop.f32.mrf.mxu0
        %v377 = vadd.f32 %v247, %v376
        %v378 = vpop.f32.mrf.mxu0
        %v379 = vadd.f32 %v247, %v378
        %380 = vmatmul.bf16.gmra.mxu0 %v317
        %v381 = vpop.f32.mrf.mxu0
        %v382 = vadd.f32 %v247, %v381
        %v383 = vpop.f32.mrf.mxu0
        %v384 = vadd.f32 %v247, %v383
        %385 = vmatmul.bf16.gmra.mxu0 %v320
        %v386 = vpop.f32.mrf.mxu0
        %v387 = vadd.f32 %v247, %v386
        %v388 = vpop.f32.mrf.mxu0
        %v389 = vadd.f32 %v247, %v388
        %390 = vmatmul.bf16.gmra.mxu0 %v323
        %v391 = vpop.f32.mrf.mxu0
        %v392 = vadd.f32 %v247, %v391
        %v393 = vpop.f32.mrf.mxu0
        %v394 = vadd.f32 %v247, %v393
        %395 = vmatmul.bf16.gmra.mxu0 %v326
        %v396 = vpop.f32.mrf.mxu0
        %v397 = vadd.f32 %v247, %v396
        %v398 = vpop.f32.mrf.mxu0
        %v399 = vadd.f32 %v247, %v398
        %400 = vmatmul.bf16.gmra.mxu0 %v329
        %v401 = vpop.f32.mrf.mxu0
        %v402 = vadd.f32 %v247, %v401
        %v403 = vpop.f32.mrf.mxu0
        %v404 = vadd.f32 %v247, %v403
        %405 = vmatmul.bf16.gmra.mxu0 %v332
        %v406 = vpop.f32.mrf.mxu0
        %v407 = vadd.f32 %v247, %v406
        %v408 = vpop.f32.mrf.mxu0
        %v409 = vadd.f32 %v247, %v408
        %410 = vmatmul.bf16.gmra.mxu0 %v335
        %v411 = vpop.f32.mrf.mxu0
        %v412 = vadd.f32 %v247, %v411
        %v413 = vpop.f32.mrf.mxu0
        %v414 = vadd.f32 %v247, %v413
        %415 = vmatmul.bf16.gmra.mxu0 %v338
        %v416 = vpop.f32.mrf.mxu0
        %v417 = vadd.f32 %v247, %v416
        %v418 = vpop.f32.mrf.mxu0
        %v419 = vadd.f32 %v247, %v418
        %420 = vmatmul.bf16.gmra.mxu0 %v341
        %v421 = vpop.f32.mrf.mxu0
        %v422 = vadd.f32 %v247, %v421
        %v423 = vpop.f32.mrf.mxu0
        %v424 = vadd.f32 %v247, %v423
        %425 = vmatmul.bf16.gmra.mxu0 %v344
        %v426 = vpop.f32.mrf.mxu0
        %v427 = vadd.f32 %v247, %v426
        %v428 = vpop.f32.mrf.mxu0
        %v429 = vadd.f32 %v247, %v428
        %430 = vmatmul.bf16.gmra.mxu0 %v347
        %v431 = vpop.f32.mrf.mxu0
        %v432 = vadd.f32 %v247, %v431
        %v433 = vpop.f32.mrf.mxu0
        %v434 = vadd.f32 %v247, %v433
        %435 = vmatmul.bf16.gmra.mxu0 %v350
        %v436 = vpop.f32.mrf.mxu0
        %v437 = vadd.f32 %v247, %v436
        %v438 = vpop.f32.mrf.mxu0
        %v439 = vadd.f32 %v247, %v438
        %440 = vdwg.mxu0
        %441 = vmatpush.bf16.msra.mxu0 0
        %442 = vmatpush.bf16.msra.mxu0 0
        %443 = vmatpush.bf16.msra.mxu0 0
        %444 = vmatpush.bf16.msra.mxu0 0
        %445 = vmatpush.bf16.msra.mxu0 0
        %446 = vmatpush.bf16.msra.mxu0 0
        %447 = vmatpush.bf16.msra.mxu0 0
        %448 = vmatpush.bf16.msra.mxu0 %v298
        %449 = vmatmul.bf16.gmra.mxu0 %v305
        %v450 = vpop.f32.mrf.mxu0
        %v451 = vadd.f32 %v248, %v450
        %v452 = vpop.f32.mrf.mxu0
        %v453 = vadd.f32 %v248, %v452
        %454 = vmatmul.bf16.gmra.mxu0 %v308
        %v455 = vpop.f32.mrf.mxu0
        %v456 = vadd.f32 %v248, %v455
        %v457 = vpop.f32.mrf.mxu0
        %v458 = vadd.f32 %v248, %v457
        %459 = vmatmul.bf16.gmra.mxu0 %v311
        %v460 = vpop.f32.mrf.mxu0
        %v461 = vadd.f32 %v248, %v460
        %v462 = vpop.f32.mrf.mxu0
        %v463 = vadd.f32 %v248, %v462
        %464 = vmatmul.bf16.gmra.mxu0 %v314
        %v465 = vpop.f32.mrf.mxu0
        %v466 = vadd.f32 %v248, %v465
        %v467 = vpop.f32.mrf.mxu0
        %v468 = vadd.f32 %v248, %v467
        %469 = vmatmul.bf16.gmra.mxu0 %v317
        %v470 = vpop.f32.mrf.mxu0
        %v471 = vadd.f32 %v248, %v470
        %v472 = vpop.f32.mrf.mxu0
        %v473 = vadd.f32 %v248, %v472
        %474 = vmatmul.bf16.gmra.mxu0 %v320
        %v475 = vpop.f32.mrf.mxu0
        %v476 = vadd.f32 %v248, %v475
        %v477 = vpop.f32.mrf.mxu0
        %v478 = vadd.f32 %v248, %v477
        %479 = vmatmul.bf16.gmra.mxu0 %v323
        %v480 = vpop.f32.mrf.mxu0
        %v481 = vadd.f32 %v248, %v480
        %v482 = vpop.f32.mrf.mxu0
        %v483 = vadd.f32 %v248, %v482
        %484 = vmatmul.bf16.gmra.mxu0 %v326
        %v485 = vpop.f32.mrf.mxu0
        %v486 = vadd.f32 %v248, %v485
        %v487 = vpop.f32.mrf.mxu0
        %v488 = vadd.f32 %v248, %v487
        %489 = vmatmul.bf16.gmra.mxu0 %v329
        %v490 = vpop.f32.mrf.mxu0
        %v491 = vadd.f32 %v248, %v490
        %v492 = vpop.f32.mrf.mxu0
        %v493 = vadd.f32 %v248, %v492
        %494 = vmatmul.bf16.gmra.mxu0 %v332
        %v495 = vpop.f32.mrf.mxu0
        %v496 = vadd.f32 %v248, %v495
        %v497 = vpop.f32.mrf.mxu0
        %v498 = vadd.f32 %v248, %v497
        %499 = vmatmul.bf16.gmra.mxu0 %v335
        %v500 = vpop.f32.mrf.mxu0
        %v501 = vadd.f32 %v248, %v500
        %v502 = vpop.f32.mrf.mxu0
        %v503 = vadd.f32 %v248, %v502
        %504 = vmatmul.bf16.gmra.mxu0 %v338
        %v505 = vpop.f32.mrf.mxu0
        %v506 = vadd.f32 %v248, %v505
        %v507 = vpop.f32.mrf.mxu0
        %v508 = vadd.f32 %v248, %v507
        %509 = vmatmul.bf16.gmra.mxu0 %v341
        %v510 = vpop.f32.mrf.mxu0
        %v511 = vadd.f32 %v248, %v510
        %v512 = vpop.f32.mrf.mxu0
        %v513 = vadd.f32 %v248, %v512
        %514 = vmatmul.bf16.gmra.mxu0 %v344
        %v515 = vpop.f32.mrf.mxu0
        %v516 = vadd.f32 %v248, %v515
        %v517 = vpop.f32.mrf.mxu0
        %v518 = vadd.f32 %v248, %v517
        %519 = vmatmul.bf16.gmra.mxu0 %v347
        %v520 = vpop.f32.mrf.mxu0
        %v521 = vadd.f32 %v248, %v520
        %v522 = vpop.f32.mrf.mxu0
        %v523 = vadd.f32 %v248, %v522
        %524 = vmatmul.bf16.gmra.mxu0 %v350
        %v525 = vpop.f32.mrf.mxu0
        %v526 = vadd.f32 %v248, %v525
        %v527 = vpop.f32.mrf.mxu0
        %v528 = vadd.f32 %v248, %v527
        %529 = vdwg.mxu0
        %530 = vmatpush.bf16.msra.mxu0 0
        %531 = vmatpush.bf16.msra.mxu0 0
        %532 = vmatpush.bf16.msra.mxu0 0
        %533 = vmatpush.bf16.msra.mxu0 0
        %534 = vmatpush.bf16.msra.mxu0 0
        %535 = vmatpush.bf16.msra.mxu0 0
        %536 = vmatpush.bf16.msra.mxu0 0
        %537 = vmatpush.bf16.msra.mxu0 %v299
        %538 = vmatmul.bf16.gmra.mxu0 %v305
        %v539 = vpop.f32.mrf.mxu0
        %v540 = vadd.f32 %v249, %v539
        %v541 = vpop.f32.mrf.mxu0
        %v542 = vadd.f32 %v249, %v541
        %543 = vmatmul.bf16.gmra.mxu0 %v308
        %v544 = vpop.f32.mrf.mxu0
        %v545 = vadd.f32 %v249, %v544
        %v546 = vpop.f32.mrf.mxu0
        %v547 = vadd.f32 %v249, %v546
        %548 = vmatmul.bf16.gmra.mxu0 %v311
        %v549 = vpop.f32.mrf.mxu0
        %v550 = vadd.f32 %v249, %v549
        %v551 = vpop.f32.mrf.mxu0
        %v552 = vadd.f32 %v249, %v551
        %553 = vmatmul.bf16.gmra.mxu0 %v314
        %v554 = vpop.f32.mrf.mxu0
        %v555 = vadd.f32 %v249, %v554
        %v556 = vpop.f32.mrf.mxu0
        %v557 = vadd.f32 %v249, %v556
        %558 = vmatmul.bf16.gmra.mxu0 %v317
        %v559 = vpop.f32.mrf.mxu0
        %v560 = vadd.f32 %v249, %v559
        %v561 = vpop.f32.mrf.mxu0
        %v562 = vadd.f32 %v249, %v561
        %563 = vmatmul.bf16.gmra.mxu0 %v320
        %v564 = vpop.f32.mrf.mxu0
        %v565 = vadd.f32 %v249, %v564
        %v566 = vpop.f32.mrf.mxu0
        %v567 = vadd.f32 %v249, %v566
        %568 = vmatmul.bf16.gmra.mxu0 %v323
        %v569 = vpop.f32.mrf.mxu0
        %v570 = vadd.f32 %v249, %v569
        %v571 = vpop.f32.mrf.mxu0
        %v572 = vadd.f32 %v249, %v571
        %573 = vmatmul.bf16.gmra.mxu0 %v326
        %v574 = vpop.f32.mrf.mxu0
        %v575 = vadd.f32 %v249, %v574
        %v576 = vpop.f32.mrf.mxu0
        %v577 = vadd.f32 %v249, %v576
        %578 = vmatmul.bf16.gmra.mxu0 %v329
        %v579 = vpop.f32.mrf.mxu0
        %v580 = vadd.f32 %v249, %v579
        %v581 = vpop.f32.mrf.mxu0
        %v582 = vadd.f32 %v249, %v581
        %583 = vmatmul.bf16.gmra.mxu0 %v332
        %v584 = vpop.f32.mrf.mxu0
        %v585 = vadd.f32 %v249, %v584
        %v586 = vpop.f32.mrf.mxu0
        %v587 = vadd.f32 %v249, %v586
        %588 = vmatmul.bf16.gmra.mxu0 %v335
        %v589 = vpop.f32.mrf.mxu0
        %v590 = vadd.f32 %v249, %v589
        %v591 = vpop.f32.mrf.mxu0
        %v592 = vadd.f32 %v249, %v591
        %593 = vmatmul.bf16.gmra.mxu0 %v338
        %v594 = vpop.f32.mrf.mxu0
        %v595 = vadd.f32 %v249, %v594
        %v596 = vpop.f32.mrf.mxu0
        %v597 = vadd.f32 %v249, %v596
        %598 = vmatmul.bf16.gmra.mxu0 %v341
        %v599 = vpop.f32.mrf.mxu0
        %v600 = vadd.f32 %v249, %v599
        %v601 = vpop.f32.mrf.mxu0
        %v602 = vadd.f32 %v249, %v601
        %603 = vmatmul.bf16.gmra.mxu0 %v344
        %v604 = vpop.f32.mrf.mxu0
        %v605 = vadd.f32 %v249, %v604
        %v606 = vpop.f32.mrf.mxu0
        %v607 = vadd.f32 %v249, %v606
        %608 = vmatmul.bf16.gmra.mxu0 %v347
        %v609 = vpop.f32.mrf.mxu0
        %v610 = vadd.f32 %v249, %v609
        %v611 = vpop.f32.mrf.mxu0
        %v612 = vadd.f32 %v249, %v611
        %613 = vmatmul.bf16.gmra.mxu0 %v350
        %v614 = vpop.f32.mrf.mxu0
        %v615 = vadd.f32 %v249, %v614
        %v616 = vpop.f32.mrf.mxu0
        %v617 = vadd.f32 %v249, %v616
        %618 = vdwg.mxu0
        %v619 = vpack.c.bf16 %v362, %v362
        %v620 = vpack.c.bf16 %v364, %v364
        %v621 = vpack.c.bf16 %v367, %v367
        %v622 = vpack.c.bf16 %v369, %v369
        %v623 = vpack.c.bf16 %v372, %v372
        %v624 = vpack.c.bf16 %v374, %v374
        %v625 = vpack.c.bf16 %v377, %v377
        %v626 = vpack.c.bf16 %v379, %v379
        %v627 = vpack.c.bf16 %v382, %v382
        %v628 = vpack.c.bf16 %v384, %v384
        %v629 = vpack.c.bf16 %v387, %v387
        %v630 = vpack.c.bf16 %v389, %v389
        %v631 = vpack.c.bf16 %v392, %v392
        %v632 = vpack.c.bf16 %v394, %v394
        %v633 = vpack.c.bf16 %v397, %v397
        %v634 = vpack.c.bf16 %v399, %v399
        %v635 = vpack.c.bf16 %v402, %v402
        %v636 = vpack.c.bf16 %v404, %v404
        %v637 = vpack.c.bf16 %v407, %v407
        %v638 = vpack.c.bf16 %v409, %v409
        %v639 = vpack.c.bf16 %v412, %v412
        %v640 = vpack.c.bf16 %v414, %v414
        %v641 = vpack.c.bf16 %v417, %v417
        %v642 = vpack.c.bf16 %v419, %v419
        %v643 = vpack.c.bf16 %v422, %v422
        %v644 = vpack.c.bf16 %v424, %v424
        %v645 = vpack.c.bf16 %v427, %v427
        %v646 = vpack.c.bf16 %v429, %v429
        %v647 = vpack.c.bf16 %v432, %v432
        %v648 = vpack.c.bf16 %v434, %v434
        %v649 = vpack.c.bf16 %v437, %v437
        %v650 = vpack.c.bf16 %v439, %v439
        %v651 = vpack.c.bf16 %v451, %v451
        %v652 = vpack.c.bf16 %v453, %v453
        %v653 = vpack.c.bf16 %v456, %v456
        %v654 = vpack.c.bf16 %v458, %v458
        %v655 = vpack.c.bf16 %v461, %v461
        %v656 = vpack.c.bf16 %v463, %v463
        %v657 = vpack.c.bf16 %v466, %v466
        %v658 = vpack.c.bf16 %v468, %v468
        %v659 = vpack.c.bf16 %v471, %v471
        %v660 = vpack.c.bf16 %v473, %v473
        %v661 = vpack.c.bf16 %v476, %v476
        %v662 = vpack.c.bf16 %v478, %v478
        %v663 = vpack.c.bf16 %v481, %v481
        %v664 = vpack.c.bf16 %v483, %v483
        %v665 = vpack.c.bf16 %v486, %v486
        %v666 = vpack.c.bf16 %v488, %v488
        %v667 = vpack.c.bf16 %v491, %v491
        %v668 = vpack.c.bf16 %v493, %v493
        %v669 = vpack.c.bf16 %v496, %v496
        %v670 = vpack.c.bf16 %v498, %v498
        %v671 = vpack.c.bf16 %v501, %v501
        %v672 = vpack.c.bf16 %v503, %v503
        %v673 = vpack.c.bf16 %v506, %v506
        %v674 = vpack.c.bf16 %v508, %v508
        %v675 = vpack.c.bf16 %v511, %v511
        %v676 = vpack.c.bf16 %v513, %v513
        %v677 = vpack.c.bf16 %v516, %v516
        %v678 = vpack.c.bf16 %v518, %v518
        %v679 = vpack.c.bf16 %v521, %v521
        %v680 = vpack.c.bf16 %v523, %v523
        %v681 = vpack.c.bf16 %v526, %v526
        %v682 = vpack.c.bf16 %v528, %v528
        %v683 = vrot.slane %v372, 4
        %vm684 = vcmask 1047556
        %v685 = vsel %vm684, %v683, %v362
        %v686 = vrot.slane %v362, 4
        %v687 = vsel %vm684, %v372, %v686
        %v689 = vunpack.c.l.s4 1983009808
        %v690 = vunpack.c.0.s8 %v689
        %v691 = vperm.slane %v685, %v690
        %v693 = vunpack.c.l.s4 1983009808
        %v694 = vunpack.c.0.s8 %v693
        %v695 = vperm.slane %v687, %v694
        %v696 = vrot.slane %v377, 4
        %v697 = vsel %vm684, %v696, %v367
        %v698 = vrot.slane %v367, 4
        %v699 = vsel %vm684, %v377, %v698
        %v701 = vunpack.c.l.s4 1983009808
        %v702 = vunpack.c.0.s8 %v701
        %v703 = vperm.slane %v697, %v702
        %v705 = vunpack.c.l.s4 1983009808
        %v706 = vunpack.c.0.s8 %v705
        %v707 = vperm.slane %v699, %v706
        %v708 = vrot.slane %v392, 4
        %v709 = vsel %vm684, %v708, %v382
        %v710 = vrot.slane %v382, 4
        %v711 = vsel %vm684, %v392, %v710
        %v713 = vunpack.c.l.s4 1983009808
        %v714 = vunpack.c.0.s8 %v713
        %v715 = vperm.slane %v709, %v714
        %v717 = vunpack.c.l.s4 1983009808
        %v718 = vunpack.c.0.s8 %v717
        %v719 = vperm.slane %v711, %v718
        %v720 = vrot.slane %v397, 4
        %v721 = vsel %vm684, %v720, %v387
        %v722 = vrot.slane %v387, 4
        %v723 = vsel %vm684, %v397, %v722
        %v725 = vunpack.c.l.s4 1983009808
        %v726 = vunpack.c.0.s8 %v725
        %v727 = vperm.slane %v721, %v726
        %v729 = vunpack.c.l.s4 1983009808
        %v730 = vunpack.c.0.s8 %v729
        %v731 = vperm.slane %v723, %v730
        %v732 = vrot.slane %v703, 4
        %v733 = vsel %vm684, %v732, %v691
        %v734 = vrot.slane %v691, 4
        %v735 = vsel %vm684, %v703, %v734
        %v737 = vunpack.c.l.s4 1934713408
        %v738 = vunpack.c.0.s8 %v737
        %v739 = vperm.slane %v733, %v738
        %v741 = vunpack.c.l.s4 1934713408
        %v742 = vunpack.c.0.s8 %v741
        %v743 = vperm.slane %v735, %v742
        %v744 = vrot.slane %v707, 4
        %v745 = vsel %vm684, %v744, %v695
        %v746 = vrot.slane %v695, 4
        %v747 = vsel %vm684, %v707, %v746
        %v749 = vunpack.c.l.s4 1934713408
        %v750 = vunpack.c.0.s8 %v749
        %v751 = vperm.slane %v745, %v750
        %v753 = vunpack.c.l.s4 1934713408
        %v754 = vunpack.c.0.s8 %v753
        %v755 = vperm.slane %v747, %v754
        %v756 = vrot.slane %v727, 4
        %v757 = vsel %vm684, %v756, %v715
        %v758 = vrot.slane %v715, 4
        %v759 = vsel %vm684, %v727, %v758
        %v761 = vunpack.c.l.s4 1934713408
        %v762 = vunpack.c.0.s8 %v761
        %v763 = vperm.slane %v757, %v762
        %v765 = vunpack.c.l.s4 1934713408
        %v766 = vunpack.c.0.s8 %v765
        %v767 = vperm.slane %v759, %v766
        %v768 = vrot.slane %v731, 4
        %v769 = vsel %vm684, %v768, %v719
        %v770 = vrot.slane %v719, 4
        %v771 = vsel %vm684, %v731, %v770
        %v773 = vunpack.c.l.s4 1934713408
        %v774 = vunpack.c.0.s8 %v773
        %v775 = vperm.slane %v769, %v774
        %v777 = vunpack.c.l.s4 1934713408
        %v778 = vunpack.c.0.s8 %v777
        %v779 = vperm.slane %v771, %v778
        %v780 = vrot.slane %v763, 4
        %v781 = vsel %vm684, %v780, %v739
        %v782 = vrot.slane %v739, 4
        %v783 = vsel %vm684, %v763, %v782
        %v784 = vrot.slane %v767, 4
        %v785 = vsel %vm684, %v784, %v743
        %v786 = vrot.slane %v743, 4
        %v787 = vsel %vm684, %v767, %v786
        %v788 = vrot.slane %v775, 4
        %v789 = vsel %vm684, %v788, %v751
        %v790 = vrot.slane %v751, 4
        %v791 = vsel %vm684, %v775, %v790
        %v792 = vrot.slane %v779, 4
        %v793 = vsel %vm684, %v792, %v755
        %v794 = vrot.slane %v755, 4
        %v795 = vsel %vm684, %v779, %v794
        %v796 = vrot.slane %v412, 4
        %v797 = vsel %vm684, %v796, %v402
        %v798 = vrot.slane %v402, 4
        %v799 = vsel %vm684, %v412, %v798
        %v801 = vunpack.c.l.s4 1983009808
        %v802 = vunpack.c.0.s8 %v801
        %v803 = vperm.slane %v797, %v802
        %v805 = vunpack.c.l.s4 1983009808
        %v806 = vunpack.c.0.s8 %v805
        %v807 = vperm.slane %v799, %v806
        %v808 = vrot.slane %v417, 4
        %v809 = vsel %vm684, %v808, %v407
        %v810 = vrot.slane %v407, 4
        %v811 = vsel %vm684, %v417, %v810
        %v813 = vunpack.c.l.s4 1983009808
        %v814 = vunpack.c.0.s8 %v813
        %v815 = vperm.slane %v809, %v814
        %v817 = vunpack.c.l.s4 1983009808
        %v818 = vunpack.c.0.s8 %v817
        %v819 = vperm.slane %v811, %v818
        %v820 = vrot.slane %v432, 4
        %v821 = vsel %vm684, %v820, %v422
        %v822 = vrot.slane %v422, 4
        %v823 = vsel %vm684, %v432, %v822
        %v825 = vunpack.c.l.s4 1983009808
        %v826 = vunpack.c.0.s8 %v825
        %v827 = vperm.slane %v821, %v826
        %v829 = vunpack.c.l.s4 1983009808
        %v830 = vunpack.c.0.s8 %v829
        %v831 = vperm.slane %v823, %v830
        %v832 = vrot.slane %v437, 4
        %v833 = vsel %vm684, %v832, %v427
        %v834 = vrot.slane %v427, 4
        %v835 = vsel %vm684, %v437, %v834
        %v837 = vunpack.c.l.s4 1983009808
        %v838 = vunpack.c.0.s8 %v837
        %v839 = vperm.slane %v833, %v838
        %v841 = vunpack.c.l.s4 1983009808
        %v842 = vunpack.c.0.s8 %v841
        %v843 = vperm.slane %v835, %v842
        %v844 = vrot.slane %v815, 4
        %v845 = vsel %vm684, %v844, %v803
        %v846 = vrot.slane %v803, 4
        %v847 = vsel %vm684, %v815, %v846
        %v849 = vunpack.c.l.s4 1934713408
        %v850 = vunpack.c.0.s8 %v849
        %v851 = vperm.slane %v845, %v850
        %v853 = vunpack.c.l.s4 1934713408
        %v854 = vunpack.c.0.s8 %v853
        %v855 = vperm.slane %v847, %v854
        %v856 = vrot.slane %v819, 4
        %v857 = vsel %vm684, %v856, %v807
        %v858 = vrot.slane %v807, 4
        %v859 = vsel %vm684, %v819, %v858
        %v861 = vunpack.c.l.s4 1934713408
        %v862 = vunpack.c.0.s8 %v861
        %v863 = vperm.slane %v857, %v862
        %v865 = vunpack.c.l.s4 1934713408
        %v866 = vunpack.c.0.s8 %v865
        %v867 = vperm.slane %v859, %v866
        %v868 = vrot.slane %v839, 4
        %v869 = vsel %vm684, %v868, %v827
        %v870 = vrot.slane %v827, 4
        %v871 = vsel %vm684, %v839, %v870
        %v873 = vunpack.c.l.s4 1934713408
        %v874 = vunpack.c.0.s8 %v873
        %v875 = vperm.slane %v869, %v874
        %v877 = vunpack.c.l.s4 1934713408
        %v878 = vunpack.c.0.s8 %v877
        %v879 = vperm.slane %v871, %v878
        %v880 = vrot.slane %v843, 4
        %v881 = vsel %vm684, %v880, %v831
        %v882 = vrot.slane %v831, 4
        %v883 = vsel %vm684, %v843, %v882
        %v885 = vunpack.c.l.s4 1934713408
        %v886 = vunpack.c.0.s8 %v885
        %v887 = vperm.slane %v881, %v886
        %v889 = vunpack.c.l.s4 1934713408
        %v890 = vunpack.c.0.s8 %v889
        %v891 = vperm.slane %v883, %v890
        %v892 = vrot.slane %v875, 4
        %v893 = vsel %vm684, %v892, %v851
        %v894 = vrot.slane %v851, 4
        %v895 = vsel %vm684, %v875, %v894
        %v896 = vrot.slane %v879, 4
        %v897 = vsel %vm684, %v896, %v855
        %v898 = vrot.slane %v855, 4
        %v899 = vsel %vm684, %v879, %v898
        %v900 = vrot.slane %v887, 4
        %v901 = vsel %vm684, %v900, %v863
        %v902 = vrot.slane %v863, 4
        %v903 = vsel %vm684, %v887, %v902
        %v904 = vrot.slane %v891, 4
        %v905 = vsel %vm684, %v904, %v867
        %v906 = vrot.slane %v867, 4
        %v907 = vsel %vm684, %v891, %v906
        %v908 = vrot.slane %v374, 4
        %v909 = vsel %vm684, %v908, %v364
        %v910 = vrot.slane %v364, 4
        %v911 = vsel %vm684, %v374, %v910
        %v913 = vunpack.c.l.s4 1983009808
        %v914 = vunpack.c.0.s8 %v913
        %v915 = vperm.slane %v909, %v914
        %v917 = vunpack.c.l.s4 1983009808
        %v918 = vunpack.c.0.s8 %v917
        %v919 = vperm.slane %v911, %v918
        %v920 = vrot.slane %v379, 4
        %v921 = vsel %vm684, %v920, %v369
        %v922 = vrot.slane %v369, 4
        %v923 = vsel %vm684, %v379, %v922
        %v925 = vunpack.c.l.s4 1983009808
        %v926 = vunpack.c.0.s8 %v925
        %v927 = vperm.slane %v921, %v926
        %v929 = vunpack.c.l.s4 1983009808
        %v930 = vunpack.c.0.s8 %v929
        %v931 = vperm.slane %v923, %v930
        %v932 = vrot.slane %v394, 4
        %v933 = vsel %vm684, %v932, %v384
        %v934 = vrot.slane %v384, 4
        %v935 = vsel %vm684, %v394, %v934
        %v937 = vunpack.c.l.s4 1983009808
        %v938 = vunpack.c.0.s8 %v937
        %v939 = vperm.slane %v933, %v938
        %v941 = vunpack.c.l.s4 1983009808
        %v942 = vunpack.c.0.s8 %v941
        %v943 = vperm.slane %v935, %v942
        %v944 = vrot.slane %v399, 4
        %v945 = vsel %vm684, %v944, %v389
        %v946 = vrot.slane %v389, 4
        %v947 = vsel %vm684, %v399, %v946
        %v949 = vunpack.c.l.s4 1983009808
        %v950 = vunpack.c.0.s8 %v949
        %v951 = vperm.slane %v945, %v950
        %v953 = vunpack.c.l.s4 1983009808
        %v954 = vunpack.c.0.s8 %v953
        %v955 = vperm.slane %v947, %v954
        %v956 = vrot.slane %v927, 4
        %v957 = vsel %vm684, %v956, %v915
        %v958 = vrot.slane %v915, 4
        %v959 = vsel %vm684, %v927, %v958
        %v961 = vunpack.c.l.s4 1934713408
        %v962 = vunpack.c.0.s8 %v961
        %v963 = vperm.slane %v957, %v962
        %v965 = vunpack.c.l.s4 1934713408
        %v966 = vunpack.c.0.s8 %v965
        %v967 = vperm.slane %v959, %v966
        %v968 = vrot.slane %v931, 4
        %v969 = vsel %vm684, %v968, %v919
        %v970 = vrot.slane %v919, 4
        %v971 = vsel %vm684, %v931, %v970
        %v973 = vunpack.c.l.s4 1934713408
        %v974 = vunpack.c.0.s8 %v973
        %v975 = vperm.slane %v969, %v974
        %v977 = vunpack.c.l.s4 1934713408
        %v978 = vunpack.c.0.s8 %v977
        %v979 = vperm.slane %v971, %v978
        %v980 = vrot.slane %v951, 4
        %v981 = vsel %vm684, %v980, %v939
        %v982 = vrot.slane %v939, 4
        %v983 = vsel %vm684, %v951, %v982
        %v985 = vunpack.c.l.s4 1934713408
        %v986 = vunpack.c.0.s8 %v985
        %v987 = vperm.slane %v981, %v986
        %v989 = vunpack.c.l.s4 1934713408
        %v990 = vunpack.c.0.s8 %v989
        %v991 = vperm.slane %v983, %v990
        %v992 = vrot.slane %v955, 4
        %v993 = vsel %vm684, %v992, %v943
        %v994 = vrot.slane %v943, 4
        %v995 = vsel %vm684, %v955, %v994
        %v997 = vunpack.c.l.s4 1934713408
        %v998 = vunpack.c.0.s8 %v997
        %v999 = vperm.slane %v993, %v998
        %v1001 = vunpack.c.l.s4 1934713408
        %v1002 = vunpack.c.0.s8 %v1001
        %v1003 = vperm.slane %v995, %v1002
        %v1004 = vrot.slane %v987, 4
        %v1005 = vsel %vm684, %v1004, %v963
        %v1006 = vrot.slane %v963, 4
        %v1007 = vsel %vm684, %v987, %v1006
        %v1008 = vrot.slane %v991, 4
        %v1009 = vsel %vm684, %v1008, %v967
        %v1010 = vrot.slane %v967, 4
        %v1011 = vsel %vm684, %v991, %v1010
        %v1012 = vrot.slane %v999, 4
        %v1013 = vsel %vm684, %v1012, %v975
        %v1014 = vrot.slane %v975, 4
        %v1015 = vsel %vm684, %v999, %v1014
        %v1016 = vrot.slane %v1003, 4
        %v1017 = vsel %vm684, %v1016, %v979
        %v1018 = vrot.slane %v979, 4
        %v1019 = vsel %vm684, %v1003, %v1018
        %v1020 = vrot.slane %v414, 4
        %v1021 = vsel %vm684, %v1020, %v404
        %v1022 = vrot.slane %v404, 4
        %v1023 = vsel %vm684, %v414, %v1022
        %v1025 = vunpack.c.l.s4 1983009808
        %v1026 = vunpack.c.0.s8 %v1025
        %v1027 = vperm.slane %v1021, %v1026
        %v1029 = vunpack.c.l.s4 1983009808
        %v1030 = vunpack.c.0.s8 %v1029
        %v1031 = vperm.slane %v1023, %v1030
        %v1032 = vrot.slane %v419, 4
        %v1033 = vsel %vm684, %v1032, %v409
        %v1034 = vrot.slane %v409, 4
        %v1035 = vsel %vm684, %v419, %v1034
        %v1037 = vunpack.c.l.s4 1983009808
        %v1038 = vunpack.c.0.s8 %v1037
        %v1039 = vperm.slane %v1033, %v1038
        %v1041 = vunpack.c.l.s4 1983009808
        %v1042 = vunpack.c.0.s8 %v1041
        %v1043 = vperm.slane %v1035, %v1042
        %v1044 = vrot.slane %v434, 4
        %v1045 = vsel %vm684, %v1044, %v424
        %v1046 = vrot.slane %v424, 4
        %v1047 = vsel %vm684, %v434, %v1046
        %v1049 = vunpack.c.l.s4 1983009808
        %v1050 = vunpack.c.0.s8 %v1049
        %v1051 = vperm.slane %v1045, %v1050
        %v1053 = vunpack.c.l.s4 1983009808
        %v1054 = vunpack.c.0.s8 %v1053
        %v1055 = vperm.slane %v1047, %v1054
        %v1056 = vrot.slane %v439, 4
        %v1057 = vsel %vm684, %v1056, %v429
        %v1058 = vrot.slane %v429, 4
        %v1059 = vsel %vm684, %v439, %v1058
        %v1061 = vunpack.c.l.s4 1983009808
        %v1062 = vunpack.c.0.s8 %v1061
        %v1063 = vperm.slane %v1057, %v1062
        %v1065 = vunpack.c.l.s4 1983009808
        %v1066 = vunpack.c.0.s8 %v1065
        %v1067 = vperm.slane %v1059, %v1066
        %v1068 = vrot.slane %v1039, 4
        %v1069 = vsel %vm684, %v1068, %v1027
        %v1070 = vrot.slane %v1027, 4
        %v1071 = vsel %vm684, %v1039, %v1070
        %v1073 = vunpack.c.l.s4 1934713408
        %v1074 = vunpack.c.0.s8 %v1073
        %v1075 = vperm.slane %v1069, %v1074
        %v1077 = vunpack.c.l.s4 1934713408
        %v1078 = vunpack.c.0.s8 %v1077
        %v1079 = vperm.slane %v1071, %v1078
        %v1080 = vrot.slane %v1043, 4
        %v1081 = vsel %vm684, %v1080, %v1031
        %v1082 = vrot.slane %v1031, 4
        %v1083 = vsel %vm684, %v1043, %v1082
        %v1085 = vunpack.c.l.s4 1934713408
        %v1086 = vunpack.c.0.s8 %v1085
        %v1087 = vperm.slane %v1081, %v1086
        %v1089 = vunpack.c.l.s4 1934713408
        %v1090 = vunpack.c.0.s8 %v1089
        %v1091 = vperm.slane %v1083, %v1090
        %v1092 = vrot.slane %v1063, 4
        %v1093 = vsel %vm684, %v1092, %v1051
        %v1094 = vrot.slane %v1051, 4
        %v1095 = vsel %vm684, %v1063, %v1094
        %v1097 = vunpack.c.l.s4 1934713408
        %v1098 = vunpack.c.0.s8 %v1097
        %v1099 = vperm.slane %v1093, %v1098
        %v1101 = vunpack.c.l.s4 1934713408
        %v1102 = vunpack.c.0.s8 %v1101
        %v1103 = vperm.slane %v1095, %v1102
        %v1104 = vrot.slane %v1067, 4
        %v1105 = vsel %vm684, %v1104, %v1055
        %v1106 = vrot.slane %v1055, 4
        %v1107 = vsel %vm684, %v1067, %v1106
        %v1109 = vunpack.c.l.s4 1934713408
        %v1110 = vunpack.c.0.s8 %v1109
        %v1111 = vperm.slane %v1105, %v1110
        %v1113 = vunpack.c.l.s4 1934713408
        %v1114 = vunpack.c.0.s8 %v1113
        %v1115 = vperm.slane %v1107, %v1114
        %v1116 = vrot.slane %v1099, 4
        %v1117 = vsel %vm684, %v1116, %v1075
        %v1118 = vrot.slane %v1075, 4
        %v1119 = vsel %vm684, %v1099, %v1118
        %v1120 = vrot.slane %v1103, 4
        %v1121 = vsel %vm684, %v1120, %v1079
        %v1122 = vrot.slane %v1079, 4
        %v1123 = vsel %vm684, %v1103, %v1122
        %v1124 = vrot.slane %v1111, 4
        %v1125 = vsel %vm684, %v1124, %v1087
        %v1126 = vrot.slane %v1087, 4
        %v1127 = vsel %vm684, %v1111, %v1126
        %v1128 = vrot.slane %v1115, 4
        %v1129 = vsel %vm684, %v1128, %v1091
        %v1130 = vrot.slane %v1091, 4
        %v1131 = vsel %vm684, %v1115, %v1130
        %v1132 = vpack.c.bf16 %v781, %v781
        %v1133 = vpack.c.bf16 %v893, %v893
        %v1134 = vpack.c.bf16 %v783, %v783
        %v1135 = vpack.c.bf16 %v895, %v895
        %v1136 = vpack.c.bf16 %v785, %v785
        %v1137 = vpack.c.bf16 %v897, %v897
        %v1138 = vpack.c.bf16 %v787, %v787
        %v1139 = vpack.c.bf16 %v899, %v899
        %v1140 = vpack.c.bf16 %v789, %v789
        %v1141 = vpack.c.bf16 %v901, %v901
        %v1142 = vpack.c.bf16 %v791, %v791
        %v1143 = vpack.c.bf16 %v903, %v903
        %v1144 = vpack.c.bf16 %v793, %v793
        %v1145 = vpack.c.bf16 %v905, %v905
        %v1146 = vpack.c.bf16 %v795, %v795
        %v1147 = vpack.c.bf16 %v907, %v907
        %v1148 = vpack.c.bf16 %v1005, %v1005
        %v1149 = vpack.c.bf16 %v1117, %v1117
        %v1150 = vpack.c.bf16 %v1007, %v1007
        %v1151 = vpack.c.bf16 %v1119, %v1119
        %v1152 = vpack.c.bf16 %v1009, %v1009
        %v1153 = vpack.c.bf16 %v1121, %v1121
        %v1154 = vpack.c.bf16 %v1011, %v1011
        %v1155 = vpack.c.bf16 %v1123, %v1123
        %v1156 = vpack.c.bf16 %v1013, %v1013
        %v1157 = vpack.c.bf16 %v1125, %v1125
        %v1158 = vpack.c.bf16 %v1015, %v1015
        %v1159 = vpack.c.bf16 %v1127, %v1127
        %v1160 = vpack.c.bf16 %v1017, %v1017
        %v1161 = vpack.c.bf16 %v1129, %v1129
        %v1162 = vpack.c.bf16 %v1019, %v1019
        %v1163 = vpack.c.bf16 %v1131, %v1131
        %v1164 = vrot.slane %v461, 4
        %v1165 = vsel %vm684, %v1164, %v451
        %v1166 = vrot.slane %v451, 4
        %v1167 = vsel %vm684, %v461, %v1166
        %v1169 = vunpack.c.l.s4 1983009808
        %v1170 = vunpack.c.0.s8 %v1169
        %v1171 = vperm.slane %v1165, %v1170
        %v1173 = vunpack.c.l.s4 1983009808
        %v1174 = vunpack.c.0.s8 %v1173
        %v1175 = vperm.slane %v1167, %v1174
        %v1176 = vrot.slane %v466, 4
        %v1177 = vsel %vm684, %v1176, %v456
        %v1178 = vrot.slane %v456, 4
        %v1179 = vsel %vm684, %v466, %v1178
        %v1181 = vunpack.c.l.s4 1983009808
        %v1182 = vunpack.c.0.s8 %v1181
        %v1183 = vperm.slane %v1177, %v1182
        %v1185 = vunpack.c.l.s4 1983009808
        %v1186 = vunpack.c.0.s8 %v1185
        %v1187 = vperm.slane %v1179, %v1186
        %v1188 = vrot.slane %v481, 4
        %v1189 = vsel %vm684, %v1188, %v471
        %v1190 = vrot.slane %v471, 4
        %v1191 = vsel %vm684, %v481, %v1190
        %v1193 = vunpack.c.l.s4 1983009808
        %v1194 = vunpack.c.0.s8 %v1193
        %v1195 = vperm.slane %v1189, %v1194
        %v1197 = vunpack.c.l.s4 1983009808
        %v1198 = vunpack.c.0.s8 %v1197
        %v1199 = vperm.slane %v1191, %v1198
        %v1200 = vrot.slane %v486, 4
        %v1201 = vsel %vm684, %v1200, %v476
        %v1202 = vrot.slane %v476, 4
        %v1203 = vsel %vm684, %v486, %v1202
        %v1205 = vunpack.c.l.s4 1983009808
        %v1206 = vunpack.c.0.s8 %v1205
        %v1207 = vperm.slane %v1201, %v1206
        %v1209 = vunpack.c.l.s4 1983009808
        %v1210 = vunpack.c.0.s8 %v1209
        %v1211 = vperm.slane %v1203, %v1210
        %v1212 = vrot.slane %v1183, 4
        %v1213 = vsel %vm684, %v1212, %v1171
        %v1214 = vrot.slane %v1171, 4
        %v1215 = vsel %vm684, %v1183, %v1214
        %v1217 = vunpack.c.l.s4 1934713408
        %v1218 = vunpack.c.0.s8 %v1217
        %v1219 = vperm.slane %v1213, %v1218
        %v1221 = vunpack.c.l.s4 1934713408
        %v1222 = vunpack.c.0.s8 %v1221
        %v1223 = vperm.slane %v1215, %v1222
        %v1224 = vrot.slane %v1187, 4
        %v1225 = vsel %vm684, %v1224, %v1175
        %v1226 = vrot.slane %v1175, 4
        %v1227 = vsel %vm684, %v1187, %v1226
        %v1229 = vunpack.c.l.s4 1934713408
        %v1230 = vunpack.c.0.s8 %v1229
        %v1231 = vperm.slane %v1225, %v1230
        %v1233 = vunpack.c.l.s4 1934713408
        %v1234 = vunpack.c.0.s8 %v1233
        %v1235 = vperm.slane %v1227, %v1234
        %v1236 = vrot.slane %v1207, 4
        %v1237 = vsel %vm684, %v1236, %v1195
        %v1238 = vrot.slane %v1195, 4
        %v1239 = vsel %vm684, %v1207, %v1238
        %v1241 = vunpack.c.l.s4 1934713408
        %v1242 = vunpack.c.0.s8 %v1241
        %v1243 = vperm.slane %v1237, %v1242
        %v1245 = vunpack.c.l.s4 1934713408
        %v1246 = vunpack.c.0.s8 %v1245
        %v1247 = vperm.slane %v1239, %v1246
        %v1248 = vrot.slane %v1211, 4
        %v1249 = vsel %vm684, %v1248, %v1199
        %v1250 = vrot.slane %v1199, 4
        %v1251 = vsel %vm684, %v1211, %v1250
        %v1253 = vunpack.c.l.s4 1934713408
        %v1254 = vunpack.c.0.s8 %v1253
        %v1255 = vperm.slane %v1249, %v1254
        %v1257 = vunpack.c.l.s4 1934713408
        %v1258 = vunpack.c.0.s8 %v1257
        %v1259 = vperm.slane %v1251, %v1258
        %v1260 = vrot.slane %v1243, 4
        %v1261 = vsel %vm684, %v1260, %v1219
        %v1262 = vrot.slane %v1219, 4
        %v1263 = vsel %vm684, %v1243, %v1262
        %v1264 = vrot.slane %v1247, 4
        %v1265 = vsel %vm684, %v1264, %v1223
        %v1266 = vrot.slane %v1223, 4
        %v1267 = vsel %vm684, %v1247, %v1266
        %v1268 = vrot.slane %v1255, 4
        %v1269 = vsel %vm684, %v1268, %v1231
        %v1270 = vrot.slane %v1231, 4
        %v1271 = vsel %vm684, %v1255, %v1270
        %v1272 = vrot.slane %v1259, 4
        %v1273 = vsel %vm684, %v1272, %v1235
        %v1274 = vrot.slane %v1235, 4
        %v1275 = vsel %vm684, %v1259, %v1274
        %v1276 = vrot.slane %v501, 4
        %v1277 = vsel %vm684, %v1276, %v491
        %v1278 = vrot.slane %v491, 4
        %v1279 = vsel %vm684, %v501, %v1278
        %v1281 = vunpack.c.l.s4 1983009808
        %v1282 = vunpack.c.0.s8 %v1281
        %v1283 = vperm.slane %v1277, %v1282
        %v1285 = vunpack.c.l.s4 1983009808
        %v1286 = vunpack.c.0.s8 %v1285
        %v1287 = vperm.slane %v1279, %v1286
        %v1288 = vrot.slane %v506, 4
        %v1289 = vsel %vm684, %v1288, %v496
        %v1290 = vrot.slane %v496, 4
        %v1291 = vsel %vm684, %v506, %v1290
        %v1293 = vunpack.c.l.s4 1983009808
        %v1294 = vunpack.c.0.s8 %v1293
        %v1295 = vperm.slane %v1289, %v1294
        %v1297 = vunpack.c.l.s4 1983009808
        %v1298 = vunpack.c.0.s8 %v1297
        %v1299 = vperm.slane %v1291, %v1298
        %v1300 = vrot.slane %v521, 4
        %v1301 = vsel %vm684, %v1300, %v511
        %v1302 = vrot.slane %v511, 4
        %v1303 = vsel %vm684, %v521, %v1302
        %v1305 = vunpack.c.l.s4 1983009808
        %v1306 = vunpack.c.0.s8 %v1305
        %v1307 = vperm.slane %v1301, %v1306
        %v1309 = vunpack.c.l.s4 1983009808
        %v1310 = vunpack.c.0.s8 %v1309
        %v1311 = vperm.slane %v1303, %v1310
        %v1312 = vrot.slane %v526, 4
        %v1313 = vsel %vm684, %v1312, %v516
        %v1314 = vrot.slane %v516, 4
        %v1315 = vsel %vm684, %v526, %v1314
        %v1317 = vunpack.c.l.s4 1983009808
        %v1318 = vunpack.c.0.s8 %v1317
        %v1319 = vperm.slane %v1313, %v1318
        %v1321 = vunpack.c.l.s4 1983009808
        %v1322 = vunpack.c.0.s8 %v1321
        %v1323 = vperm.slane %v1315, %v1322
        %v1324 = vrot.slane %v1295, 4
        %v1325 = vsel %vm684, %v1324, %v1283
        %v1326 = vrot.slane %v1283, 4
        %v1327 = vsel %vm684, %v1295, %v1326
        %v1329 = vunpack.c.l.s4 1934713408
        %v1330 = vunpack.c.0.s8 %v1329
        %v1331 = vperm.slane %v1325, %v1330
        %v1333 = vunpack.c.l.s4 1934713408
        %v1334 = vunpack.c.0.s8 %v1333
        %v1335 = vperm.slane %v1327, %v1334
        %v1336 = vrot.slane %v1299, 4
        %v1337 = vsel %vm684, %v1336, %v1287
        %v1338 = vrot.slane %v1287, 4
        %v1339 = vsel %vm684, %v1299, %v1338
        %v1341 = vunpack.c.l.s4 1934713408
        %v1342 = vunpack.c.0.s8 %v1341
        %v1343 = vperm.slane %v1337, %v1342
        %v1345 = vunpack.c.l.s4 1934713408
        %v1346 = vunpack.c.0.s8 %v1345
        %v1347 = vperm.slane %v1339, %v1346
        %v1348 = vrot.slane %v1319, 4
        %v1349 = vsel %vm684, %v1348, %v1307
        %v1350 = vrot.slane %v1307, 4
        %v1351 = vsel %vm684, %v1319, %v1350
        %v1353 = vunpack.c.l.s4 1934713408
        %v1354 = vunpack.c.0.s8 %v1353
        %v1355 = vperm.slane %v1349, %v1354
        %v1357 = vunpack.c.l.s4 1934713408
        %v1358 = vunpack.c.0.s8 %v1357
        %v1359 = vperm.slane %v1351, %v1358
        %v1360 = vrot.slane %v1323, 4
        %v1361 = vsel %vm684, %v1360, %v1311
        %v1362 = vrot.slane %v1311, 4
        %v1363 = vsel %vm684, %v1323, %v1362
        %v1365 = vunpack.c.l.s4 1934713408
        %v1366 = vunpack.c.0.s8 %v1365
        %v1367 = vperm.slane %v1361, %v1366
        %v1369 = vunpack.c.l.s4 1934713408
        %v1370 = vunpack.c.0.s8 %v1369
        %v1371 = vperm.slane %v1363, %v1370
        %v1372 = vrot.slane %v1355, 4
        %v1373 = vsel %vm684, %v1372, %v1331
        %v1374 = vrot.slane %v1331, 4
        %v1375 = vsel %vm684, %v1355, %v1374
        %v1376 = vrot.slane %v1359, 4
        %v1377 = vsel %vm684, %v1376, %v1335
        %v1378 = vrot.slane %v1335, 4
        %v1379 = vsel %vm684, %v1359, %v1378
        %v1380 = vrot.slane %v1367, 4
        %v1381 = vsel %vm684, %v1380, %v1343
        %v1382 = vrot.slane %v1343, 4
        %v1383 = vsel %vm684, %v1367, %v1382
        %v1384 = vrot.slane %v1371, 4
        %v1385 = vsel %vm684, %v1384, %v1347
        %v1386 = vrot.slane %v1347, 4
        %v1387 = vsel %vm684, %v1371, %v1386
        %v1388 = vrot.slane %v463, 4
        %v1389 = vsel %vm684, %v1388, %v453
        %v1390 = vrot.slane %v453, 4
        %v1391 = vsel %vm684, %v463, %v1390
        %v1393 = vunpack.c.l.s4 1983009808
        %v1394 = vunpack.c.0.s8 %v1393
        %v1395 = vperm.slane %v1389, %v1394
        %v1397 = vunpack.c.l.s4 1983009808
        %v1398 = vunpack.c.0.s8 %v1397
        %v1399 = vperm.slane %v1391, %v1398
        %v1400 = vrot.slane %v468, 4
        %v1401 = vsel %vm684, %v1400, %v458
        %v1402 = vrot.slane %v458, 4
        %v1403 = vsel %vm684, %v468, %v1402
        %v1405 = vunpack.c.l.s4 1983009808
        %v1406 = vunpack.c.0.s8 %v1405
        %v1407 = vperm.slane %v1401, %v1406
        %v1409 = vunpack.c.l.s4 1983009808
        %v1410 = vunpack.c.0.s8 %v1409
        %v1411 = vperm.slane %v1403, %v1410
        %v1412 = vrot.slane %v483, 4
        %v1413 = vsel %vm684, %v1412, %v473
        %v1414 = vrot.slane %v473, 4
        %v1415 = vsel %vm684, %v483, %v1414
        %v1417 = vunpack.c.l.s4 1983009808
        %v1418 = vunpack.c.0.s8 %v1417
        %v1419 = vperm.slane %v1413, %v1418
        %v1421 = vunpack.c.l.s4 1983009808
        %v1422 = vunpack.c.0.s8 %v1421
        %v1423 = vperm.slane %v1415, %v1422
        %v1424 = vrot.slane %v488, 4
        %v1425 = vsel %vm684, %v1424, %v478
        %v1426 = vrot.slane %v478, 4
        %v1427 = vsel %vm684, %v488, %v1426
        %v1429 = vunpack.c.l.s4 1983009808
        %v1430 = vunpack.c.0.s8 %v1429
        %v1431 = vperm.slane %v1425, %v1430
        %v1433 = vunpack.c.l.s4 1983009808
        %v1434 = vunpack.c.0.s8 %v1433
        %v1435 = vperm.slane %v1427, %v1434
        %v1436 = vrot.slane %v1407, 4
        %v1437 = vsel %vm684, %v1436, %v1395
        %v1438 = vrot.slane %v1395, 4
        %v1439 = vsel %vm684, %v1407, %v1438
        %v1441 = vunpack.c.l.s4 1934713408
        %v1442 = vunpack.c.0.s8 %v1441
        %v1443 = vperm.slane %v1437, %v1442
        %v1445 = vunpack.c.l.s4 1934713408
        %v1446 = vunpack.c.0.s8 %v1445
        %v1447 = vperm.slane %v1439, %v1446
        %v1448 = vrot.slane %v1411, 4
        %v1449 = vsel %vm684, %v1448, %v1399
        %v1450 = vrot.slane %v1399, 4
        %v1451 = vsel %vm684, %v1411, %v1450
        %v1453 = vunpack.c.l.s4 1934713408
        %v1454 = vunpack.c.0.s8 %v1453
        %v1455 = vperm.slane %v1449, %v1454
        %v1457 = vunpack.c.l.s4 1934713408
        %v1458 = vunpack.c.0.s8 %v1457
        %v1459 = vperm.slane %v1451, %v1458
        %v1460 = vrot.slane %v1431, 4
        %v1461 = vsel %vm684, %v1460, %v1419
        %v1462 = vrot.slane %v1419, 4
        %v1463 = vsel %vm684, %v1431, %v1462
        %v1465 = vunpack.c.l.s4 1934713408
        %v1466 = vunpack.c.0.s8 %v1465
        %v1467 = vperm.slane %v1461, %v1466
        %v1469 = vunpack.c.l.s4 1934713408
        %v1470 = vunpack.c.0.s8 %v1469
        %v1471 = vperm.slane %v1463, %v1470
        %v1472 = vrot.slane %v1435, 4
        %v1473 = vsel %vm684, %v1472, %v1423
        %v1474 = vrot.slane %v1423, 4
        %v1475 = vsel %vm684, %v1435, %v1474
        %v1477 = vunpack.c.l.s4 1934713408
        %v1478 = vunpack.c.0.s8 %v1477
        %v1479 = vperm.slane %v1473, %v1478
        %v1481 = vunpack.c.l.s4 1934713408
        %v1482 = vunpack.c.0.s8 %v1481
        %v1483 = vperm.slane %v1475, %v1482
        %v1484 = vrot.slane %v1467, 4
        %v1485 = vsel %vm684, %v1484, %v1443
        %v1486 = vrot.slane %v1443, 4
        %v1487 = vsel %vm684, %v1467, %v1486
        %v1488 = vrot.slane %v1471, 4
        %v1489 = vsel %vm684, %v1488, %v1447
        %v1490 = vrot.slane %v1447, 4
        %v1491 = vsel %vm684, %v1471, %v1490
        %v1492 = vrot.slane %v1479, 4
        %v1493 = vsel %vm684, %v1492, %v1455
        %v1494 = vrot.slane %v1455, 4
        %v1495 = vsel %vm684, %v1479, %v1494
        %v1496 = vrot.slane %v1483, 4
        %v1497 = vsel %vm684, %v1496, %v1459
        %v1498 = vrot.slane %v1459, 4
        %v1499 = vsel %vm684, %v1483, %v1498
        %v1500 = vrot.slane %v503, 4
        %v1501 = vsel %vm684, %v1500, %v493
        %v1502 = vrot.slane %v493, 4
        %v1503 = vsel %vm684, %v503, %v1502
        %v1505 = vunpack.c.l.s4 1983009808
        %v1506 = vunpack.c.0.s8 %v1505
        %v1507 = vperm.slane %v1501, %v1506
        %v1509 = vunpack.c.l.s4 1983009808
        %v1510 = vunpack.c.0.s8 %v1509
        %v1511 = vperm.slane %v1503, %v1510
        %v1512 = vrot.slane %v508, 4
        %v1513 = vsel %vm684, %v1512, %v498
        %v1514 = vrot.slane %v498, 4
        %v1515 = vsel %vm684, %v508, %v1514
        %v1517 = vunpack.c.l.s4 1983009808
        %v1518 = vunpack.c.0.s8 %v1517
        %v1519 = vperm.slane %v1513, %v1518
        %v1521 = vunpack.c.l.s4 1983009808
        %v1522 = vunpack.c.0.s8 %v1521
        %v1523 = vperm.slane %v1515, %v1522
        %v1524 = vrot.slane %v523, 4
        %v1525 = vsel %vm684, %v1524, %v513
        %v1526 = vrot.slane %v513, 4
        %v1527 = vsel %vm684, %v523, %v1526
        %v1529 = vunpack.c.l.s4 1983009808
        %v1530 = vunpack.c.0.s8 %v1529
        %v1531 = vperm.slane %v1525, %v1530
        %v1533 = vunpack.c.l.s4 1983009808
        %v1534 = vunpack.c.0.s8 %v1533
        %v1535 = vperm.slane %v1527, %v1534
        %v1536 = vrot.slane %v528, 4
        %v1537 = vsel %vm684, %v1536, %v518
        %v1538 = vrot.slane %v518, 4
        %v1539 = vsel %vm684, %v528, %v1538
        %v1541 = vunpack.c.l.s4 1983009808
        %v1542 = vunpack.c.0.s8 %v1541
        %v1543 = vperm.slane %v1537, %v1542
        %v1545 = vunpack.c.l.s4 1983009808
        %v1546 = vunpack.c.0.s8 %v1545
        %v1547 = vperm.slane %v1539, %v1546
        %v1548 = vrot.slane %v1519, 4
        %v1549 = vsel %vm684, %v1548, %v1507
        %v1550 = vrot.slane %v1507, 4
        %v1551 = vsel %vm684, %v1519, %v1550
        %v1553 = vunpack.c.l.s4 1934713408
        %v1554 = vunpack.c.0.s8 %v1553
        %v1555 = vperm.slane %v1549, %v1554
        %v1557 = vunpack.c.l.s4 1934713408
        %v1558 = vunpack.c.0.s8 %v1557
        %v1559 = vperm.slane %v1551, %v1558
        %v1560 = vrot.slane %v1523, 4
        %v1561 = vsel %vm684, %v1560, %v1511
        %v1562 = vrot.slane %v1511, 4
        %v1563 = vsel %vm684, %v1523, %v1562
        %v1565 = vunpack.c.l.s4 1934713408
        %v1566 = vunpack.c.0.s8 %v1565
        %v1567 = vperm.slane %v1561, %v1566
        %v1569 = vunpack.c.l.s4 1934713408
        %v1570 = vunpack.c.0.s8 %v1569
        %v1571 = vperm.slane %v1563, %v1570
        %v1572 = vrot.slane %v1543, 4
        %v1573 = vsel %vm684, %v1572, %v1531
        %v1574 = vrot.slane %v1531, 4
        %v1575 = vsel %vm684, %v1543, %v1574
        %v1577 = vunpack.c.l.s4 1934713408
        %v1578 = vunpack.c.0.s8 %v1577
        %v1579 = vperm.slane %v1573, %v1578
        %v1581 = vunpack.c.l.s4 1934713408
        %v1582 = vunpack.c.0.s8 %v1581
        %v1583 = vperm.slane %v1575, %v1582
        %v1584 = vrot.slane %v1547, 4
        %v1585 = vsel %vm684, %v1584, %v1535
        %v1586 = vrot.slane %v1535, 4
        %v1587 = vsel %vm684, %v1547, %v1586
        %v1589 = vunpack.c.l.s4 1934713408
        %v1590 = vunpack.c.0.s8 %v1589
        %v1591 = vperm.slane %v1585, %v1590
        %v1593 = vunpack.c.l.s4 1934713408
        %v1594 = vunpack.c.0.s8 %v1593
        %v1595 = vperm.slane %v1587, %v1594
        %v1596 = vrot.slane %v1579, 4
        %v1597 = vsel %vm684, %v1596, %v1555
        %v1598 = vrot.slane %v1555, 4
        %v1599 = vsel %vm684, %v1579, %v1598
        %v1600 = vrot.slane %v1583, 4
        %v1601 = vsel %vm684, %v1600, %v1559
        %v1602 = vrot.slane %v1559, 4
        %v1603 = vsel %vm684, %v1583, %v1602
        %v1604 = vrot.slane %v1591, 4
        %v1605 = vsel %vm684, %v1604, %v1567
        %v1606 = vrot.slane %v1567, 4
        %v1607 = vsel %vm684, %v1591, %v1606
        %v1608 = vrot.slane %v1595, 4
        %v1609 = vsel %vm684, %v1608, %v1571
        %v1610 = vrot.slane %v1571, 4
        %v1611 = vsel %vm684, %v1595, %v1610
        %v1612 = vpack.c.bf16 %v1261, %v1261
        %v1613 = vpack.c.bf16 %v1373, %v1373
        %v1614 = vpack.c.bf16 %v1263, %v1263
        %v1615 = vpack.c.bf16 %v1375, %v1375
        %v1616 = vpack.c.bf16 %v1265, %v1265
        %v1617 = vpack.c.bf16 %v1377, %v1377
        %v1618 = vpack.c.bf16 %v1267, %v1267
        %v1619 = vpack.c.bf16 %v1379, %v1379
        %v1620 = vpack.c.bf16 %v1269, %v1269
        %v1621 = vpack.c.bf16 %v1381, %v1381
        %v1622 = vpack.c.bf16 %v1271, %v1271
        %v1623 = vpack.c.bf16 %v1383, %v1383
        %v1624 = vpack.c.bf16 %v1273, %v1273
        %v1625 = vpack.c.bf16 %v1385, %v1385
        %v1626 = vpack.c.bf16 %v1275, %v1275
        %v1627 = vpack.c.bf16 %v1387, %v1387
        %v1628 = vpack.c.bf16 %v1485, %v1485
        %v1629 = vpack.c.bf16 %v1597, %v1597
        %v1630 = vpack.c.bf16 %v1487, %v1487
        %v1631 = vpack.c.bf16 %v1599, %v1599
        %v1632 = vpack.c.bf16 %v1489, %v1489
        %v1633 = vpack.c.bf16 %v1601, %v1601
        %v1634 = vpack.c.bf16 %v1491, %v1491
        %v1635 = vpack.c.bf16 %v1603, %v1603
        %v1636 = vpack.c.bf16 %v1493, %v1493
        %v1637 = vpack.c.bf16 %v1605, %v1605
        %v1638 = vpack.c.bf16 %v1495, %v1495
        %v1639 = vpack.c.bf16 %v1607, %v1607
        %v1640 = vpack.c.bf16 %v1497, %v1497
        %v1641 = vpack.c.bf16 %v1609, %v1609
        %v1642 = vpack.c.bf16 %v1499, %v1499
        %v1643 = vpack.c.bf16 %v1611, %v1611
        %v1646 = vunpack.c.l.b16 %v619
        %v1647 = vunpack.c.l.b16 %v620
        %v1648 = vpack.c.b16 %v1647, %v1646
        %v1652 = vunpack.c.l.b16 %v651
        %v1653 = vunpack.c.l.b16 %v652
        %v1654 = vpack.c.b16 %v1653, %v1652
        %1656 = vmatpush.bf16.xpose.msra.mxu0 0
        %1657 = vmatpush.bf16.xpose.msra.mxu0 0
        %1658 = vmatpush.bf16.xpose.msra.mxu0 0
        %1659 = vmatpush.bf16.xpose.msra.mxu0 0
        %1660 = vmatpush.bf16.xpose.msra.mxu0 0
        %1661 = vmatpush.bf16.xpose.msra.mxu0 0
        %1662 = vmatpush.bf16.xpose.msra.mxu0 0
        %1663 = vmatpush.bf16.xpose.msra.mxu0 %v1654
        %1664 = vmatmul.bf16.gmra.mxu0 %v1648
        %v1665 = vpop.f32.mrf.mxu0
        %v1666 = vadd.f32 0.0, %v1665
        %v1667 = vpop.f32.mrf.mxu0
        %v1668 = vadd.f32 0.0, %v1667
        %1669 = vdwg.mxu0
        %v1672 = vunpack.c.l.b16 %v621
        %v1673 = vunpack.c.l.b16 %v622
        %v1674 = vpack.c.b16 %v1673, %v1672
        %v1678 = vunpack.c.l.b16 %v653
        %v1679 = vunpack.c.l.b16 %v654
        %v1680 = vpack.c.b16 %v1679, %v1678
        %1682 = vmatpush.bf16.xpose.msra.mxu0 0
        %1683 = vmatpush.bf16.xpose.msra.mxu0 0
        %1684 = vmatpush.bf16.xpose.msra.mxu0 0
        %1685 = vmatpush.bf16.xpose.msra.mxu0 0
        %1686 = vmatpush.bf16.xpose.msra.mxu0 0
        %1687 = vmatpush.bf16.xpose.msra.mxu0 0
        %1688 = vmatpush.bf16.xpose.msra.mxu0 0
        %1689 = vmatpush.bf16.xpose.msra.mxu0 %v1680
        %1690 = vmatmul.bf16.gmra.mxu0 %v1674
        %v1691 = vpop.f32.mrf.mxu0
        %v1692 = vadd.f32 0.0, %v1691
        %v1693 = vpop.f32.mrf.mxu0
        %v1694 = vadd.f32 0.0, %v1693
        %1695 = vdwg.mxu0
        %v1698 = vunpack.c.l.b16 %v623
        %v1699 = vunpack.c.l.b16 %v624
        %v1700 = vpack.c.b16 %v1699, %v1698
        %v1704 = vunpack.c.l.b16 %v655
        %v1705 = vunpack.c.l.b16 %v656
        %v1706 = vpack.c.b16 %v1705, %v1704
        %1708 = vmatpush.bf16.xpose.msra.mxu0 0
        %1709 = vmatpush.bf16.xpose.msra.mxu0 0
        %1710 = vmatpush.bf16.xpose.msra.mxu0 0
        %1711 = vmatpush.bf16.xpose.msra.mxu0 0
        %1712 = vmatpush.bf16.xpose.msra.mxu0 0
        %1713 = vmatpush.bf16.xpose.msra.mxu0 0
        %1714 = vmatpush.bf16.xpose.msra.mxu0 0
        %1715 = vmatpush.bf16.xpose.msra.mxu0 %v1706
        %1716 = vmatmul.bf16.gmra.mxu0 %v1700
        %v1717 = vpop.f32.mrf.mxu0
        %v1718 = vadd.f32 0.0, %v1717
        %v1719 = vpop.f32.mrf.mxu0
        %v1720 = vadd.f32 0.0, %v1719
        %1721 = vdwg.mxu0
        %v1724 = vunpack.c.l.b16 %v625
        %v1725 = vunpack.c.l.b16 %v626
        %v1726 = vpack.c.b16 %v1725, %v1724
        %v1730 = vunpack.c.l.b16 %v657
        %v1731 = vunpack.c.l.b16 %v658
        %v1732 = vpack.c.b16 %v1731, %v1730
        %1734 = vmatpush.bf16.xpose.msra.mxu0 0
        %1735 = vmatpush.bf16.xpose.msra.mxu0 0
        %1736 = vmatpush.bf16.xpose.msra.mxu0 0
        %1737 = vmatpush.bf16.xpose.msra.mxu0 0
        %1738 = vmatpush.bf16.xpose.msra.mxu0 0
        %1739 = vmatpush.bf16.xpose.msra.mxu0 0
        %1740 = vmatpush.bf16.xpose.msra.mxu0 0
        %1741 = vmatpush.bf16.xpose.msra.mxu0 %v1732
        %1742 = vmatmul.bf16.gmra.mxu0 %v1726
        %v1743 = vpop.f32.mrf.mxu0
        %v1744 = vadd.f32 0.0, %v1743
        %v1745 = vpop.f32.mrf.mxu0
        %v1746 = vadd.f32 0.0, %v1745
        %1747 = vdwg.mxu0
        %v1750 = vunpack.c.l.b16 %v627
        %v1751 = vunpack.c.l.b16 %v628
        %v1752 = vpack.c.b16 %v1751, %v1750
        %v1756 = vunpack.c.l.b16 %v659
        %v1757 = vunpack.c.l.b16 %v660
        %v1758 = vpack.c.b16 %v1757, %v1756
        %1760 = vmatpush.bf16.xpose.msra.mxu0 0
        %1761 = vmatpush.bf16.xpose.msra.mxu0 0
        %1762 = vmatpush.bf16.xpose.msra.mxu0 0
        %1763 = vmatpush.bf16.xpose.msra.mxu0 0
        %1764 = vmatpush.bf16.xpose.msra.mxu0 0
        %1765 = vmatpush.bf16.xpose.msra.mxu0 0
        %1766 = vmatpush.bf16.xpose.msra.mxu0 0
        %1767 = vmatpush.bf16.xpose.msra.mxu0 %v1758
        %1768 = vmatmul.bf16.gmra.mxu0 %v1752
        %v1769 = vpop.f32.mrf.mxu0
        %v1770 = vadd.f32 0.0, %v1769
        %v1771 = vpop.f32.mrf.mxu0
        %v1772 = vadd.f32 0.0, %v1771
        %1773 = vdwg.mxu0
        %v1776 = vunpack.c.l.b16 %v629
        %v1777 = vunpack.c.l.b16 %v630
        %v1778 = vpack.c.b16 %v1777, %v1776
        %v1782 = vunpack.c.l.b16 %v661
        %v1783 = vunpack.c.l.b16 %v662
        %v1784 = vpack.c.b16 %v1783, %v1782
        %1786 = vmatpush.bf16.xpose.msra.mxu0 0
        %1787 = vmatpush.bf16.xpose.msra.mxu0 0
        %1788 = vmatpush.bf16.xpose.msra.mxu0 0
        %1789 = vmatpush.bf16.xpose.msra.mxu0 0
        %1790 = vmatpush.bf16.xpose.msra.mxu0 0
        %1791 = vmatpush.bf16.xpose.msra.mxu0 0
        %1792 = vmatpush.bf16.xpose.msra.mxu0 0
        %1793 = vmatpush.bf16.xpose.msra.mxu0 %v1784
        %1794 = vmatmul.bf16.gmra.mxu0 %v1778
        %v1795 = vpop.f32.mrf.mxu0
        %v1796 = vadd.f32 0.0, %v1795
        %v1797 = vpop.f32.mrf.mxu0
        %v1798 = vadd.f32 0.0, %v1797
        %1799 = vdwg.mxu0
        %v1802 = vunpack.c.l.b16 %v631
        %v1803 = vunpack.c.l.b16 %v632
        %v1804 = vpack.c.b16 %v1803, %v1802
        %v1808 = vunpack.c.l.b16 %v663
        %v1809 = vunpack.c.l.b16 %v664
        %v1810 = vpack.c.b16 %v1809, %v1808
        %1812 = vmatpush.bf16.xpose.msra.mxu0 0
        %1813 = vmatpush.bf16.xpose.msra.mxu0 0
        %1814 = vmatpush.bf16.xpose.msra.mxu0 0
        %1815 = vmatpush.bf16.xpose.msra.mxu0 0
        %1816 = vmatpush.bf16.xpose.msra.mxu0 0
        %1817 = vmatpush.bf16.xpose.msra.mxu0 0
        %1818 = vmatpush.bf16.xpose.msra.mxu0 0
        %1819 = vmatpush.bf16.xpose.msra.mxu0 %v1810
        %1820 = vmatmul.bf16.gmra.mxu0 %v1804
        %v1821 = vpop.f32.mrf.mxu0
        %v1822 = vadd.f32 0.0, %v1821
        %v1823 = vpop.f32.mrf.mxu0
        %v1824 = vadd.f32 0.0, %v1823
        %1825 = vdwg.mxu0
        %v1828 = vunpack.c.l.b16 %v633
        %v1829 = vunpack.c.l.b16 %v634
        %v1830 = vpack.c.b16 %v1829, %v1828
        %v1834 = vunpack.c.l.b16 %v665
        %v1835 = vunpack.c.l.b16 %v666
        %v1836 = vpack.c.b16 %v1835, %v1834
        %1838 = vmatpush.bf16.xpose.msra.mxu0 0
        %1839 = vmatpush.bf16.xpose.msra.mxu0 0
        %1840 = vmatpush.bf16.xpose.msra.mxu0 0
        %1841 = vmatpush.bf16.xpose.msra.mxu0 0
        %1842 = vmatpush.bf16.xpose.msra.mxu0 0
        %1843 = vmatpush.bf16.xpose.msra.mxu0 0
        %1844 = vmatpush.bf16.xpose.msra.mxu0 0
        %1845 = vmatpush.bf16.xpose.msra.mxu0 %v1836
        %1846 = vmatmul.bf16.gmra.mxu0 %v1830
        %v1847 = vpop.f32.mrf.mxu0
        %v1848 = vadd.f32 0.0, %v1847
        %v1849 = vpop.f32.mrf.mxu0
        %v1850 = vadd.f32 0.0, %v1849
        %1851 = vdwg.mxu0
        %v1854 = vunpack.c.l.b16 %v635
        %v1855 = vunpack.c.l.b16 %v636
        %v1856 = vpack.c.b16 %v1855, %v1854
        %v1860 = vunpack.c.l.b16 %v667
        %v1861 = vunpack.c.l.b16 %v668
        %v1862 = vpack.c.b16 %v1861, %v1860
        %1864 = vmatpush.bf16.xpose.msra.mxu0 0
        %1865 = vmatpush.bf16.xpose.msra.mxu0 0
        %1866 = vmatpush.bf16.xpose.msra.mxu0 0
        %1867 = vmatpush.bf16.xpose.msra.mxu0 0
        %1868 = vmatpush.bf16.xpose.msra.mxu0 0
        %1869 = vmatpush.bf16.xpose.msra.mxu0 0
        %1870 = vmatpush.bf16.xpose.msra.mxu0 0
        %1871 = vmatpush.bf16.xpose.msra.mxu0 %v1862
        %1872 = vmatmul.bf16.gmra.mxu0 %v1856
        %v1873 = vpop.f32.mrf.mxu0
        %v1874 = vadd.f32 0.0, %v1873
        %v1875 = vpop.f32.mrf.mxu0
        %v1876 = vadd.f32 0.0, %v1875
        %1877 = vdwg.mxu0
        %v1880 = vunpack.c.l.b16 %v637
        %v1881 = vunpack.c.l.b16 %v638
        %v1882 = vpack.c.b16 %v1881, %v1880
        %v1886 = vunpack.c.l.b16 %v669
        %v1887 = vunpack.c.l.b16 %v670
        %v1888 = vpack.c.b16 %v1887, %v1886
        %1890 = vmatpush.bf16.xpose.msra.mxu0 0
        %1891 = vmatpush.bf16.xpose.msra.mxu0 0
        %1892 = vmatpush.bf16.xpose.msra.mxu0 0
        %1893 = vmatpush.bf16.xpose.msra.mxu0 0
        %1894 = vmatpush.bf16.xpose.msra.mxu0 0
        %1895 = vmatpush.bf16.xpose.msra.mxu0 0
        %1896 = vmatpush.bf16.xpose.msra.mxu0 0
        %1897 = vmatpush.bf16.xpose.msra.mxu0 %v1888
        %1898 = vmatmul.bf16.gmra.mxu0 %v1882
        %v1899 = vpop.f32.mrf.mxu0
        %v1900 = vadd.f32 0.0, %v1899
        %v1901 = vpop.f32.mrf.mxu0
        %v1902 = vadd.f32 0.0, %v1901
        %1903 = vdwg.mxu0
        %v1906 = vunpack.c.l.b16 %v639
        %v1907 = vunpack.c.l.b16 %v640
        %v1908 = vpack.c.b16 %v1907, %v1906
        %v1912 = vunpack.c.l.b16 %v671
        %v1913 = vunpack.c.l.b16 %v672
        %v1914 = vpack.c.b16 %v1913, %v1912
        %1916 = vmatpush.bf16.xpose.msra.mxu0 0
        %1917 = vmatpush.bf16.xpose.msra.mxu0 0
        %1918 = vmatpush.bf16.xpose.msra.mxu0 0
        %1919 = vmatpush.bf16.xpose.msra.mxu0 0
        %1920 = vmatpush.bf16.xpose.msra.mxu0 0
        %1921 = vmatpush.bf16.xpose.msra.mxu0 0
        %1922 = vmatpush.bf16.xpose.msra.mxu0 0
        %1923 = vmatpush.bf16.xpose.msra.mxu0 %v1914
        %1924 = vmatmul.bf16.gmra.mxu0 %v1908
        %v1925 = vpop.f32.mrf.mxu0
        %v1926 = vadd.f32 0.0, %v1925
        %v1927 = vpop.f32.mrf.mxu0
        %v1928 = vadd.f32 0.0, %v1927
        %1929 = vdwg.mxu0
        %v1932 = vunpack.c.l.b16 %v641
        %v1933 = vunpack.c.l.b16 %v642
        %v1934 = vpack.c.b16 %v1933, %v1932
        %v1938 = vunpack.c.l.b16 %v673
        %v1939 = vunpack.c.l.b16 %v674
        %v1940 = vpack.c.b16 %v1939, %v1938
        %1942 = vmatpush.bf16.xpose.msra.mxu0 0
        %1943 = vmatpush.bf16.xpose.msra.mxu0 0
        %1944 = vmatpush.bf16.xpose.msra.mxu0 0
        %1945 = vmatpush.bf16.xpose.msra.mxu0 0
        %1946 = vmatpush.bf16.xpose.msra.mxu0 0
        %1947 = vmatpush.bf16.xpose.msra.mxu0 0
        %1948 = vmatpush.bf16.xpose.msra.mxu0 0
        %1949 = vmatpush.bf16.xpose.msra.mxu0 %v1940
        %1950 = vmatmul.bf16.gmra.mxu0 %v1934
        %v1951 = vpop.f32.mrf.mxu0
        %v1952 = vadd.f32 0.0, %v1951
        %v1953 = vpop.f32.mrf.mxu0
        %v1954 = vadd.f32 0.0, %v1953
        %1955 = vdwg.mxu0
        %v1958 = vunpack.c.l.b16 %v643
        %v1959 = vunpack.c.l.b16 %v644
        %v1960 = vpack.c.b16 %v1959, %v1958
        %v1964 = vunpack.c.l.b16 %v675
        %v1965 = vunpack.c.l.b16 %v676
        %v1966 = vpack.c.b16 %v1965, %v1964
        %1968 = vmatpush.bf16.xpose.msra.mxu0 0
        %1969 = vmatpush.bf16.xpose.msra.mxu0 0
        %1970 = vmatpush.bf16.xpose.msra.mxu0 0
        %1971 = vmatpush.bf16.xpose.msra.mxu0 0
        %1972 = vmatpush.bf16.xpose.msra.mxu0 0
        %1973 = vmatpush.bf16.xpose.msra.mxu0 0
        %1974 = vmatpush.bf16.xpose.msra.mxu0 0
        %1975 = vmatpush.bf16.xpose.msra.mxu0 %v1966
        %1976 = vmatmul.bf16.gmra.mxu0 %v1960
        %v1977 = vpop.f32.mrf.mxu0
        %v1978 = vadd.f32 0.0, %v1977
        %v1979 = vpop.f32.mrf.mxu0
        %v1980 = vadd.f32 0.0, %v1979
        %1981 = vdwg.mxu0
        %v1984 = vunpack.c.l.b16 %v645
        %v1985 = vunpack.c.l.b16 %v646
        %v1986 = vpack.c.b16 %v1985, %v1984
        %v1990 = vunpack.c.l.b16 %v677
        %v1991 = vunpack.c.l.b16 %v678
        %v1992 = vpack.c.b16 %v1991, %v1990
        %1994 = vmatpush.bf16.xpose.msra.mxu0 0
        %1995 = vmatpush.bf16.xpose.msra.mxu0 0
        %1996 = vmatpush.bf16.xpose.msra.mxu0 0
        %1997 = vmatpush.bf16.xpose.msra.mxu0 0
        %1998 = vmatpush.bf16.xpose.msra.mxu0 0
        %1999 = vmatpush.bf16.xpose.msra.mxu0 0
        %2000 = vmatpush.bf16.xpose.msra.mxu0 0
        %2001 = vmatpush.bf16.xpose.msra.mxu0 %v1992
        %2002 = vmatmul.bf16.gmra.mxu0 %v1986
        %v2003 = vpop.f32.mrf.mxu0
        %v2004 = vadd.f32 0.0, %v2003
        %v2005 = vpop.f32.mrf.mxu0
        %v2006 = vadd.f32 0.0, %v2005
        %2007 = vdwg.mxu0
        %v2010 = vunpack.c.l.b16 %v647
        %v2011 = vunpack.c.l.b16 %v648
        %v2012 = vpack.c.b16 %v2011, %v2010
        %v2016 = vunpack.c.l.b16 %v679
        %v2017 = vunpack.c.l.b16 %v680
        %v2018 = vpack.c.b16 %v2017, %v2016
        %2020 = vmatpush.bf16.xpose.msra.mxu0 0
        %2021 = vmatpush.bf16.xpose.msra.mxu0 0
        %2022 = vmatpush.bf16.xpose.msra.mxu0 0
        %2023 = vmatpush.bf16.xpose.msra.mxu0 0
        %2024 = vmatpush.bf16.xpose.msra.mxu0 0
        %2025 = vmatpush.bf16.xpose.msra.mxu0 0
        %2026 = vmatpush.bf16.xpose.msra.mxu0 0
        %2027 = vmatpush.bf16.xpose.msra.mxu0 %v2018
        %2028 = vmatmul.bf16.gmra.mxu0 %v2012
        %v2029 = vpop.f32.mrf.mxu0
        %v2030 = vadd.f32 0.0, %v2029
        %v2031 = vpop.f32.mrf.mxu0
        %v2032 = vadd.f32 0.0, %v2031
        %2033 = vdwg.mxu0
        %v2036 = vunpack.c.l.b16 %v649
        %v2037 = vunpack.c.l.b16 %v650
        %v2038 = vpack.c.b16 %v2037, %v2036
        %v2042 = vunpack.c.l.b16 %v681
        %v2043 = vunpack.c.l.b16 %v682
        %v2044 = vpack.c.b16 %v2043, %v2042
        %2046 = vmatpush.bf16.xpose.msra.mxu0 0
        %2047 = vmatpush.bf16.xpose.msra.mxu0 0
        %2048 = vmatpush.bf16.xpose.msra.mxu0 0
        %2049 = vmatpush.bf16.xpose.msra.mxu0 0
        %2050 = vmatpush.bf16.xpose.msra.mxu0 0
        %2051 = vmatpush.bf16.xpose.msra.mxu0 0
        %2052 = vmatpush.bf16.xpose.msra.mxu0 0
        %2053 = vmatpush.bf16.xpose.msra.mxu0 %v2044
        %2054 = vmatmul.bf16.gmra.mxu0 %v2038
        %v2055 = vpop.f32.mrf.mxu0
        %v2056 = vadd.f32 0.0, %v2055
        %v2057 = vpop.f32.mrf.mxu0
        %v2058 = vadd.f32 0.0, %v2057
        %2059 = vdwg.mxu0
        %v2062 = vunpack.c.l.b16 %v1132
        %v2063 = vunpack.c.l.b16 %v1133
        %v2064 = vpack.c.b16 %v2063, %v2062
        %v2068 = vunpack.c.l.b16 %v1612
        %v2069 = vunpack.c.l.b16 %v1613
        %v2070 = vpack.c.b16 %v2069, %v2068
        %2072 = vmatpush.bf16.xpose.msra.mxu0 0
        %2073 = vmatpush.bf16.xpose.msra.mxu0 0
        %2074 = vmatpush.bf16.xpose.msra.mxu0 0
        %2075 = vmatpush.bf16.xpose.msra.mxu0 0
        %2076 = vmatpush.bf16.xpose.msra.mxu0 0
        %2077 = vmatpush.bf16.xpose.msra.mxu0 0
        %2078 = vmatpush.bf16.xpose.msra.mxu0 0
        %2079 = vmatpush.bf16.xpose.msra.mxu0 %v2070
        %2080 = vmatmul.bf16.gmra.mxu0 %v2064
        %v2081 = vpop.f32.mrf.mxu0
        %v2082 = vadd.f32 0.0, %v2081
        %v2083 = vpop.f32.mrf.mxu0
        %v2084 = vadd.f32 0.0, %v2083
        %2085 = vdwg.mxu0
        %v2088 = vunpack.c.l.b16 %v1134
        %v2089 = vunpack.c.l.b16 %v1135
        %v2090 = vpack.c.b16 %v2089, %v2088
        %v2094 = vunpack.c.l.b16 %v1614
        %v2095 = vunpack.c.l.b16 %v1615
        %v2096 = vpack.c.b16 %v2095, %v2094
        %2098 = vmatpush.bf16.xpose.msra.mxu0 0
        %2099 = vmatpush.bf16.xpose.msra.mxu0 0
        %2100 = vmatpush.bf16.xpose.msra.mxu0 0
        %2101 = vmatpush.bf16.xpose.msra.mxu0 0
        %2102 = vmatpush.bf16.xpose.msra.mxu0 0
        %2103 = vmatpush.bf16.xpose.msra.mxu0 0
        %2104 = vmatpush.bf16.xpose.msra.mxu0 0
        %2105 = vmatpush.bf16.xpose.msra.mxu0 %v2096
        %2106 = vmatmul.bf16.gmra.mxu0 %v2090
        %v2107 = vpop.f32.mrf.mxu0
        %v2108 = vadd.f32 0.0, %v2107
        %v2109 = vpop.f32.mrf.mxu0
        %v2110 = vadd.f32 0.0, %v2109
        %2111 = vdwg.mxu0
        %v2114 = vunpack.c.l.b16 %v1136
        %v2115 = vunpack.c.l.b16 %v1137
        %v2116 = vpack.c.b16 %v2115, %v2114
        %v2120 = vunpack.c.l.b16 %v1616
        %v2121 = vunpack.c.l.b16 %v1617
        %v2122 = vpack.c.b16 %v2121, %v2120
        %2124 = vmatpush.bf16.xpose.msra.mxu0 0
        %2125 = vmatpush.bf16.xpose.msra.mxu0 0
        %2126 = vmatpush.bf16.xpose.msra.mxu0 0
        %2127 = vmatpush.bf16.xpose.msra.mxu0 0
        %2128 = vmatpush.bf16.xpose.msra.mxu0 0
        %2129 = vmatpush.bf16.xpose.msra.mxu0 0
        %2130 = vmatpush.bf16.xpose.msra.mxu0 0
        %2131 = vmatpush.bf16.xpose.msra.mxu0 %v2122
        %2132 = vmatmul.bf16.gmra.mxu0 %v2116
        %v2133 = vpop.f32.mrf.mxu0
        %v2134 = vadd.f32 0.0, %v2133
        %v2135 = vpop.f32.mrf.mxu0
        %v2136 = vadd.f32 0.0, %v2135
        %2137 = vdwg.mxu0
        %v2140 = vunpack.c.l.b16 %v1138
        %v2141 = vunpack.c.l.b16 %v1139
        %v2142 = vpack.c.b16 %v2141, %v2140
        %v2146 = vunpack.c.l.b16 %v1618
        %v2147 = vunpack.c.l.b16 %v1619
        %v2148 = vpack.c.b16 %v2147, %v2146
        %2150 = vmatpush.bf16.xpose.msra.mxu0 0
        %2151 = vmatpush.bf16.xpose.msra.mxu0 0
        %2152 = vmatpush.bf16.xpose.msra.mxu0 0
        %2153 = vmatpush.bf16.xpose.msra.mxu0 0
        %2154 = vmatpush.bf16.xpose.msra.mxu0 0
        %2155 = vmatpush.bf16.xpose.msra.mxu0 0
        %2156 = vmatpush.bf16.xpose.msra.mxu0 0
        %2157 = vmatpush.bf16.xpose.msra.mxu0 %v2148
        %2158 = vmatmul.bf16.gmra.mxu0 %v2142
        %v2159 = vpop.f32.mrf.mxu0
        %v2160 = vadd.f32 0.0, %v2159
        %v2161 = vpop.f32.mrf.mxu0
        %v2162 = vadd.f32 0.0, %v2161
        %2163 = vdwg.mxu0
        %v2166 = vunpack.c.l.b16 %v1140
        %v2167 = vunpack.c.l.b16 %v1141
        %v2168 = vpack.c.b16 %v2167, %v2166
        %v2172 = vunpack.c.l.b16 %v1620
        %v2173 = vunpack.c.l.b16 %v1621
        %v2174 = vpack.c.b16 %v2173, %v2172
        %2176 = vmatpush.bf16.xpose.msra.mxu0 0
        %2177 = vmatpush.bf16.xpose.msra.mxu0 0
        %2178 = vmatpush.bf16.xpose.msra.mxu0 0
        %2179 = vmatpush.bf16.xpose.msra.mxu0 0
        %2180 = vmatpush.bf16.xpose.msra.mxu0 0
        %2181 = vmatpush.bf16.xpose.msra.mxu0 0
        %2182 = vmatpush.bf16.xpose.msra.mxu0 0
        %2183 = vmatpush.bf16.xpose.msra.mxu0 %v2174
        %2184 = vmatmul.bf16.gmra.mxu0 %v2168
        %v2185 = vpop.f32.mrf.mxu0
        %v2186 = vadd.f32 0.0, %v2185
        %v2187 = vpop.f32.mrf.mxu0
        %v2188 = vadd.f32 0.0, %v2187
        %2189 = vdwg.mxu0
        %v2192 = vunpack.c.l.b16 %v1142
        %v2193 = vunpack.c.l.b16 %v1143
        %v2194 = vpack.c.b16 %v2193, %v2192
        %v2198 = vunpack.c.l.b16 %v1622
        %v2199 = vunpack.c.l.b16 %v1623
        %v2200 = vpack.c.b16 %v2199, %v2198
        %2202 = vmatpush.bf16.xpose.msra.mxu0 0
        %2203 = vmatpush.bf16.xpose.msra.mxu0 0
        %2204 = vmatpush.bf16.xpose.msra.mxu0 0
        %2205 = vmatpush.bf16.xpose.msra.mxu0 0
        %2206 = vmatpush.bf16.xpose.msra.mxu0 0
        %2207 = vmatpush.bf16.xpose.msra.mxu0 0
        %2208 = vmatpush.bf16.xpose.msra.mxu0 0
        %2209 = vmatpush.bf16.xpose.msra.mxu0 %v2200
        %2210 = vmatmul.bf16.gmra.mxu0 %v2194
        %v2211 = vpop.f32.mrf.mxu0
        %v2212 = vadd.f32 0.0, %v2211
        %v2213 = vpop.f32.mrf.mxu0
        %v2214 = vadd.f32 0.0, %v2213
        %2215 = vdwg.mxu0
        %v2218 = vunpack.c.l.b16 %v1144
        %v2219 = vunpack.c.l.b16 %v1145
        %v2220 = vpack.c.b16 %v2219, %v2218
        %v2224 = vunpack.c.l.b16 %v1624
        %v2225 = vunpack.c.l.b16 %v1625
        %v2226 = vpack.c.b16 %v2225, %v2224
        %2228 = vmatpush.bf16.xpose.msra.mxu0 0
        %2229 = vmatpush.bf16.xpose.msra.mxu0 0
        %2230 = vmatpush.bf16.xpose.msra.mxu0 0
        %2231 = vmatpush.bf16.xpose.msra.mxu0 0
        %2232 = vmatpush.bf16.xpose.msra.mxu0 0
        %2233 = vmatpush.bf16.xpose.msra.mxu0 0
        %2234 = vmatpush.bf16.xpose.msra.mxu0 0
        %2235 = vmatpush.bf16.xpose.msra.mxu0 %v2226
        %2236 = vmatmul.bf16.gmra.mxu0 %v2220
        %v2237 = vpop.f32.mrf.mxu0
        %v2238 = vadd.f32 0.0, %v2237
        %v2239 = vpop.f32.mrf.mxu0
        %v2240 = vadd.f32 0.0, %v2239
        %2241 = vdwg.mxu0
        %v2244 = vunpack.c.l.b16 %v1146
        %v2245 = vunpack.c.l.b16 %v1147
        %v2246 = vpack.c.b16 %v2245, %v2244
        %v2250 = vunpack.c.l.b16 %v1626
        %v2251 = vunpack.c.l.b16 %v1627
        %v2252 = vpack.c.b16 %v2251, %v2250
        %2254 = vmatpush.bf16.xpose.msra.mxu0 0
        %2255 = vmatpush.bf16.xpose.msra.mxu0 0
        %2256 = vmatpush.bf16.xpose.msra.mxu0 0
        %2257 = vmatpush.bf16.xpose.msra.mxu0 0
        %2258 = vmatpush.bf16.xpose.msra.mxu0 0
        %2259 = vmatpush.bf16.xpose.msra.mxu0 0
        %2260 = vmatpush.bf16.xpose.msra.mxu0 0
        %2261 = vmatpush.bf16.xpose.msra.mxu0 %v2252
        %2262 = vmatmul.bf16.gmra.mxu0 %v2246
        %v2263 = vpop.f32.mrf.mxu0
        %v2264 = vadd.f32 0.0, %v2263
        %v2265 = vpop.f32.mrf.mxu0
        %v2266 = vadd.f32 0.0, %v2265
        %2267 = vdwg.mxu0
        %v2270 = vunpack.c.l.b16 %v1148
        %v2271 = vunpack.c.l.b16 %v1149
        %v2272 = vpack.c.b16 %v2271, %v2270
        %v2276 = vunpack.c.l.b16 %v1628
        %v2277 = vunpack.c.l.b16 %v1629
        %v2278 = vpack.c.b16 %v2277, %v2276
        %2280 = vmatpush.bf16.xpose.msra.mxu0 0
        %2281 = vmatpush.bf16.xpose.msra.mxu0 0
        %2282 = vmatpush.bf16.xpose.msra.mxu0 0
        %2283 = vmatpush.bf16.xpose.msra.mxu0 0
        %2284 = vmatpush.bf16.xpose.msra.mxu0 0
        %2285 = vmatpush.bf16.xpose.msra.mxu0 0
        %2286 = vmatpush.bf16.xpose.msra.mxu0 0
        %2287 = vmatpush.bf16.xpose.msra.mxu0 %v2278
        %2288 = vmatmul.bf16.gmra.mxu0 %v2272
        %v2289 = vpop.f32.mrf.mxu0
        %v2290 = vadd.f32 0.0, %v2289
        %v2291 = vpop.f32.mrf.mxu0
        %v2292 = vadd.f32 0.0, %v2291
        %2293 = vdwg.mxu0
        %v2296 = vunpack.c.l.b16 %v1150
        %v2297 = vunpack.c.l.b16 %v1151
        %v2298 = vpack.c.b16 %v2297, %v2296
        %v2302 = vunpack.c.l.b16 %v1630
        %v2303 = vunpack.c.l.b16 %v1631
        %v2304 = vpack.c.b16 %v2303, %v2302
        %2306 = vmatpush.bf16.xpose.msra.mxu0 0
        %2307 = vmatpush.bf16.xpose.msra.mxu0 0
        %2308 = vmatpush.bf16.xpose.msra.mxu0 0
        %2309 = vmatpush.bf16.xpose.msra.mxu0 0
        %2310 = vmatpush.bf16.xpose.msra.mxu0 0
        %2311 = vmatpush.bf16.xpose.msra.mxu0 0
        %2312 = vmatpush.bf16.xpose.msra.mxu0 0
        %2313 = vmatpush.bf16.xpose.msra.mxu0 %v2304
        %2314 = vmatmul.bf16.gmra.mxu0 %v2298
        %v2315 = vpop.f32.mrf.mxu0
        %v2316 = vadd.f32 0.0, %v2315
        %v2317 = vpop.f32.mrf.mxu0
        %v2318 = vadd.f32 0.0, %v2317
        %2319 = vdwg.mxu0
        %v2322 = vunpack.c.l.b16 %v1152
        %v2323 = vunpack.c.l.b16 %v1153
        %v2324 = vpack.c.b16 %v2323, %v2322
        %v2328 = vunpack.c.l.b16 %v1632
        %v2329 = vunpack.c.l.b16 %v1633
        %v2330 = vpack.c.b16 %v2329, %v2328
        %2332 = vmatpush.bf16.xpose.msra.mxu0 0
        %2333 = vmatpush.bf16.xpose.msra.mxu0 0
        %2334 = vmatpush.bf16.xpose.msra.mxu0 0
        %2335 = vmatpush.bf16.xpose.msra.mxu0 0
        %2336 = vmatpush.bf16.xpose.msra.mxu0 0
        %2337 = vmatpush.bf16.xpose.msra.mxu0 0
        %2338 = vmatpush.bf16.xpose.msra.mxu0 0
        %2339 = vmatpush.bf16.xpose.msra.mxu0 %v2330
        %2340 = vmatmul.bf16.gmra.mxu0 %v2324
        %v2341 = vpop.f32.mrf.mxu0
        %v2342 = vadd.f32 0.0, %v2341
        %v2343 = vpop.f32.mrf.mxu0
        %v2344 = vadd.f32 0.0, %v2343
        %2345 = vdwg.mxu0
        %v2348 = vunpack.c.l.b16 %v1154
        %v2349 = vunpack.c.l.b16 %v1155
        %v2350 = vpack.c.b16 %v2349, %v2348
        %v2354 = vunpack.c.l.b16 %v1634
        %v2355 = vunpack.c.l.b16 %v1635
        %v2356 = vpack.c.b16 %v2355, %v2354
        %2358 = vmatpush.bf16.xpose.msra.mxu0 0
        %2359 = vmatpush.bf16.xpose.msra.mxu0 0
        %2360 = vmatpush.bf16.xpose.msra.mxu0 0
        %2361 = vmatpush.bf16.xpose.msra.mxu0 0
        %2362 = vmatpush.bf16.xpose.msra.mxu0 0
        %2363 = vmatpush.bf16.xpose.msra.mxu0 0
        %2364 = vmatpush.bf16.xpose.msra.mxu0 0
        %2365 = vmatpush.bf16.xpose.msra.mxu0 %v2356
        %2366 = vmatmul.bf16.gmra.mxu0 %v2350
        %v2367 = vpop.f32.mrf.mxu0
        %v2368 = vadd.f32 0.0, %v2367
        %v2369 = vpop.f32.mrf.mxu0
        %v2370 = vadd.f32 0.0, %v2369
        %2371 = vdwg.mxu0
        %v2374 = vunpack.c.l.b16 %v1156
        %v2375 = vunpack.c.l.b16 %v1157
        %v2376 = vpack.c.b16 %v2375, %v2374
        %v2380 = vunpack.c.l.b16 %v1636
        %v2381 = vunpack.c.l.b16 %v1637
        %v2382 = vpack.c.b16 %v2381, %v2380
        %2384 = vmatpush.bf16.xpose.msra.mxu0 0
        %2385 = vmatpush.bf16.xpose.msra.mxu0 0
        %2386 = vmatpush.bf16.xpose.msra.mxu0 0
        %2387 = vmatpush.bf16.xpose.msra.mxu0 0
        %2388 = vmatpush.bf16.xpose.msra.mxu0 0
        %2389 = vmatpush.bf16.xpose.msra.mxu0 0
        %2390 = vmatpush.bf16.xpose.msra.mxu0 0
        %2391 = vmatpush.bf16.xpose.msra.mxu0 %v2382
        %2392 = vmatmul.bf16.gmra.mxu0 %v2376
        %v2393 = vpop.f32.mrf.mxu0
        %v2394 = vadd.f32 0.0, %v2393
        %v2395 = vpop.f32.mrf.mxu0
        %v2396 = vadd.f32 0.0, %v2395
        %2397 = vdwg.mxu0
        %v2400 = vunpack.c.l.b16 %v1158
        %v2401 = vunpack.c.l.b16 %v1159
        %v2402 = vpack.c.b16 %v2401, %v2400
        %v2406 = vunpack.c.l.b16 %v1638
        %v2407 = vunpack.c.l.b16 %v1639
        %v2408 = vpack.c.b16 %v2407, %v2406
        %2410 = vmatpush.bf16.xpose.msra.mxu0 0
        %2411 = vmatpush.bf16.xpose.msra.mxu0 0
        %2412 = vmatpush.bf16.xpose.msra.mxu0 0
        %2413 = vmatpush.bf16.xpose.msra.mxu0 0
        %2414 = vmatpush.bf16.xpose.msra.mxu0 0
        %2415 = vmatpush.bf16.xpose.msra.mxu0 0
        %2416 = vmatpush.bf16.xpose.msra.mxu0 0
        %2417 = vmatpush.bf16.xpose.msra.mxu0 %v2408
        %2418 = vmatmul.bf16.gmra.mxu0 %v2402
        %v2419 = vpop.f32.mrf.mxu0
        %v2420 = vadd.f32 0.0, %v2419
        %v2421 = vpop.f32.mrf.mxu0
        %v2422 = vadd.f32 0.0, %v2421
        %2423 = vdwg.mxu0
        %v2426 = vunpack.c.l.b16 %v1160
        %v2427 = vunpack.c.l.b16 %v1161
        %v2428 = vpack.c.b16 %v2427, %v2426
        %v2432 = vunpack.c.l.b16 %v1640
        %v2433 = vunpack.c.l.b16 %v1641
        %v2434 = vpack.c.b16 %v2433, %v2432
        %2436 = vmatpush.bf16.xpose.msra.mxu0 0
        %2437 = vmatpush.bf16.xpose.msra.mxu0 0
        %2438 = vmatpush.bf16.xpose.msra.mxu0 0
        %2439 = vmatpush.bf16.xpose.msra.mxu0 0
        %2440 = vmatpush.bf16.xpose.msra.mxu0 0
        %2441 = vmatpush.bf16.xpose.msra.mxu0 0
        %2442 = vmatpush.bf16.xpose.msra.mxu0 0
        %2443 = vmatpush.bf16.xpose.msra.mxu0 %v2434
        %2444 = vmatmul.bf16.gmra.mxu0 %v2428
        %v2445 = vpop.f32.mrf.mxu0
        %v2446 = vadd.f32 0.0, %v2445
        %v2447 = vpop.f32.mrf.mxu0
        %v2448 = vadd.f32 0.0, %v2447
        %2449 = vdwg.mxu0
        %v2452 = vunpack.c.l.b16 %v1162
        %v2453 = vunpack.c.l.b16 %v1163
        %v2454 = vpack.c.b16 %v2453, %v2452
        %v2458 = vunpack.c.l.b16 %v1642
        %v2459 = vunpack.c.l.b16 %v1643
        %v2460 = vpack.c.b16 %v2459, %v2458
        %2462 = vmatpush.bf16.xpose.msra.mxu0 0
        %2463 = vmatpush.bf16.xpose.msra.mxu0 0
        %2464 = vmatpush.bf16.xpose.msra.mxu0 0
        %2465 = vmatpush.bf16.xpose.msra.mxu0 0
        %2466 = vmatpush.bf16.xpose.msra.mxu0 0
        %2467 = vmatpush.bf16.xpose.msra.mxu0 0
        %2468 = vmatpush.bf16.xpose.msra.mxu0 0
        %2469 = vmatpush.bf16.xpose.msra.mxu0 %v2460
        %2470 = vmatmul.bf16.gmra.mxu0 %v2454
        %v2471 = vpop.f32.mrf.mxu0
        %v2472 = vadd.f32 0.0, %v2471
        %v2473 = vpop.f32.mrf.mxu0
        %v2474 = vadd.f32 0.0, %v2473
        %2475 = vdwg.mxu0
        %v2476 = vlaneseq
        %v2477 = vshrl.u32 %v2476, 7
        %v2478 = vadd.s32 %v2477, 8
        %v2479 = vlaneseq
        %v2480 = vand.u32 %v2479, 127
        %vm2481 = vcmp.eq.s32.totalorder %v2477, %v2480
        %vm2482 = vcmp.eq.s32.totalorder %v2478, %v2480
        %v2483 = vsel %vm2481, 1, 0
        %v2484 = vsel %vm2482, 1, 0
        %vm2485 = vcmp.eq.s32.totalorder %v2483, 1
        %vm2486 = vcmp.eq.s32.totalorder %v2484, 1
        %v2487 = vsel %vm2485, -inf, %v2082
        %v2488 = vsel %vm2486, -inf, %v2084
        %v2489 = vsel %vm2485, -inf, %v2108
        %v2490 = vsel %vm2486, -inf, %v2110
        %v2491 = vsel %vm2485, -inf, %v2134
        %v2492 = vsel %vm2486, -inf, %v2136
        %v2493 = vsel %vm2485, -inf, %v2160
        %v2494 = vsel %vm2486, -inf, %v2162
        %v2495 = vsel %vm2485, -inf, %v2186
        %v2496 = vsel %vm2486, -inf, %v2188
        %v2497 = vsel %vm2485, -inf, %v2212
        %v2498 = vsel %vm2486, -inf, %v2214
        %v2499 = vsel %vm2485, -inf, %v2238
        %v2500 = vsel %vm2486, -inf, %v2240
        %v2501 = vsel %vm2485, -inf, %v2264
        %v2502 = vsel %vm2486, -inf, %v2266
        %v2503 = vsel %vm2485, -inf, %v2290
        %v2504 = vsel %vm2486, -inf, %v2292
        %v2505 = vsel %vm2485, -inf, %v2316
        %v2506 = vsel %vm2486, -inf, %v2318
        %v2507 = vsel %vm2485, -inf, %v2342
        %v2508 = vsel %vm2486, -inf, %v2344
        %v2509 = vsel %vm2485, -inf, %v2368
        %v2510 = vsel %vm2486, -inf, %v2370
        %v2511 = vsel %vm2485, -inf, %v2394
        %v2512 = vsel %vm2486, -inf, %v2396
        %v2513 = vsel %vm2485, -inf, %v2420
        %v2514 = vsel %vm2486, -inf, %v2422
        %v2515 = vsel %vm2485, -inf, %v2446
        %v2516 = vsel %vm2486, -inf, %v2448
        %v2517 = vsel %vm2485, -inf, %v2472
        %v2518 = vsel %vm2486, -inf, %v2474
        %v2519 = vsel %vm303, %v1666, -inf
        %2520 = vmax.xlane.f32.xlu0 %v2519
        %v2521 = vpop.xlane.xlu0 %2520
        %v2522 = vsel %vm303, %v1668, -inf
        %2523 = vmax.xlane.f32.xlu0 %v2522
        %v2524 = vpop.xlane.xlu0 %2523
        %v2525 = vsel %vm303, %v1692, -inf
        %2526 = vmax.xlane.f32.xlu0 %v2525
        %v2527 = vpop.xlane.xlu0 %2526
        %v2528 = vsel %vm303, %v1694, -inf
        %2529 = vmax.xlane.f32.xlu0 %v2528
        %v2530 = vpop.xlane.xlu0 %2529
        %v2531 = vsel %vm303, %v1718, -inf
        %2532 = vmax.xlane.f32.xlu0 %v2531
        %v2533 = vpop.xlane.xlu0 %2532
        %v2534 = vsel %vm303, %v1720, -inf
        %2535 = vmax.xlane.f32.xlu0 %v2534
        %v2536 = vpop.xlane.xlu0 %2535
        %v2537 = vsel %vm303, %v1744, -inf
        %2538 = vmax.xlane.f32.xlu0 %v2537
        %v2539 = vpop.xlane.xlu0 %2538
        %v2540 = vsel %vm303, %v1746, -inf
        %2541 = vmax.xlane.f32.xlu0 %v2540
        %v2542 = vpop.xlane.xlu0 %2541
        %v2543 = vsel %vm303, %v1770, -inf
        %2544 = vmax.xlane.f32.xlu0 %v2543
        %v2545 = vpop.xlane.xlu0 %2544
        %v2546 = vsel %vm303, %v1772, -inf
        %2547 = vmax.xlane.f32.xlu0 %v2546
        %v2548 = vpop.xlane.xlu0 %2547
        %v2549 = vsel %vm303, %v1796, -inf
        %2550 = vmax.xlane.f32.xlu0 %v2549
        %v2551 = vpop.xlane.xlu0 %2550
        %v2552 = vsel %vm303, %v1798, -inf
        %2553 = vmax.xlane.f32.xlu0 %v2552
        %v2554 = vpop.xlane.xlu0 %2553
        %v2555 = vsel %vm303, %v1822, -inf
        %2556 = vmax.xlane.f32.xlu0 %v2555
        %v2557 = vpop.xlane.xlu0 %2556
        %v2558 = vsel %vm303, %v1824, -inf
        %2559 = vmax.xlane.f32.xlu0 %v2558
        %v2560 = vpop.xlane.xlu0 %2559
        %v2561 = vsel %vm303, %v1848, -inf
        %2562 = vmax.xlane.f32.xlu0 %v2561
        %v2563 = vpop.xlane.xlu0 %2562
        %v2564 = vsel %vm303, %v1850, -inf
        %2565 = vmax.xlane.f32.xlu0 %v2564
        %v2566 = vpop.xlane.xlu0 %2565
        %v2567 = vsel %vm303, %v1874, -inf
        %2568 = vmax.xlane.f32.xlu0 %v2567
        %v2569 = vpop.xlane.xlu0 %2568
        %v2570 = vsel %vm303, %v1876, -inf
        %2571 = vmax.xlane.f32.xlu0 %v2570
        %v2572 = vpop.xlane.xlu0 %2571
        %v2573 = vsel %vm303, %v1900, -inf
        %2574 = vmax.xlane.f32.xlu0 %v2573
        %v2575 = vpop.xlane.xlu0 %2574
        %v2576 = vsel %vm303, %v1902, -inf
        %2577 = vmax.xlane.f32.xlu0 %v2576
        %v2578 = vpop.xlane.xlu0 %2577
        %v2579 = vsel %vm303, %v1926, -inf
        %2580 = vmax.xlane.f32.xlu0 %v2579
        %v2581 = vpop.xlane.xlu0 %2580
        %v2582 = vsel %vm303, %v1928, -inf
        %2583 = vmax.xlane.f32.xlu0 %v2582
        %v2584 = vpop.xlane.xlu0 %2583
        %v2585 = vsel %vm303, %v1952, -inf
        %2586 = vmax.xlane.f32.xlu0 %v2585
        %v2587 = vpop.xlane.xlu0 %2586
        %v2588 = vsel %vm303, %v1954, -inf
        %2589 = vmax.xlane.f32.xlu0 %v2588
        %v2590 = vpop.xlane.xlu0 %2589
        %v2591 = vsel %vm303, %v1978, -inf
        %2592 = vmax.xlane.f32.xlu0 %v2591
        %v2593 = vpop.xlane.xlu0 %2592
        %v2594 = vsel %vm303, %v1980, -inf
        %2595 = vmax.xlane.f32.xlu0 %v2594
        %v2596 = vpop.xlane.xlu0 %2595
        %v2597 = vsel %vm303, %v2004, -inf
        %2598 = vmax.xlane.f32.xlu0 %v2597
        %v2599 = vpop.xlane.xlu0 %2598
        %v2600 = vsel %vm303, %v2006, -inf
        %2601 = vmax.xlane.f32.xlu0 %v2600
        %v2602 = vpop.xlane.xlu0 %2601
        %v2603 = vsel %vm303, %v2030, -inf
        %2604 = vmax.xlane.f32.xlu0 %v2603
        %v2605 = vpop.xlane.xlu0 %2604
        %v2606 = vsel %vm303, %v2032, -inf
        %2607 = vmax.xlane.f32.xlu0 %v2606
        %v2608 = vpop.xlane.xlu0 %2607
        %v2609 = vsel %vm303, %v2056, -inf
        %2610 = vmax.xlane.f32.xlu0 %v2609
        %v2611 = vpop.xlane.xlu0 %2610
        %v2612 = vsel %vm303, %v2058, -inf
        %2613 = vmax.xlane.f32.xlu0 %v2612
        %v2614 = vpop.xlane.xlu0 %2613
        %v2615 = vsel %vm303, %v2487, -inf
        %2616 = vmax.xlane.f32.xlu0 %v2615
        %v2617 = vpop.xlane.xlu0 %2616
        %v2618 = vsel %vm303, %v2488, -inf
        %2619 = vmax.xlane.f32.xlu0 %v2618
        %v2620 = vpop.xlane.xlu0 %2619
        %v2621 = vsel %vm303, %v2489, -inf
        %2622 = vmax.xlane.f32.xlu0 %v2621
        %v2623 = vpop.xlane.xlu0 %2622
        %v2624 = vsel %vm303, %v2490, -inf
        %2625 = vmax.xlane.f32.xlu0 %v2624
        %v2626 = vpop.xlane.xlu0 %2625
        %v2627 = vsel %vm303, %v2491, -inf
        %2628 = vmax.xlane.f32.xlu0 %v2627
        %v2629 = vpop.xlane.xlu0 %2628
        %v2630 = vsel %vm303, %v2492, -inf
        %2631 = vmax.xlane.f32.xlu0 %v2630
        %v2632 = vpop.xlane.xlu0 %2631
        %v2633 = vsel %vm303, %v2493, -inf
        %2634 = vmax.xlane.f32.xlu0 %v2633
        %v2635 = vpop.xlane.xlu0 %2634
        %v2636 = vsel %vm303, %v2494, -inf
        %2637 = vmax.xlane.f32.xlu0 %v2636
        %v2638 = vpop.xlane.xlu0 %2637
        %v2639 = vsel %vm303, %v2495, -inf
        %2640 = vmax.xlane.f32.xlu0 %v2639
        %v2641 = vpop.xlane.xlu0 %2640
        %v2642 = vsel %vm303, %v2496, -inf
        %2643 = vmax.xlane.f32.xlu0 %v2642
        %v2644 = vpop.xlane.xlu0 %2643
        %v2645 = vsel %vm303, %v2497, -inf
        %2646 = vmax.xlane.f32.xlu0 %v2645
        %v2647 = vpop.xlane.xlu0 %2646
        %v2648 = vsel %vm303, %v2498, -inf
        %2649 = vmax.xlane.f32.xlu0 %v2648
        %v2650 = vpop.xlane.xlu0 %2649
        %v2651 = vsel %vm303, %v2499, -inf
        %2652 = vmax.xlane.f32.xlu0 %v2651
        %v2653 = vpop.xlane.xlu0 %2652
        %v2654 = vsel %vm303, %v2500, -inf
        %2655 = vmax.xlane.f32.xlu0 %v2654
        %v2656 = vpop.xlane.xlu0 %2655
        %v2657 = vsel %vm303, %v2501, -inf
        %2658 = vmax.xlane.f32.xlu0 %v2657
        %v2659 = vpop.xlane.xlu0 %2658
        %v2660 = vsel %vm303, %v2502, -inf
        %2661 = vmax.xlane.f32.xlu0 %v2660
        %v2662 = vpop.xlane.xlu0 %2661
        %v2663 = vsel %vm303, %v2503, -inf
        %2664 = vmax.xlane.f32.xlu0 %v2663
        %v2665 = vpop.xlane.xlu0 %2664
        %v2666 = vsel %vm303, %v2504, -inf
        %2667 = vmax.xlane.f32.xlu0 %v2666
        %v2668 = vpop.xlane.xlu0 %2667
        %v2669 = vsel %vm303, %v2505, -inf
        %2670 = vmax.xlane.f32.xlu0 %v2669
        %v2671 = vpop.xlane.xlu0 %2670
        %v2672 = vsel %vm303, %v2506, -inf
        %2673 = vmax.xlane.f32.xlu0 %v2672
        %v2674 = vpop.xlane.xlu0 %2673
        %v2675 = vsel %vm303, %v2507, -inf
        %2676 = vmax.xlane.f32.xlu0 %v2675
        %v2677 = vpop.xlane.xlu0 %2676
        %v2678 = vsel %vm303, %v2508, -inf
        %2679 = vmax.xlane.f32.xlu0 %v2678
        %v2680 = vpop.xlane.xlu0 %2679
        %v2681 = vsel %vm303, %v2509, -inf
        %2682 = vmax.xlane.f32.xlu0 %v2681
        %v2683 = vpop.xlane.xlu0 %2682
        %v2684 = vsel %vm303, %v2510, -inf
        %2685 = vmax.xlane.f32.xlu0 %v2684
        %v2686 = vpop.xlane.xlu0 %2685
        %v2687 = vsel %vm303, %v2511, -inf
        %2688 = vmax.xlane.f32.xlu0 %v2687
        %v2689 = vpop.xlane.xlu0 %2688
        %v2690 = vsel %vm303, %v2512, -inf
        %2691 = vmax.xlane.f32.xlu0 %v2690
        %v2692 = vpop.xlane.xlu0 %2691
        %v2693 = vsel %vm303, %v2513, -inf
        %2694 = vmax.xlane.f32.xlu0 %v2693
        %v2695 = vpop.xlane.xlu0 %2694
        %v2696 = vsel %vm303, %v2514, -inf
        %2697 = vmax.xlane.f32.xlu0 %v2696
        %v2698 = vpop.xlane.xlu0 %2697
        %v2699 = vsel %vm303, %v2515, -inf
        %2700 = vmax.xlane.f32.xlu0 %v2699
        %v2701 = vpop.xlane.xlu0 %2700
        %v2702 = vsel %vm303, %v2516, -inf
        %2703 = vmax.xlane.f32.xlu0 %v2702
        %v2704 = vpop.xlane.xlu0 %2703
        %v2705 = vsel %vm303, %v2517, -inf
        %2706 = vmax.xlane.f32.xlu0 %v2705
        %v2707 = vpop.xlane.xlu0 %2706
        %v2708 = vsel %vm303, %v2518, -inf
        %2709 = vmax.xlane.f32.xlu0 %v2708
        %v2710 = vpop.xlane.xlu0 %2709
        %v2743 = vperm.slane %v2617, %v2480
        %v2744 = vadd.s32 %v2480, 4294967288
        %v2745 = vperm.slane %v2620, %v2744
        %vm2746 = vcmask 130112
        %v2747 = vsel %vm2746, %v2745, %v2743
        %v2748 = vperm.slane %v2623, %v2480
        %v2749 = vperm.slane %v2626, %v2744
        %v2750 = vsel %vm2746, %v2749, %v2748
        %v2751 = vperm.slane %v2629, %v2480
        %v2752 = vperm.slane %v2632, %v2744
        %v2753 = vsel %vm2746, %v2752, %v2751
        %v2754 = vperm.slane %v2635, %v2480
        %v2755 = vperm.slane %v2638, %v2744
        %v2756 = vsel %vm2746, %v2755, %v2754
        %v2757 = vperm.slane %v2641, %v2480
        %v2758 = vperm.slane %v2644, %v2744
        %v2759 = vsel %vm2746, %v2758, %v2757
        %v2760 = vperm.slane %v2647, %v2480
        %v2761 = vperm.slane %v2650, %v2744
        %v2762 = vsel %vm2746, %v2761, %v2760
        %v2763 = vperm.slane %v2653, %v2480
        %v2764 = vperm.slane %v2656, %v2744
        %v2765 = vsel %vm2746, %v2764, %v2763
        %v2766 = vperm.slane %v2659, %v2480
        %v2767 = vperm.slane %v2662, %v2744
        %v2768 = vsel %vm2746, %v2767, %v2766
        %v2769 = vperm.slane %v2665, %v2480
        %v2770 = vperm.slane %v2668, %v2744
        %v2771 = vsel %vm2746, %v2770, %v2769
        %v2772 = vperm.slane %v2671, %v2480
        %v2773 = vperm.slane %v2674, %v2744
        %v2774 = vsel %vm2746, %v2773, %v2772
        %v2775 = vperm.slane %v2677, %v2480
        %v2776 = vperm.slane %v2680, %v2744
        %v2777 = vsel %vm2746, %v2776, %v2775
        %v2778 = vperm.slane %v2683, %v2480
        %v2779 = vperm.slane %v2686, %v2744
        %v2780 = vsel %vm2746, %v2779, %v2778
        %v2781 = vperm.slane %v2689, %v2480
        %v2782 = vperm.slane %v2692, %v2744
        %v2783 = vsel %vm2746, %v2782, %v2781
        %v2784 = vperm.slane %v2695, %v2480
        %v2785 = vperm.slane %v2698, %v2744
        %v2786 = vsel %vm2746, %v2785, %v2784
        %v2787 = vperm.slane %v2701, %v2480
        %v2788 = vperm.slane %v2704, %v2744
        %v2789 = vsel %vm2746, %v2788, %v2787
        %v2790 = vperm.slane %v2707, %v2480
        %v2791 = vperm.slane %v2710, %v2744
        %v2792 = vsel %vm2746, %v2791, %v2790
        %vm2793 = vcmask 1041409
        %v2794 = vsel %vm2793, %v2750, %v2747
        %vm2795 = vcmask 1042434
        %v2796 = vsel %vm2795, %v2753, %v2794
        %vm2797 = vcmask 1043459
        %v2798 = vsel %vm2797, %v2756, %v2796
        %vm2799 = vcmask 1044484
        %v2800 = vsel %vm2799, %v2759, %v2798
        %vm2801 = vcmask 1045509
        %v2802 = vsel %vm2801, %v2762, %v2800
        %vm2803 = vcmask 1046534
        %v2804 = vsel %vm2803, %v2765, %v2802
        %vm2805 = vcmask 1047559
        %v2806 = vsel %vm2805, %v2768, %v2804
        %v2807 = vsel %vm2793, %v2774, %v2771
        %v2808 = vsel %vm2795, %v2777, %v2807
        %v2809 = vsel %vm2797, %v2780, %v2808
        %v2810 = vsel %vm2799, %v2783, %v2809
        %v2811 = vsel %vm2801, %v2786, %v2810
        %v2812 = vsel %vm2803, %v2789, %v2811
        %v2813 = vsel %vm2805, %v2792, %v2812
        %2816 = vxpose.xlu0.b32.start [1/16] %v2806, 128
        %2817 = vxpose.xlu0.b32.cont [2/16] %v2813, 128
        %2818 = vxpose.xlu0.b32.cont [3/16] 0.0, 128
        %2819 = vxpose.xlu0.b32.cont [4/16] 0.0, 128
        %2820 = vxpose.xlu0.b32.cont [5/16] 0.0, 128
        %2821 = vxpose.xlu0.b32.cont [6/16] 0.0, 128
        %2822 = vxpose.xlu0.b32.cont [7/16] 0.0, 128
        %2823 = vxpose.xlu0.b32.cont [8/16] 0.0, 128
        %2824 = vxpose.xlu0.b32.cont [9/16] 0.0, 128
        %2825 = vxpose.xlu0.b32.cont [10/16] 0.0, 128
        %2826 = vxpose.xlu0.b32.cont [11/16] 0.0, 128
        %2827 = vxpose.xlu0.b32.cont [12/16] 0.0, 128
        %2828 = vxpose.xlu0.b32.cont [13/16] 0.0, 128
        %2829 = vxpose.xlu0.b32.cont [14/16] 0.0, 128
        %2830 = vxpose.xlu0.b32.cont [15/16] 0.0, 128
        %2831 = vxpose.xlu0.b32.end [16/16] 0.0, 128
        %v2832 = vpop.trf.xlu0
        %v2833 = vpop.trf.xlu0
        %v2834 = vpop.trf.xlu0
        %v2835 = vpop.trf.xlu0
        %v2836 = vpop.trf.xlu0
        %v2837 = vpop.trf.xlu0
        %v2838 = vpop.trf.xlu0
        %v2839 = vpop.trf.xlu0
        %v2840 = vpop.trf.xlu0
        %v2841 = vpop.trf.xlu0
        %v2842 = vpop.trf.xlu0
        %v2843 = vpop.trf.xlu0
        %v2844 = vpop.trf.xlu0
        %v2845 = vpop.trf.xlu0
        %v2846 = vpop.trf.xlu0
        %v2847 = vpop.trf.xlu0
        %v2850 = vperm.slane %v2832, 0
        %v2851 = vlaneseq
        %v2852 = vshrl.u32 %v2851, 7
        %2854 = vset.pattern.permute.xlu0 %v2852
        %2855 = vperm.xlu0 %2854, %v2850
        %v2856 = vpop.permute.xlu0 %2855
        %v2857 = vlaneseq
        %v2858 = vshrl.u32 %v2857, 7
        %v2859 = vadd.s32 %v2858, 8
        %2860 = vset.pattern.permute.xlu0 %v2859
        %2861 = vperm.xlu0 %2860, %v2850
        %v2862 = vpop.permute.xlu0 %2861
        %v2863 = vperm.slane %v2832, 1
        %v2864 = vlaneseq
        %v2865 = vshrl.u32 %v2864, 7
        %2867 = vset.pattern.permute.xlu0 %v2865
        %2868 = vperm.xlu0 %2867, %v2863
        %v2869 = vpop.permute.xlu0 %2868
        %v2870 = vlaneseq
        %v2871 = vshrl.u32 %v2870, 7
        %v2872 = vadd.s32 %v2871, 8
        %2873 = vset.pattern.permute.xlu0 %v2872
        %2874 = vperm.xlu0 %2873, %v2863
        %v2875 = vpop.permute.xlu0 %2874
        %v2876 = vperm.slane %v2832, 2
        %v2877 = vlaneseq
        %v2878 = vshrl.u32 %v2877, 7
        %2880 = vset.pattern.permute.xlu0 %v2878
        %2881 = vperm.xlu0 %2880, %v2876
        %v2882 = vpop.permute.xlu0 %2881
        %v2883 = vlaneseq
        %v2884 = vshrl.u32 %v2883, 7
        %v2885 = vadd.s32 %v2884, 8
        %2886 = vset.pattern.permute.xlu0 %v2885
        %2887 = vperm.xlu0 %2886, %v2876
        %v2888 = vpop.permute.xlu0 %2887
        %v2889 = vperm.slane %v2832, 3
        %v2890 = vlaneseq
        %v2891 = vshrl.u32 %v2890, 7
        %2893 = vset.pattern.permute.xlu0 %v2891
        %2894 = vperm.xlu0 %2893, %v2889
        %v2895 = vpop.permute.xlu0 %2894
        %v2896 = vlaneseq
        %v2897 = vshrl.u32 %v2896, 7
        %v2898 = vadd.s32 %v2897, 8
        %2899 = vset.pattern.permute.xlu0 %v2898
        %2900 = vperm.xlu0 %2899, %v2889
        %v2901 = vpop.permute.xlu0 %2900
        %v2902 = vperm.slane %v2832, 4
        %v2903 = vlaneseq
        %v2904 = vshrl.u32 %v2903, 7
        %2906 = vset.pattern.permute.xlu0 %v2904
        %2907 = vperm.xlu0 %2906, %v2902
        %v2908 = vpop.permute.xlu0 %2907
        %v2909 = vlaneseq
        %v2910 = vshrl.u32 %v2909, 7
        %v2911 = vadd.s32 %v2910, 8
        %2912 = vset.pattern.permute.xlu0 %v2911
        %2913 = vperm.xlu0 %2912, %v2902
        %v2914 = vpop.permute.xlu0 %2913
        %v2915 = vperm.slane %v2832, 5
        %v2916 = vlaneseq
        %v2917 = vshrl.u32 %v2916, 7
        %2919 = vset.pattern.permute.xlu0 %v2917
        %2920 = vperm.xlu0 %2919, %v2915
        %v2921 = vpop.permute.xlu0 %2920
        %v2922 = vlaneseq
        %v2923 = vshrl.u32 %v2922, 7
        %v2924 = vadd.s32 %v2923, 8
        %2925 = vset.pattern.permute.xlu0 %v2924
        %2926 = vperm.xlu0 %2925, %v2915
        %v2927 = vpop.permute.xlu0 %2926
        %v2928 = vperm.slane %v2832, 6
        %v2929 = vlaneseq
        %v2930 = vshrl.u32 %v2929, 7
        %2932 = vset.pattern.permute.xlu0 %v2930
        %2933 = vperm.xlu0 %2932, %v2928
        %v2934 = vpop.permute.xlu0 %2933
        %v2935 = vlaneseq
        %v2936 = vshrl.u32 %v2935, 7
        %v2937 = vadd.s32 %v2936, 8
        %2938 = vset.pattern.permute.xlu0 %v2937
        %2939 = vperm.xlu0 %2938, %v2928
        %v2940 = vpop.permute.xlu0 %2939
        %v2941 = vperm.slane %v2832, 7
        %v2942 = vlaneseq
        %v2943 = vshrl.u32 %v2942, 7
        %2945 = vset.pattern.permute.xlu0 %v2943
        %2946 = vperm.xlu0 %2945, %v2941
        %v2947 = vpop.permute.xlu0 %2946
        %v2948 = vlaneseq
        %v2949 = vshrl.u32 %v2948, 7
        %v2950 = vadd.s32 %v2949, 8
        %2951 = vset.pattern.permute.xlu0 %v2950
        %2952 = vperm.xlu0 %2951, %v2941
        %v2953 = vpop.permute.xlu0 %2952
        %v2954 = vperm.slane %v2833, 0
        %v2955 = vlaneseq
        %v2956 = vshrl.u32 %v2955, 7
        %2958 = vset.pattern.permute.xlu0 %v2956
        %2959 = vperm.xlu0 %2958, %v2954
        %v2960 = vpop.permute.xlu0 %2959
        %v2961 = vlaneseq
        %v2962 = vshrl.u32 %v2961, 7
        %v2963 = vadd.s32 %v2962, 8
        %2964 = vset.pattern.permute.xlu0 %v2963
        %2965 = vperm.xlu0 %2964, %v2954
        %v2966 = vpop.permute.xlu0 %2965
        %v2967 = vperm.slane %v2833, 1
        %v2968 = vlaneseq
        %v2969 = vshrl.u32 %v2968, 7
        %2971 = vset.pattern.permute.xlu0 %v2969
        %2972 = vperm.xlu0 %2971, %v2967
        %v2973 = vpop.permute.xlu0 %2972
        %v2974 = vlaneseq
        %v2975 = vshrl.u32 %v2974, 7
        %v2976 = vadd.s32 %v2975, 8
        %2977 = vset.pattern.permute.xlu0 %v2976
        %2978 = vperm.xlu0 %2977, %v2967
        %v2979 = vpop.permute.xlu0 %2978
        %v2980 = vperm.slane %v2833, 2
        %v2981 = vlaneseq
        %v2982 = vshrl.u32 %v2981, 7
        %2984 = vset.pattern.permute.xlu0 %v2982
        %2985 = vperm.xlu0 %2984, %v2980
        %v2986 = vpop.permute.xlu0 %2985
        %v2987 = vlaneseq
        %v2988 = vshrl.u32 %v2987, 7
        %v2989 = vadd.s32 %v2988, 8
        %2990 = vset.pattern.permute.xlu0 %v2989
        %2991 = vperm.xlu0 %2990, %v2980
        %v2992 = vpop.permute.xlu0 %2991
        %v2993 = vperm.slane %v2833, 3
        %v2994 = vlaneseq
        %v2995 = vshrl.u32 %v2994, 7
        %2997 = vset.pattern.permute.xlu0 %v2995
        %2998 = vperm.xlu0 %2997, %v2993
        %v2999 = vpop.permute.xlu0 %2998
        %v3000 = vlaneseq
        %v3001 = vshrl.u32 %v3000, 7
        %v3002 = vadd.s32 %v3001, 8
        %3003 = vset.pattern.permute.xlu0 %v3002
        %3004 = vperm.xlu0 %3003, %v2993
        %v3005 = vpop.permute.xlu0 %3004
        %v3006 = vperm.slane %v2833, 4
        %v3007 = vlaneseq
        %v3008 = vshrl.u32 %v3007, 7
        %3010 = vset.pattern.permute.xlu0 %v3008
        %3011 = vperm.xlu0 %3010, %v3006
        %v3012 = vpop.permute.xlu0 %3011
        %v3013 = vlaneseq
        %v3014 = vshrl.u32 %v3013, 7
        %v3015 = vadd.s32 %v3014, 8
        %3016 = vset.pattern.permute.xlu0 %v3015
        %3017 = vperm.xlu0 %3016, %v3006
        %v3018 = vpop.permute.xlu0 %3017
        %v3019 = vperm.slane %v2833, 5
        %v3020 = vlaneseq
        %v3021 = vshrl.u32 %v3020, 7
        %3023 = vset.pattern.permute.xlu0 %v3021
        %3024 = vperm.xlu0 %3023, %v3019
        %v3025 = vpop.permute.xlu0 %3024
        %v3026 = vlaneseq
        %v3027 = vshrl.u32 %v3026, 7
        %v3028 = vadd.s32 %v3027, 8
        %3029 = vset.pattern.permute.xlu0 %v3028
        %3030 = vperm.xlu0 %3029, %v3019
        %v3031 = vpop.permute.xlu0 %3030
        %v3032 = vperm.slane %v2833, 6
        %v3033 = vlaneseq
        %v3034 = vshrl.u32 %v3033, 7
        %3036 = vset.pattern.permute.xlu0 %v3034
        %3037 = vperm.xlu0 %3036, %v3032
        %v3038 = vpop.permute.xlu0 %3037
        %v3039 = vlaneseq
        %v3040 = vshrl.u32 %v3039, 7
        %v3041 = vadd.s32 %v3040, 8
        %3042 = vset.pattern.permute.xlu0 %v3041
        %3043 = vperm.xlu0 %3042, %v3032
        %v3044 = vpop.permute.xlu0 %3043
        %v3045 = vperm.slane %v2833, 7
        %v3046 = vlaneseq
        %v3047 = vshrl.u32 %v3046, 7
        %3049 = vset.pattern.permute.xlu0 %v3047
        %3050 = vperm.xlu0 %3049, %v3045
        %v3051 = vpop.permute.xlu0 %3050
        %v3052 = vlaneseq
        %v3053 = vshrl.u32 %v3052, 7
        %v3054 = vadd.s32 %v3053, 8
        %3055 = vset.pattern.permute.xlu0 %v3054
        %3056 = vperm.xlu0 %3055, %v3045
        %v3057 = vpop.permute.xlu0 %3056
        %v3090 = vmax.f32 %v2521, %v2856
        %v3091 = vmax.f32 %v2524, %v2862
        %v3092 = vmax.f32 %v2527, %v2869
        %v3093 = vmax.f32 %v2530, %v2875
        %v3094 = vmax.f32 %v2533, %v2882
        %v3095 = vmax.f32 %v2536, %v2888
        %v3096 = vmax.f32 %v2539, %v2895
        %v3097 = vmax.f32 %v2542, %v2901
        %v3098 = vmax.f32 %v2545, %v2908
        %v3099 = vmax.f32 %v2548, %v2914
        %v3100 = vmax.f32 %v2551, %v2921
        %v3101 = vmax.f32 %v2554, %v2927
        %v3102 = vmax.f32 %v2557, %v2934
        %v3103 = vmax.f32 %v2560, %v2940
        %v3104 = vmax.f32 %v2563, %v2947
        %v3105 = vmax.f32 %v2566, %v2953
        %v3106 = vmax.f32 %v2569, %v2960
        %v3107 = vmax.f32 %v2572, %v2966
        %v3108 = vmax.f32 %v2575, %v2973
        %v3109 = vmax.f32 %v2578, %v2979
        %v3110 = vmax.f32 %v2581, %v2986
        %v3111 = vmax.f32 %v2584, %v2992
        %v3112 = vmax.f32 %v2587, %v2999
        %v3113 = vmax.f32 %v2590, %v3005
        %v3114 = vmax.f32 %v2593, %v3012
        %v3115 = vmax.f32 %v2596, %v3018
        %v3116 = vmax.f32 %v2599, %v3025
        %v3117 = vmax.f32 %v2602, %v3031
        %v3118 = vmax.f32 %v2605, %v3038
        %v3119 = vmax.f32 %v2608, %v3044
        %v3120 = vmax.f32 %v2611, %v3051
        %v3121 = vmax.f32 %v2614, %v3057
        %3154 = vset.pattern.permute.xlu0 0
        %3155 = vperm.xlu0 %3154, %v3090
        %v3156 = vpop.permute.xlu0 %3155
        %3157 = vset.pattern.permute.xlu0 0
        %3158 = vperm.xlu0 %3157, %v3091
        %v3159 = vpop.permute.xlu0 %3158
        %3160 = vset.pattern.permute.xlu0 0
        %3161 = vperm.xlu0 %3160, %v3092
        %v3162 = vpop.permute.xlu0 %3161
        %3163 = vset.pattern.permute.xlu0 0
        %3164 = vperm.xlu0 %3163, %v3093
        %v3165 = vpop.permute.xlu0 %3164
        %3166 = vset.pattern.permute.xlu0 0
        %3167 = vperm.xlu0 %3166, %v3094
        %v3168 = vpop.permute.xlu0 %3167
        %3169 = vset.pattern.permute.xlu0 0
        %3170 = vperm.xlu0 %3169, %v3095
        %v3171 = vpop.permute.xlu0 %3170
        %3172 = vset.pattern.permute.xlu0 0
        %3173 = vperm.xlu0 %3172, %v3096
        %v3174 = vpop.permute.xlu0 %3173
        %3175 = vset.pattern.permute.xlu0 0
        %3176 = vperm.xlu0 %3175, %v3097
        %v3177 = vpop.permute.xlu0 %3176
        %3178 = vset.pattern.permute.xlu0 0
        %3179 = vperm.xlu0 %3178, %v3098
        %v3180 = vpop.permute.xlu0 %3179
        %3181 = vset.pattern.permute.xlu0 0
        %3182 = vperm.xlu0 %3181, %v3099
        %v3183 = vpop.permute.xlu0 %3182
        %3184 = vset.pattern.permute.xlu0 0
        %3185 = vperm.xlu0 %3184, %v3100
        %v3186 = vpop.permute.xlu0 %3185
        %3187 = vset.pattern.permute.xlu0 0
        %3188 = vperm.xlu0 %3187, %v3101
        %v3189 = vpop.permute.xlu0 %3188
        %3190 = vset.pattern.permute.xlu0 0
        %3191 = vperm.xlu0 %3190, %v3102
        %v3192 = vpop.permute.xlu0 %3191
        %3193 = vset.pattern.permute.xlu0 0
        %3194 = vperm.xlu0 %3193, %v3103
        %v3195 = vpop.permute.xlu0 %3194
        %3196 = vset.pattern.permute.xlu0 0
        %3197 = vperm.xlu0 %3196, %v3104
        %v3198 = vpop.permute.xlu0 %3197
        %3199 = vset.pattern.permute.xlu0 0
        %3200 = vperm.xlu0 %3199, %v3105
        %v3201 = vpop.permute.xlu0 %3200
        %3202 = vset.pattern.permute.xlu0 0
        %3203 = vperm.xlu0 %3202, %v3106
        %v3204 = vpop.permute.xlu0 %3203
        %3205 = vset.pattern.permute.xlu0 0
        %3206 = vperm.xlu0 %3205, %v3107
        %v3207 = vpop.permute.xlu0 %3206
        %3208 = vset.pattern.permute.xlu0 0
        %3209 = vperm.xlu0 %3208, %v3108
        %v3210 = vpop.permute.xlu0 %3209
        %3211 = vset.pattern.permute.xlu0 0
        %3212 = vperm.xlu0 %3211, %v3109
        %v3213 = vpop.permute.xlu0 %3212
        %3214 = vset.pattern.permute.xlu0 0
        %3215 = vperm.xlu0 %3214, %v3110
        %v3216 = vpop.permute.xlu0 %3215
        %3217 = vset.pattern.permute.xlu0 0
        %3218 = vperm.xlu0 %3217, %v3111
        %v3219 = vpop.permute.xlu0 %3218
        %3220 = vset.pattern.permute.xlu0 0
        %3221 = vperm.xlu0 %3220, %v3112
        %v3222 = vpop.permute.xlu0 %3221
        %3223 = vset.pattern.permute.xlu0 0
        %3224 = vperm.xlu0 %3223, %v3113
        %v3225 = vpop.permute.xlu0 %3224
        %3226 = vset.pattern.permute.xlu0 0
        %3227 = vperm.xlu0 %3226, %v3114
        %v3228 = vpop.permute.xlu0 %3227
        %3229 = vset.pattern.permute.xlu0 0
        %3230 = vperm.xlu0 %3229, %v3115
        %v3231 = vpop.permute.xlu0 %3230
        %3232 = vset.pattern.permute.xlu0 0
        %3233 = vperm.xlu0 %3232, %v3116
        %v3234 = vpop.permute.xlu0 %3233
        %3235 = vset.pattern.permute.xlu0 0
        %3236 = vperm.xlu0 %3235, %v3117
        %v3237 = vpop.permute.xlu0 %3236
        %3238 = vset.pattern.permute.xlu0 0
        %3239 = vperm.xlu0 %3238, %v3118
        %v3240 = vpop.permute.xlu0 %3239
        %3241 = vset.pattern.permute.xlu0 0
        %3242 = vperm.xlu0 %3241, %v3119
        %v3243 = vpop.permute.xlu0 %3242
        %3244 = vset.pattern.permute.xlu0 0
        %3245 = vperm.xlu0 %3244, %v3120
        %v3246 = vpop.permute.xlu0 %3245
        %3247 = vset.pattern.permute.xlu0 0
        %3248 = vperm.xlu0 %3247, %v3121
        %v3249 = vpop.permute.xlu0 %3248
        %v3250 = vperm.slane %v3156, %v2480
        %v3251 = vperm.slane %v3159, %v2744
        %v3252 = vsel %vm2746, %v3251, %v3250
        %v3253 = vperm.slane %v3162, %v2480
        %v3254 = vperm.slane %v3165, %v2744
        %v3255 = vsel %vm2746, %v3254, %v3253
        %v3256 = vperm.slane %v3168, %v2480
        %v3257 = vperm.slane %v3171, %v2744
        %v3258 = vsel %vm2746, %v3257, %v3256
        %v3259 = vperm.slane %v3174, %v2480
        %v3260 = vperm.slane %v3177, %v2744
        %v3261 = vsel %vm2746, %v3260, %v3259
        %v3262 = vperm.slane %v3180, %v2480
        %v3263 = vperm.slane %v3183, %v2744
        %v3264 = vsel %vm2746, %v3263, %v3262
        %v3265 = vperm.slane %v3186, %v2480
        %v3266 = vperm.slane %v3189, %v2744
        %v3267 = vsel %vm2746, %v3266, %v3265
        %v3268 = vperm.slane %v3192, %v2480
        %v3269 = vperm.slane %v3195, %v2744
        %v3270 = vsel %vm2746, %v3269, %v3268
        %v3271 = vperm.slane %v3198, %v2480
        %v3272 = vperm.slane %v3201, %v2744
        %v3273 = vsel %vm2746, %v3272, %v3271
        %v3274 = vperm.slane %v3204, %v2480
        %v3275 = vperm.slane %v3207, %v2744
        %v3276 = vsel %vm2746, %v3275, %v3274
        %v3277 = vperm.slane %v3210, %v2480
        %v3278 = vperm.slane %v3213, %v2744
        %v3279 = vsel %vm2746, %v3278, %v3277
        %v3280 = vperm.slane %v3216, %v2480
        %v3281 = vperm.slane %v3219, %v2744
        %v3282 = vsel %vm2746, %v3281, %v3280
        %v3283 = vperm.slane %v3222, %v2480
        %v3284 = vperm.slane %v3225, %v2744
        %v3285 = vsel %vm2746, %v3284, %v3283
        %v3286 = vperm.slane %v3228, %v2480
        %v3287 = vperm.slane %v3231, %v2744
        %v3288 = vsel %vm2746, %v3287, %v3286
        %v3289 = vperm.slane %v3234, %v2480
        %v3290 = vperm.slane %v3237, %v2744
        %v3291 = vsel %vm2746, %v3290, %v3289
        %v3292 = vperm.slane %v3240, %v2480
        %v3293 = vperm.slane %v3243, %v2744
        %v3294 = vsel %vm2746, %v3293, %v3292
        %v3295 = vperm.slane %v3246, %v2480
        %v3296 = vperm.slane %v3249, %v2744
        %v3297 = vsel %vm2746, %v3296, %v3295
        %v3298 = vsel %vm2793, %v3255, %v3252
        %v3299 = vsel %vm2795, %v3258, %v3298
        %v3300 = vsel %vm2797, %v3261, %v3299
        %v3301 = vsel %vm2799, %v3264, %v3300
        %v3302 = vsel %vm2801, %v3267, %v3301
        %v3303 = vsel %vm2803, %v3270, %v3302
        %v3304 = vsel %vm2805, %v3273, %v3303
        %v3305 = vsel %vm2793, %v3279, %v3276
        %v3306 = vsel %vm2795, %v3282, %v3305
        %v3307 = vsel %vm2797, %v3285, %v3306
        %v3308 = vsel %vm2799, %v3288, %v3307
        %v3309 = vsel %vm2801, %v3291, %v3308
        %v3310 = vsel %vm2803, %v3294, %v3309
        %v3311 = vsel %vm2805, %v3297, %v3310
        %3314 = vxpose.xlu0.b32.start [1/16] %v3304, 128
        %3315 = vxpose.xlu0.b32.cont [2/16] %v3311, 128
        %3316 = vxpose.xlu0.b32.cont [3/16] 0.0, 128
        %3317 = vxpose.xlu0.b32.cont [4/16] 0.0, 128
        %3318 = vxpose.xlu0.b32.cont [5/16] 0.0, 128
        %3319 = vxpose.xlu0.b32.cont [6/16] 0.0, 128
        %3320 = vxpose.xlu0.b32.cont [7/16] 0.0, 128
        %3321 = vxpose.xlu0.b32.cont [8/16] 0.0, 128
        %3322 = vxpose.xlu0.b32.cont [9/16] 0.0, 128
        %3323 = vxpose.xlu0.b32.cont [10/16] 0.0, 128
        %3324 = vxpose.xlu0.b32.cont [11/16] 0.0, 128
        %3325 = vxpose.xlu0.b32.cont [12/16] 0.0, 128
        %3326 = vxpose.xlu0.b32.cont [13/16] 0.0, 128
        %3327 = vxpose.xlu0.b32.cont [14/16] 0.0, 128
        %3328 = vxpose.xlu0.b32.cont [15/16] 0.0, 128
        %3329 = vxpose.xlu0.b32.end [16/16] 0.0, 128
        %v3330 = vpop.trf.xlu0
        %v3331 = vpop.trf.xlu0
        %v3332 = vpop.trf.xlu0
        %v3333 = vpop.trf.xlu0
        %v3334 = vpop.trf.xlu0
        %v3335 = vpop.trf.xlu0
        %v3336 = vpop.trf.xlu0
        %v3337 = vpop.trf.xlu0
        %v3338 = vpop.trf.xlu0
        %v3339 = vpop.trf.xlu0
        %v3340 = vpop.trf.xlu0
        %v3341 = vpop.trf.xlu0
        %v3342 = vpop.trf.xlu0
        %v3343 = vpop.trf.xlu0
        %v3344 = vpop.trf.xlu0
        %v3345 = vpop.trf.xlu0
        %v3378 = vsub.f32 %v1666, %v3156
        %v3379 = vsub.f32 %v1668, %v3159
        %v3380 = vsub.f32 %v1692, %v3162
        %v3381 = vsub.f32 %v1694, %v3165
        %v3382 = vsub.f32 %v1718, %v3168
        %v3383 = vsub.f32 %v1720, %v3171
        %v3384 = vsub.f32 %v1744, %v3174
        %v3385 = vsub.f32 %v1746, %v3177
        %v3386 = vsub.f32 %v1770, %v3180
        %v3387 = vsub.f32 %v1772, %v3183
        %v3388 = vsub.f32 %v1796, %v3186
        %v3389 = vsub.f32 %v1798, %v3189
        %v3390 = vsub.f32 %v1822, %v3192
        %v3391 = vsub.f32 %v1824, %v3195
        %v3392 = vsub.f32 %v1848, %v3198
        %v3393 = vsub.f32 %v1850, %v3201
        %v3394 = vsub.f32 %v1874, %v3204
        %v3395 = vsub.f32 %v1876, %v3207
        %v3396 = vsub.f32 %v1900, %v3210
        %v3397 = vsub.f32 %v1902, %v3213
        %v3398 = vsub.f32 %v1926, %v3216
        %v3399 = vsub.f32 %v1928, %v3219
        %v3400 = vsub.f32 %v1952, %v3222
        %v3401 = vsub.f32 %v1954, %v3225
        %v3402 = vsub.f32 %v1978, %v3228
        %v3403 = vsub.f32 %v1980, %v3231
        %v3404 = vsub.f32 %v2004, %v3234
        %v3405 = vsub.f32 %v2006, %v3237
        %v3406 = vsub.f32 %v2030, %v3240
        %v3407 = vsub.f32 %v2032, %v3243
        %v3408 = vsub.f32 %v2056, %v3246
        %v3409 = vsub.f32 %v2058, %v3249
        %v3410 = vmul.f32 %v3378, 1.442695
        %v3411 = vpow.pop %v3410
        %v3412 = vmul.f32 %v3379, 1.442695
        %v3413 = vpow.pop %v3412
        %v3414 = vmul.f32 %v3380, 1.442695
        %v3415 = vpow.pop %v3414
        %v3416 = vmul.f32 %v3381, 1.442695
        %v3417 = vpow.pop %v3416
        %v3418 = vmul.f32 %v3382, 1.442695
        %v3419 = vpow.pop %v3418
        %v3420 = vmul.f32 %v3383, 1.442695
        %v3421 = vpow.pop %v3420
        %v3422 = vmul.f32 %v3384, 1.442695
        %v3423 = vpow.pop %v3422
        %v3424 = vmul.f32 %v3385, 1.442695
        %v3425 = vpow.pop %v3424
        %v3426 = vmul.f32 %v3386, 1.442695
        %v3427 = vpow.pop %v3426
        %v3428 = vmul.f32 %v3387, 1.442695
        %v3429 = vpow.pop %v3428
        %v3430 = vmul.f32 %v3388, 1.442695
        %v3431 = vpow.pop %v3430
        %v3432 = vmul.f32 %v3389, 1.442695
        %v3433 = vpow.pop %v3432
        %v3434 = vmul.f32 %v3390, 1.442695
        %v3435 = vpow.pop %v3434
        %v3436 = vmul.f32 %v3391, 1.442695
        %v3437 = vpow.pop %v3436
        %v3438 = vmul.f32 %v3392, 1.442695
        %v3439 = vpow.pop %v3438
        %v3440 = vmul.f32 %v3393, 1.442695
        %v3441 = vpow.pop %v3440
        %v3442 = vmul.f32 %v3394, 1.442695
        %v3443 = vpow.pop %v3442
        %v3444 = vmul.f32 %v3395, 1.442695
        %v3445 = vpow.pop %v3444
        %v3446 = vmul.f32 %v3396, 1.442695
        %v3447 = vpow.pop %v3446
        %v3448 = vmul.f32 %v3397, 1.442695
        %v3449 = vpow.pop %v3448
        %v3450 = vmul.f32 %v3398, 1.442695
        %v3451 = vpow.pop %v3450
        %v3452 = vmul.f32 %v3399, 1.442695
        %v3453 = vpow.pop %v3452
        %v3454 = vmul.f32 %v3400, 1.442695
        %v3455 = vpow.pop %v3454
        %v3456 = vmul.f32 %v3401, 1.442695
        %v3457 = vpow.pop %v3456
        %v3458 = vmul.f32 %v3402, 1.442695
        %v3459 = vpow.pop %v3458
        %v3460 = vmul.f32 %v3403, 1.442695
        %v3461 = vpow.pop %v3460
        %v3462 = vmul.f32 %v3404, 1.442695
        %v3463 = vpow.pop %v3462
        %v3464 = vmul.f32 %v3405, 1.442695
        %v3465 = vpow.pop %v3464
        %v3466 = vmul.f32 %v3406, 1.442695
        %v3467 = vpow.pop %v3466
        %v3468 = vmul.f32 %v3407, 1.442695
        %v3469 = vpow.pop %v3468
        %v3470 = vmul.f32 %v3408, 1.442695
        %v3471 = vpow.pop %v3470
        %v3472 = vmul.f32 %v3409, 1.442695
        %v3473 = vpow.pop %v3472
        %v3474 = vperm.slane %v3330, 0
        %v3475 = vlaneseq
        %v3476 = vshrl.u32 %v3475, 7
        %3478 = vset.pattern.permute.xlu0 %v3476
        %3479 = vperm.xlu0 %3478, %v3474
        %v3480 = vpop.permute.xlu0 %3479
        %v3481 = vlaneseq
        %v3482 = vshrl.u32 %v3481, 7
        %v3483 = vadd.s32 %v3482, 8
        %3484 = vset.pattern.permute.xlu0 %v3483
        %3485 = vperm.xlu0 %3484, %v3474
        %v3486 = vpop.permute.xlu0 %3485
        %v3487 = vperm.slane %v3330, 1
        %v3488 = vlaneseq
        %v3489 = vshrl.u32 %v3488, 7
        %3491 = vset.pattern.permute.xlu0 %v3489
        %3492 = vperm.xlu0 %3491, %v3487
        %v3493 = vpop.permute.xlu0 %3492
        %v3494 = vlaneseq
        %v3495 = vshrl.u32 %v3494, 7
        %v3496 = vadd.s32 %v3495, 8
        %3497 = vset.pattern.permute.xlu0 %v3496
        %3498 = vperm.xlu0 %3497, %v3487
        %v3499 = vpop.permute.xlu0 %3498
        %v3500 = vperm.slane %v3330, 2
        %v3501 = vlaneseq
        %v3502 = vshrl.u32 %v3501, 7
        %3504 = vset.pattern.permute.xlu0 %v3502
        %3505 = vperm.xlu0 %3504, %v3500
        %v3506 = vpop.permute.xlu0 %3505
        %v3507 = vlaneseq
        %v3508 = vshrl.u32 %v3507, 7
        %v3509 = vadd.s32 %v3508, 8
        %3510 = vset.pattern.permute.xlu0 %v3509
        %3511 = vperm.xlu0 %3510, %v3500
        %v3512 = vpop.permute.xlu0 %3511
        %v3513 = vperm.slane %v3330, 3
        %v3514 = vlaneseq
        %v3515 = vshrl.u32 %v3514, 7
        %3517 = vset.pattern.permute.xlu0 %v3515
        %3518 = vperm.xlu0 %3517, %v3513
        %v3519 = vpop.permute.xlu0 %3518
        %v3520 = vlaneseq
        %v3521 = vshrl.u32 %v3520, 7
        %v3522 = vadd.s32 %v3521, 8
        %3523 = vset.pattern.permute.xlu0 %v3522
        %3524 = vperm.xlu0 %3523, %v3513
        %v3525 = vpop.permute.xlu0 %3524
        %v3526 = vperm.slane %v3330, 4
        %v3527 = vlaneseq
        %v3528 = vshrl.u32 %v3527, 7
        %3530 = vset.pattern.permute.xlu0 %v3528
        %3531 = vperm.xlu0 %3530, %v3526
        %v3532 = vpop.permute.xlu0 %3531
        %v3533 = vlaneseq
        %v3534 = vshrl.u32 %v3533, 7
        %v3535 = vadd.s32 %v3534, 8
        %3536 = vset.pattern.permute.xlu0 %v3535
        %3537 = vperm.xlu0 %3536, %v3526
        %v3538 = vpop.permute.xlu0 %3537
        %v3539 = vperm.slane %v3330, 5
        %v3540 = vlaneseq
        %v3541 = vshrl.u32 %v3540, 7
        %3543 = vset.pattern.permute.xlu0 %v3541
        %3544 = vperm.xlu0 %3543, %v3539
        %v3545 = vpop.permute.xlu0 %3544
        %v3546 = vlaneseq
        %v3547 = vshrl.u32 %v3546, 7
        %v3548 = vadd.s32 %v3547, 8
        %3549 = vset.pattern.permute.xlu0 %v3548
        %3550 = vperm.xlu0 %3549, %v3539
        %v3551 = vpop.permute.xlu0 %3550
        %v3552 = vperm.slane %v3330, 6
        %v3553 = vlaneseq
        %v3554 = vshrl.u32 %v3553, 7
        %3556 = vset.pattern.permute.xlu0 %v3554
        %3557 = vperm.xlu0 %3556, %v3552
        %v3558 = vpop.permute.xlu0 %3557
        %v3559 = vlaneseq
        %v3560 = vshrl.u32 %v3559, 7
        %v3561 = vadd.s32 %v3560, 8
        %3562 = vset.pattern.permute.xlu0 %v3561
        %3563 = vperm.xlu0 %3562, %v3552
        %v3564 = vpop.permute.xlu0 %3563
        %v3565 = vperm.slane %v3330, 7
        %v3566 = vlaneseq
        %v3567 = vshrl.u32 %v3566, 7
        %3569 = vset.pattern.permute.xlu0 %v3567
        %3570 = vperm.xlu0 %3569, %v3565
        %v3571 = vpop.permute.xlu0 %3570
        %v3572 = vlaneseq
        %v3573 = vshrl.u32 %v3572, 7
        %v3574 = vadd.s32 %v3573, 8
        %3575 = vset.pattern.permute.xlu0 %v3574
        %3576 = vperm.xlu0 %3575, %v3565
        %v3577 = vpop.permute.xlu0 %3576
        %v3578 = vperm.slane %v3331, 0
        %v3579 = vlaneseq
        %v3580 = vshrl.u32 %v3579, 7
        %3582 = vset.pattern.permute.xlu0 %v3580
        %3583 = vperm.xlu0 %3582, %v3578
        %v3584 = vpop.permute.xlu0 %3583
        %v3585 = vlaneseq
        %v3586 = vshrl.u32 %v3585, 7
        %v3587 = vadd.s32 %v3586, 8
        %3588 = vset.pattern.permute.xlu0 %v3587
        %3589 = vperm.xlu0 %3588, %v3578
        %v3590 = vpop.permute.xlu0 %3589
        %v3591 = vperm.slane %v3331, 1
        %v3592 = vlaneseq
        %v3593 = vshrl.u32 %v3592, 7
        %3595 = vset.pattern.permute.xlu0 %v3593
        %3596 = vperm.xlu0 %3595, %v3591
        %v3597 = vpop.permute.xlu0 %3596
        %v3598 = vlaneseq
        %v3599 = vshrl.u32 %v3598, 7
        %v3600 = vadd.s32 %v3599, 8
        %3601 = vset.pattern.permute.xlu0 %v3600
        %3602 = vperm.xlu0 %3601, %v3591
        %v3603 = vpop.permute.xlu0 %3602
        %v3604 = vperm.slane %v3331, 2
        %v3605 = vlaneseq
        %v3606 = vshrl.u32 %v3605, 7
        %3608 = vset.pattern.permute.xlu0 %v3606
        %3609 = vperm.xlu0 %3608, %v3604
        %v3610 = vpop.permute.xlu0 %3609
        %v3611 = vlaneseq
        %v3612 = vshrl.u32 %v3611, 7
        %v3613 = vadd.s32 %v3612, 8
        %3614 = vset.pattern.permute.xlu0 %v3613
        %3615 = vperm.xlu0 %3614, %v3604
        %v3616 = vpop.permute.xlu0 %3615
        %v3617 = vperm.slane %v3331, 3
        %v3618 = vlaneseq
        %v3619 = vshrl.u32 %v3618, 7
        %3621 = vset.pattern.permute.xlu0 %v3619
        %3622 = vperm.xlu0 %3621, %v3617
        %v3623 = vpop.permute.xlu0 %3622
        %v3624 = vlaneseq
        %v3625 = vshrl.u32 %v3624, 7
        %v3626 = vadd.s32 %v3625, 8
        %3627 = vset.pattern.permute.xlu0 %v3626
        %3628 = vperm.xlu0 %3627, %v3617
        %v3629 = vpop.permute.xlu0 %3628
        %v3630 = vperm.slane %v3331, 4
        %v3631 = vlaneseq
        %v3632 = vshrl.u32 %v3631, 7
        %3634 = vset.pattern.permute.xlu0 %v3632
        %3635 = vperm.xlu0 %3634, %v3630
        %v3636 = vpop.permute.xlu0 %3635
        %v3637 = vlaneseq
        %v3638 = vshrl.u32 %v3637, 7
        %v3639 = vadd.s32 %v3638, 8
        %3640 = vset.pattern.permute.xlu0 %v3639
        %3641 = vperm.xlu0 %3640, %v3630
        %v3642 = vpop.permute.xlu0 %3641
        %v3643 = vperm.slane %v3331, 5
        %v3644 = vlaneseq
        %v3645 = vshrl.u32 %v3644, 7
        %3647 = vset.pattern.permute.xlu0 %v3645
        %3648 = vperm.xlu0 %3647, %v3643
        %v3649 = vpop.permute.xlu0 %3648
        %v3650 = vlaneseq
        %v3651 = vshrl.u32 %v3650, 7
        %v3652 = vadd.s32 %v3651, 8
        %3653 = vset.pattern.permute.xlu0 %v3652
        %3654 = vperm.xlu0 %3653, %v3643
        %v3655 = vpop.permute.xlu0 %3654
        %v3656 = vperm.slane %v3331, 6
        %v3657 = vlaneseq
        %v3658 = vshrl.u32 %v3657, 7
        %3660 = vset.pattern.permute.xlu0 %v3658
        %3661 = vperm.xlu0 %3660, %v3656
        %v3662 = vpop.permute.xlu0 %3661
        %v3663 = vlaneseq
        %v3664 = vshrl.u32 %v3663, 7
        %v3665 = vadd.s32 %v3664, 8
        %3666 = vset.pattern.permute.xlu0 %v3665
        %3667 = vperm.xlu0 %3666, %v3656
        %v3668 = vpop.permute.xlu0 %3667
        %v3669 = vperm.slane %v3331, 7
        %v3670 = vlaneseq
        %v3671 = vshrl.u32 %v3670, 7
        %3673 = vset.pattern.permute.xlu0 %v3671
        %3674 = vperm.xlu0 %3673, %v3669
        %v3675 = vpop.permute.xlu0 %3674
        %v3676 = vlaneseq
        %v3677 = vshrl.u32 %v3676, 7
        %v3678 = vadd.s32 %v3677, 8
        %3679 = vset.pattern.permute.xlu0 %v3678
        %3680 = vperm.xlu0 %3679, %v3669
        %v3681 = vpop.permute.xlu0 %3680
        %v3682 = vsub.f32 %v2487, %v3480
        %v3683 = vsub.f32 %v2488, %v3486
        %v3684 = vsub.f32 %v2489, %v3493
        %v3685 = vsub.f32 %v2490, %v3499
        %v3686 = vsub.f32 %v2491, %v3506
        %v3687 = vsub.f32 %v2492, %v3512
        %v3688 = vsub.f32 %v2493, %v3519
        %v3689 = vsub.f32 %v2494, %v3525
        %v3690 = vsub.f32 %v2495, %v3532
        %v3691 = vsub.f32 %v2496, %v3538
        %v3692 = vsub.f32 %v2497, %v3545
        %v3693 = vsub.f32 %v2498, %v3551
        %v3694 = vsub.f32 %v2499, %v3558
        %v3695 = vsub.f32 %v2500, %v3564
        %v3696 = vsub.f32 %v2501, %v3571
        %v3697 = vsub.f32 %v2502, %v3577
        %v3698 = vsub.f32 %v2503, %v3584
        %v3699 = vsub.f32 %v2504, %v3590
        %v3700 = vsub.f32 %v2505, %v3597
        %v3701 = vsub.f32 %v2506, %v3603
        %v3702 = vsub.f32 %v2507, %v3610
        %v3703 = vsub.f32 %v2508, %v3616
        %v3704 = vsub.f32 %v2509, %v3623
        %v3705 = vsub.f32 %v2510, %v3629
        %v3706 = vsub.f32 %v2511, %v3636
        %v3707 = vsub.f32 %v2512, %v3642
        %v3708 = vsub.f32 %v2513, %v3649
        %v3709 = vsub.f32 %v2514, %v3655
        %v3710 = vsub.f32 %v2515, %v3662
        %v3711 = vsub.f32 %v2516, %v3668
        %v3712 = vsub.f32 %v2517, %v3675
        %v3713 = vsub.f32 %v2518, %v3681
        %v3714 = vmul.f32 %v3682, 1.442695
        %v3715 = vpow.pop %v3714
        %v3716 = vmul.f32 %v3683, 1.442695
        %v3717 = vpow.pop %v3716
        %v3718 = vmul.f32 %v3684, 1.442695
        %v3719 = vpow.pop %v3718
        %v3720 = vmul.f32 %v3685, 1.442695
        %v3721 = vpow.pop %v3720
        %v3722 = vmul.f32 %v3686, 1.442695
        %v3723 = vpow.pop %v3722
        %v3724 = vmul.f32 %v3687, 1.442695
        %v3725 = vpow.pop %v3724
        %v3726 = vmul.f32 %v3688, 1.442695
        %v3727 = vpow.pop %v3726
        %v3728 = vmul.f32 %v3689, 1.442695
        %v3729 = vpow.pop %v3728
        %v3730 = vmul.f32 %v3690, 1.442695
        %v3731 = vpow.pop %v3730
        %v3732 = vmul.f32 %v3691, 1.442695
        %v3733 = vpow.pop %v3732
        %v3734 = vmul.f32 %v3692, 1.442695
        %v3735 = vpow.pop %v3734
        %v3736 = vmul.f32 %v3693, 1.442695
        %v3737 = vpow.pop %v3736
        %v3738 = vmul.f32 %v3694, 1.442695
        %v3739 = vpow.pop %v3738
        %v3740 = vmul.f32 %v3695, 1.442695
        %v3741 = vpow.pop %v3740
        %v3742 = vmul.f32 %v3696, 1.442695
        %v3743 = vpow.pop %v3742
        %v3744 = vmul.f32 %v3697, 1.442695
        %v3745 = vpow.pop %v3744
        %v3746 = vmul.f32 %v3698, 1.442695
        %v3747 = vpow.pop %v3746
        %v3748 = vmul.f32 %v3699, 1.442695
        %v3749 = vpow.pop %v3748
        %v3750 = vmul.f32 %v3700, 1.442695
        %v3751 = vpow.pop %v3750
        %v3752 = vmul.f32 %v3701, 1.442695
        %v3753 = vpow.pop %v3752
        %v3754 = vmul.f32 %v3702, 1.442695
        %v3755 = vpow.pop %v3754
        %v3756 = vmul.f32 %v3703, 1.442695
        %v3757 = vpow.pop %v3756
        %v3758 = vmul.f32 %v3704, 1.442695
        %v3759 = vpow.pop %v3758
        %v3760 = vmul.f32 %v3705, 1.442695
        %v3761 = vpow.pop %v3760
        %v3762 = vmul.f32 %v3706, 1.442695
        %v3763 = vpow.pop %v3762
        %v3764 = vmul.f32 %v3707, 1.442695
        %v3765 = vpow.pop %v3764
        %v3766 = vmul.f32 %v3708, 1.442695
        %v3767 = vpow.pop %v3766
        %v3768 = vmul.f32 %v3709, 1.442695
        %v3769 = vpow.pop %v3768
        %v3770 = vmul.f32 %v3710, 1.442695
        %v3771 = vpow.pop %v3770
        %v3772 = vmul.f32 %v3711, 1.442695
        %v3773 = vpow.pop %v3772
        %v3774 = vmul.f32 %v3712, 1.442695
        %v3775 = vpow.pop %v3774
        %v3776 = vmul.f32 %v3713, 1.442695
        %v3777 = vpow.pop %v3776
        %v3778 = vsel %vm303, %v3411, 0.0
        %3779 = vadd.xlane.f32.xlu0 %v3778
        %v3780 = vpop.xlane.xlu0 %3779
        %v3781 = vsel %vm303, %v3413, 0.0
        %3782 = vadd.xlane.f32.xlu0 %v3781
        %v3783 = vpop.xlane.xlu0 %3782
        %v3784 = vsel %vm303, %v3415, 0.0
        %3785 = vadd.xlane.f32.xlu0 %v3784
        %v3786 = vpop.xlane.xlu0 %3785
        %v3787 = vsel %vm303, %v3417, 0.0
        %3788 = vadd.xlane.f32.xlu0 %v3787
        %v3789 = vpop.xlane.xlu0 %3788
        %v3790 = vsel %vm303, %v3419, 0.0
        %3791 = vadd.xlane.f32.xlu0 %v3790
        %v3792 = vpop.xlane.xlu0 %3791
        %v3793 = vsel %vm303, %v3421, 0.0
        %3794 = vadd.xlane.f32.xlu0 %v3793
        %v3795 = vpop.xlane.xlu0 %3794
        %v3796 = vsel %vm303, %v3423, 0.0
        %3797 = vadd.xlane.f32.xlu0 %v3796
        %v3798 = vpop.xlane.xlu0 %3797
        %v3799 = vsel %vm303, %v3425, 0.0
        %3800 = vadd.xlane.f32.xlu0 %v3799
        %v3801 = vpop.xlane.xlu0 %3800
        %v3802 = vsel %vm303, %v3427, 0.0
        %3803 = vadd.xlane.f32.xlu0 %v3802
        %v3804 = vpop.xlane.xlu0 %3803
        %v3805 = vsel %vm303, %v3429, 0.0
        %3806 = vadd.xlane.f32.xlu0 %v3805
        %v3807 = vpop.xlane.xlu0 %3806
        %v3808 = vsel %vm303, %v3431, 0.0
        %3809 = vadd.xlane.f32.xlu0 %v3808
        %v3810 = vpop.xlane.xlu0 %3809
        %v3811 = vsel %vm303, %v3433, 0.0
        %3812 = vadd.xlane.f32.xlu0 %v3811
        %v3813 = vpop.xlane.xlu0 %3812
        %v3814 = vsel %vm303, %v3435, 0.0
        %3815 = vadd.xlane.f32.xlu0 %v3814
        %v3816 = vpop.xlane.xlu0 %3815
        %v3817 = vsel %vm303, %v3437, 0.0
        %3818 = vadd.xlane.f32.xlu0 %v3817
        %v3819 = vpop.xlane.xlu0 %3818
        %v3820 = vsel %vm303, %v3439, 0.0
        %3821 = vadd.xlane.f32.xlu0 %v3820
        %v3822 = vpop.xlane.xlu0 %3821
        %v3823 = vsel %vm303, %v3441, 0.0
        %3824 = vadd.xlane.f32.xlu0 %v3823
        %v3825 = vpop.xlane.xlu0 %3824
        %v3826 = vsel %vm303, %v3443, 0.0
        %3827 = vadd.xlane.f32.xlu0 %v3826
        %v3828 = vpop.xlane.xlu0 %3827
        %v3829 = vsel %vm303, %v3445, 0.0
        %3830 = vadd.xlane.f32.xlu0 %v3829
        %v3831 = vpop.xlane.xlu0 %3830
        %v3832 = vsel %vm303, %v3447, 0.0
        %3833 = vadd.xlane.f32.xlu0 %v3832
        %v3834 = vpop.xlane.xlu0 %3833
        %v3835 = vsel %vm303, %v3449, 0.0
        %3836 = vadd.xlane.f32.xlu0 %v3835
        %v3837 = vpop.xlane.xlu0 %3836
        %v3838 = vsel %vm303, %v3451, 0.0
        %3839 = vadd.xlane.f32.xlu0 %v3838
        %v3840 = vpop.xlane.xlu0 %3839
        %v3841 = vsel %vm303, %v3453, 0.0
        %3842 = vadd.xlane.f32.xlu0 %v3841
        %v3843 = vpop.xlane.xlu0 %3842
        %v3844 = vsel %vm303, %v3455, 0.0
        %3845 = vadd.xlane.f32.xlu0 %v3844
        %v3846 = vpop.xlane.xlu0 %3845
        %v3847 = vsel %vm303, %v3457, 0.0
        %3848 = vadd.xlane.f32.xlu0 %v3847
        %v3849 = vpop.xlane.xlu0 %3848
        %v3850 = vsel %vm303, %v3459, 0.0
        %3851 = vadd.xlane.f32.xlu0 %v3850
        %v3852 = vpop.xlane.xlu0 %3851
        %v3853 = vsel %vm303, %v3461, 0.0
        %3854 = vadd.xlane.f32.xlu0 %v3853
        %v3855 = vpop.xlane.xlu0 %3854
        %v3856 = vsel %vm303, %v3463, 0.0
        %3857 = vadd.xlane.f32.xlu0 %v3856
        %v3858 = vpop.xlane.xlu0 %3857
        %v3859 = vsel %vm303, %v3465, 0.0
        %3860 = vadd.xlane.f32.xlu0 %v3859
        %v3861 = vpop.xlane.xlu0 %3860
        %v3862 = vsel %vm303, %v3467, 0.0
        %3863 = vadd.xlane.f32.xlu0 %v3862
        %v3864 = vpop.xlane.xlu0 %3863
        %v3865 = vsel %vm303, %v3469, 0.0
        %3866 = vadd.xlane.f32.xlu0 %v3865
        %v3867 = vpop.xlane.xlu0 %3866
        %v3868 = vsel %vm303, %v3471, 0.0
        %3869 = vadd.xlane.f32.xlu0 %v3868
        %v3870 = vpop.xlane.xlu0 %3869
        %v3871 = vsel %vm303, %v3473, 0.0
        %3872 = vadd.xlane.f32.xlu0 %v3871
        %v3873 = vpop.xlane.xlu0 %3872
        %v3874 = vsel %vm303, %v3715, 0.0
        %3875 = vadd.xlane.f32.xlu0 %v3874
        %v3876 = vpop.xlane.xlu0 %3875
        %v3877 = vsel %vm303, %v3717, 0.0
        %3878 = vadd.xlane.f32.xlu0 %v3877
        %v3879 = vpop.xlane.xlu0 %3878
        %v3880 = vsel %vm303, %v3719, 0.0
        %3881 = vadd.xlane.f32.xlu0 %v3880
        %v3882 = vpop.xlane.xlu0 %3881
        %v3883 = vsel %vm303, %v3721, 0.0
        %3884 = vadd.xlane.f32.xlu0 %v3883
        %v3885 = vpop.xlane.xlu0 %3884
        %v3886 = vsel %vm303, %v3723, 0.0
        %3887 = vadd.xlane.f32.xlu0 %v3886
        %v3888 = vpop.xlane.xlu0 %3887
        %v3889 = vsel %vm303, %v3725, 0.0
        %3890 = vadd.xlane.f32.xlu0 %v3889
        %v3891 = vpop.xlane.xlu0 %3890
        %v3892 = vsel %vm303, %v3727, 0.0
        %3893 = vadd.xlane.f32.xlu0 %v3892
        %v3894 = vpop.xlane.xlu0 %3893
        %v3895 = vsel %vm303, %v3729, 0.0
        %3896 = vadd.xlane.f32.xlu0 %v3895
        %v3897 = vpop.xlane.xlu0 %3896
        %v3898 = vsel %vm303, %v3731, 0.0
        %3899 = vadd.xlane.f32.xlu0 %v3898
        %v3900 = vpop.xlane.xlu0 %3899
        %v3901 = vsel %vm303, %v3733, 0.0
        %3902 = vadd.xlane.f32.xlu0 %v3901
        %v3903 = vpop.xlane.xlu0 %3902
        %v3904 = vsel %vm303, %v3735, 0.0
        %3905 = vadd.xlane.f32.xlu0 %v3904
        %v3906 = vpop.xlane.xlu0 %3905
        %v3907 = vsel %vm303, %v3737, 0.0
        %3908 = vadd.xlane.f32.xlu0 %v3907
        %v3909 = vpop.xlane.xlu0 %3908
        %v3910 = vsel %vm303, %v3739, 0.0
        %3911 = vadd.xlane.f32.xlu0 %v3910
        %v3912 = vpop.xlane.xlu0 %3911
        %v3913 = vsel %vm303, %v3741, 0.0
        %3914 = vadd.xlane.f32.xlu0 %v3913
        %v3915 = vpop.xlane.xlu0 %3914
        %v3916 = vsel %vm303, %v3743, 0.0
        %3917 = vadd.xlane.f32.xlu0 %v3916
        %v3918 = vpop.xlane.xlu0 %3917
        %v3919 = vsel %vm303, %v3745, 0.0
        %3920 = vadd.xlane.f32.xlu0 %v3919
        %v3921 = vpop.xlane.xlu0 %3920
        %v3922 = vsel %vm303, %v3747, 0.0
        %3923 = vadd.xlane.f32.xlu0 %v3922
        %v3924 = vpop.xlane.xlu0 %3923
        %v3925 = vsel %vm303, %v3749, 0.0
        %3926 = vadd.xlane.f32.xlu0 %v3925
        %v3927 = vpop.xlane.xlu0 %3926
        %v3928 = vsel %vm303, %v3751, 0.0
        %3929 = vadd.xlane.f32.xlu0 %v3928
        %v3930 = vpop.xlane.xlu0 %3929
        %v3931 = vsel %vm303, %v3753, 0.0
        %3932 = vadd.xlane.f32.xlu0 %v3931
        %v3933 = vpop.xlane.xlu0 %3932
        %v3934 = vsel %vm303, %v3755, 0.0
        %3935 = vadd.xlane.f32.xlu0 %v3934
        %v3936 = vpop.xlane.xlu0 %3935
        %v3937 = vsel %vm303, %v3757, 0.0
        %3938 = vadd.xlane.f32.xlu0 %v3937
        %v3939 = vpop.xlane.xlu0 %3938
        %v3940 = vsel %vm303, %v3759, 0.0
        %3941 = vadd.xlane.f32.xlu0 %v3940
        %v3942 = vpop.xlane.xlu0 %3941
        %v3943 = vsel %vm303, %v3761, 0.0
        %3944 = vadd.xlane.f32.xlu0 %v3943
        %v3945 = vpop.xlane.xlu0 %3944
        %v3946 = vsel %vm303, %v3763, 0.0
        %3947 = vadd.xlane.f32.xlu0 %v3946
        %v3948 = vpop.xlane.xlu0 %3947
        %v3949 = vsel %vm303, %v3765, 0.0
        %3950 = vadd.xlane.f32.xlu0 %v3949
        %v3951 = vpop.xlane.xlu0 %3950
        %v3952 = vsel %vm303, %v3767, 0.0
        %3953 = vadd.xlane.f32.xlu0 %v3952
        %v3954 = vpop.xlane.xlu0 %3953
        %v3955 = vsel %vm303, %v3769, 0.0
        %3956 = vadd.xlane.f32.xlu0 %v3955
        %v3957 = vpop.xlane.xlu0 %3956
        %v3958 = vsel %vm303, %v3771, 0.0
        %3959 = vadd.xlane.f32.xlu0 %v3958
        %v3960 = vpop.xlane.xlu0 %3959
        %v3961 = vsel %vm303, %v3773, 0.0
        %3962 = vadd.xlane.f32.xlu0 %v3961
        %v3963 = vpop.xlane.xlu0 %3962
        %v3964 = vsel %vm303, %v3775, 0.0
        %3965 = vadd.xlane.f32.xlu0 %v3964
        %v3966 = vpop.xlane.xlu0 %3965
        %v3967 = vsel %vm303, %v3777, 0.0
        %3968 = vadd.xlane.f32.xlu0 %v3967
        %v3969 = vpop.xlane.xlu0 %3968
        %v4002 = vperm.slane %v3876, %v2480
        %v4003 = vperm.slane %v3879, %v2744
        %v4004 = vsel %vm2746, %v4003, %v4002
        %v4005 = vperm.slane %v3882, %v2480
        %v4006 = vperm.slane %v3885, %v2744
        %v4007 = vsel %vm2746, %v4006, %v4005
        %v4008 = vperm.slane %v3888, %v2480
        %v4009 = vperm.slane %v3891, %v2744
        %v4010 = vsel %vm2746, %v4009, %v4008
        %v4011 = vperm.slane %v3894, %v2480
        %v4012 = vperm.slane %v3897, %v2744
        %v4013 = vsel %vm2746, %v4012, %v4011
        %v4014 = vperm.slane %v3900, %v2480
        %v4015 = vperm.slane %v3903, %v2744
        %v4016 = vsel %vm2746, %v4015, %v4014
        %v4017 = vperm.slane %v3906, %v2480
        %v4018 = vperm.slane %v3909, %v2744
        %v4019 = vsel %vm2746, %v4018, %v4017
        %v4020 = vperm.slane %v3912, %v2480
        %v4021 = vperm.slane %v3915, %v2744
        %v4022 = vsel %vm2746, %v4021, %v4020
        %v4023 = vperm.slane %v3918, %v2480
        %v4024 = vperm.slane %v3921, %v2744
        %v4025 = vsel %vm2746, %v4024, %v4023
        %v4026 = vperm.slane %v3924, %v2480
        %v4027 = vperm.slane %v3927, %v2744
        %v4028 = vsel %vm2746, %v4027, %v4026
        %v4029 = vperm.slane %v3930, %v2480
        %v4030 = vperm.slane %v3933, %v2744
        %v4031 = vsel %vm2746, %v4030, %v4029
        %v4032 = vperm.slane %v3936, %v2480
        %v4033 = vperm.slane %v3939, %v2744
        %v4034 = vsel %vm2746, %v4033, %v4032
        %v4035 = vperm.slane %v3942, %v2480
        %v4036 = vperm.slane %v3945, %v2744
        %v4037 = vsel %vm2746, %v4036, %v4035
        %v4038 = vperm.slane %v3948, %v2480
        %v4039 = vperm.slane %v3951, %v2744
        %v4040 = vsel %vm2746, %v4039, %v4038
        %v4041 = vperm.slane %v3954, %v2480
        %v4042 = vperm.slane %v3957, %v2744
        %v4043 = vsel %vm2746, %v4042, %v4041
        %v4044 = vperm.slane %v3960, %v2480
        %v4045 = vperm.slane %v3963, %v2744
        %v4046 = vsel %vm2746, %v4045, %v4044
        %v4047 = vperm.slane %v3966, %v2480
        %v4048 = vperm.slane %v3969, %v2744
        %v4049 = vsel %vm2746, %v4048, %v4047
        %v4050 = vsel %vm2793, %v4007, %v4004
        %v4051 = vsel %vm2795, %v4010, %v4050
        %v4052 = vsel %vm2797, %v4013, %v4051
        %v4053 = vsel %vm2799, %v4016, %v4052
        %v4054 = vsel %vm2801, %v4019, %v4053
        %v4055 = vsel %vm2803, %v4022, %v4054
        %v4056 = vsel %vm2805, %v4025, %v4055
        %v4057 = vsel %vm2793, %v4031, %v4028
        %v4058 = vsel %vm2795, %v4034, %v4057
        %v4059 = vsel %vm2797, %v4037, %v4058
        %v4060 = vsel %vm2799, %v4040, %v4059
        %v4061 = vsel %vm2801, %v4043, %v4060
        %v4062 = vsel %vm2803, %v4046, %v4061
        %v4063 = vsel %vm2805, %v4049, %v4062
        %4066 = vxpose.xlu0.b32.start [1/16] %v4056, 128
        %4067 = vxpose.xlu0.b32.cont [2/16] %v4063, 128
        %4068 = vxpose.xlu0.b32.cont [3/16] 0.0, 128
        %4069 = vxpose.xlu0.b32.cont [4/16] 0.0, 128
        %4070 = vxpose.xlu0.b32.cont [5/16] 0.0, 128
        %4071 = vxpose.xlu0.b32.cont [6/16] 0.0, 128
        %4072 = vxpose.xlu0.b32.cont [7/16] 0.0, 128
        %4073 = vxpose.xlu0.b32.cont [8/16] 0.0, 128
        %4074 = vxpose.xlu0.b32.cont [9/16] 0.0, 128
        %4075 = vxpose.xlu0.b32.cont [10/16] 0.0, 128
        %4076 = vxpose.xlu0.b32.cont [11/16] 0.0, 128
        %4077 = vxpose.xlu0.b32.cont [12/16] 0.0, 128
        %4078 = vxpose.xlu0.b32.cont [13/16] 0.0, 128
        %4079 = vxpose.xlu0.b32.cont [14/16] 0.0, 128
        %4080 = vxpose.xlu0.b32.cont [15/16] 0.0, 128
        %4081 = vxpose.xlu0.b32.end [16/16] 0.0, 128
        %v4082 = vpop.trf.xlu0
        %v4083 = vpop.trf.xlu0
        %v4084 = vpop.trf.xlu0
        %v4085 = vpop.trf.xlu0
        %v4086 = vpop.trf.xlu0
        %v4087 = vpop.trf.xlu0
        %v4088 = vpop.trf.xlu0
        %v4089 = vpop.trf.xlu0
        %v4090 = vpop.trf.xlu0
        %v4091 = vpop.trf.xlu0
        %v4092 = vpop.trf.xlu0
        %v4093 = vpop.trf.xlu0
        %v4094 = vpop.trf.xlu0
        %v4095 = vpop.trf.xlu0
        %v4096 = vpop.trf.xlu0
        %v4097 = vpop.trf.xlu0
        %v4100 = vperm.slane %v4082, 0
        %v4101 = vlaneseq
        %v4102 = vshrl.u32 %v4101, 7
        %4104 = vset.pattern.permute.xlu0 %v4102
        %4105 = vperm.xlu0 %4104, %v4100
        %v4106 = vpop.permute.xlu0 %4105
        %v4107 = vlaneseq
        %v4108 = vshrl.u32 %v4107, 7
        %v4109 = vadd.s32 %v4108, 8
        %4110 = vset.pattern.permute.xlu0 %v4109
        %4111 = vperm.xlu0 %4110, %v4100
        %v4112 = vpop.permute.xlu0 %4111
        %v4113 = vperm.slane %v4082, 1
        %v4114 = vlaneseq
        %v4115 = vshrl.u32 %v4114, 7
        %4117 = vset.pattern.permute.xlu0 %v4115
        %4118 = vperm.xlu0 %4117, %v4113
        %v4119 = vpop.permute.xlu0 %4118
        %v4120 = vlaneseq
        %v4121 = vshrl.u32 %v4120, 7
        %v4122 = vadd.s32 %v4121, 8
        %4123 = vset.pattern.permute.xlu0 %v4122
        %4124 = vperm.xlu0 %4123, %v4113
        %v4125 = vpop.permute.xlu0 %4124
        %v4126 = vperm.slane %v4082, 2
        %v4127 = vlaneseq
        %v4128 = vshrl.u32 %v4127, 7
        %4130 = vset.pattern.permute.xlu0 %v4128
        %4131 = vperm.xlu0 %4130, %v4126
        %v4132 = vpop.permute.xlu0 %4131
        %v4133 = vlaneseq
        %v4134 = vshrl.u32 %v4133, 7
        %v4135 = vadd.s32 %v4134, 8
        %4136 = vset.pattern.permute.xlu0 %v4135
        %4137 = vperm.xlu0 %4136, %v4126
        %v4138 = vpop.permute.xlu0 %4137
        %v4139 = vperm.slane %v4082, 3
        %v4140 = vlaneseq
        %v4141 = vshrl.u32 %v4140, 7
        %4143 = vset.pattern.permute.xlu0 %v4141
        %4144 = vperm.xlu0 %4143, %v4139
        %v4145 = vpop.permute.xlu0 %4144
        %v4146 = vlaneseq
        %v4147 = vshrl.u32 %v4146, 7
        %v4148 = vadd.s32 %v4147, 8
        %4149 = vset.pattern.permute.xlu0 %v4148
        %4150 = vperm.xlu0 %4149, %v4139
        %v4151 = vpop.permute.xlu0 %4150
        %v4152 = vperm.slane %v4082, 4
        %v4153 = vlaneseq
        %v4154 = vshrl.u32 %v4153, 7
        %4156 = vset.pattern.permute.xlu0 %v4154
        %4157 = vperm.xlu0 %4156, %v4152
        %v4158 = vpop.permute.xlu0 %4157
        %v4159 = vlaneseq
        %v4160 = vshrl.u32 %v4159, 7
        %v4161 = vadd.s32 %v4160, 8
        %4162 = vset.pattern.permute.xlu0 %v4161
        %4163 = vperm.xlu0 %4162, %v4152
        %v4164 = vpop.permute.xlu0 %4163
        %v4165 = vperm.slane %v4082, 5
        %v4166 = vlaneseq
        %v4167 = vshrl.u32 %v4166, 7
        %4169 = vset.pattern.permute.xlu0 %v4167
        %4170 = vperm.xlu0 %4169, %v4165
        %v4171 = vpop.permute.xlu0 %4170
        %v4172 = vlaneseq
        %v4173 = vshrl.u32 %v4172, 7
        %v4174 = vadd.s32 %v4173, 8
        %4175 = vset.pattern.permute.xlu0 %v4174
        %4176 = vperm.xlu0 %4175, %v4165
        %v4177 = vpop.permute.xlu0 %4176
        %v4178 = vperm.slane %v4082, 6
        %v4179 = vlaneseq
        %v4180 = vshrl.u32 %v4179, 7
        %4182 = vset.pattern.permute.xlu0 %v4180
        %4183 = vperm.xlu0 %4182, %v4178
        %v4184 = vpop.permute.xlu0 %4183
        %v4185 = vlaneseq
        %v4186 = vshrl.u32 %v4185, 7
        %v4187 = vadd.s32 %v4186, 8
        %4188 = vset.pattern.permute.xlu0 %v4187
        %4189 = vperm.xlu0 %4188, %v4178
        %v4190 = vpop.permute.xlu0 %4189
        %v4191 = vperm.slane %v4082, 7
        %v4192 = vlaneseq
        %v4193 = vshrl.u32 %v4192, 7
        %4195 = vset.pattern.permute.xlu0 %v4193
        %4196 = vperm.xlu0 %4195, %v4191
        %v4197 = vpop.permute.xlu0 %4196
        %v4198 = vlaneseq
        %v4199 = vshrl.u32 %v4198, 7
        %v4200 = vadd.s32 %v4199, 8
        %4201 = vset.pattern.permute.xlu0 %v4200
        %4202 = vperm.xlu0 %4201, %v4191
        %v4203 = vpop.permute.xlu0 %4202
        %v4204 = vperm.slane %v4083, 0
        %v4205 = vlaneseq
        %v4206 = vshrl.u32 %v4205, 7
        %4208 = vset.pattern.permute.xlu0 %v4206
        %4209 = vperm.xlu0 %4208, %v4204
        %v4210 = vpop.permute.xlu0 %4209
        %v4211 = vlaneseq
        %v4212 = vshrl.u32 %v4211, 7
        %v4213 = vadd.s32 %v4212, 8
        %4214 = vset.pattern.permute.xlu0 %v4213
        %4215 = vperm.xlu0 %4214, %v4204
        %v4216 = vpop.permute.xlu0 %4215
        %v4217 = vperm.slane %v4083, 1
        %v4218 = vlaneseq
        %v4219 = vshrl.u32 %v4218, 7
        %4221 = vset.pattern.permute.xlu0 %v4219
        %4222 = vperm.xlu0 %4221, %v4217
        %v4223 = vpop.permute.xlu0 %4222
        %v4224 = vlaneseq
        %v4225 = vshrl.u32 %v4224, 7
        %v4226 = vadd.s32 %v4225, 8
        %4227 = vset.pattern.permute.xlu0 %v4226
        %4228 = vperm.xlu0 %4227, %v4217
        %v4229 = vpop.permute.xlu0 %4228
        %v4230 = vperm.slane %v4083, 2
        %v4231 = vlaneseq
        %v4232 = vshrl.u32 %v4231, 7
        %4234 = vset.pattern.permute.xlu0 %v4232
        %4235 = vperm.xlu0 %4234, %v4230
        %v4236 = vpop.permute.xlu0 %4235
        %v4237 = vlaneseq
        %v4238 = vshrl.u32 %v4237, 7
        %v4239 = vadd.s32 %v4238, 8
        %4240 = vset.pattern.permute.xlu0 %v4239
        %4241 = vperm.xlu0 %4240, %v4230
        %v4242 = vpop.permute.xlu0 %4241
        %v4243 = vperm.slane %v4083, 3
        %v4244 = vlaneseq
        %v4245 = vshrl.u32 %v4244, 7
        %4247 = vset.pattern.permute.xlu0 %v4245
        %4248 = vperm.xlu0 %4247, %v4243
        %v4249 = vpop.permute.xlu0 %4248
        %v4250 = vlaneseq
        %v4251 = vshrl.u32 %v4250, 7
        %v4252 = vadd.s32 %v4251, 8
        %4253 = vset.pattern.permute.xlu0 %v4252
        %4254 = vperm.xlu0 %4253, %v4243
        %v4255 = vpop.permute.xlu0 %4254
        %v4256 = vperm.slane %v4083, 4
        %v4257 = vlaneseq
        %v4258 = vshrl.u32 %v4257, 7
        %4260 = vset.pattern.permute.xlu0 %v4258
        %4261 = vperm.xlu0 %4260, %v4256
        %v4262 = vpop.permute.xlu0 %4261
        %v4263 = vlaneseq
        %v4264 = vshrl.u32 %v4263, 7
        %v4265 = vadd.s32 %v4264, 8
        %4266 = vset.pattern.permute.xlu0 %v4265
        %4267 = vperm.xlu0 %4266, %v4256
        %v4268 = vpop.permute.xlu0 %4267
        %v4269 = vperm.slane %v4083, 5
        %v4270 = vlaneseq
        %v4271 = vshrl.u32 %v4270, 7
        %4273 = vset.pattern.permute.xlu0 %v4271
        %4274 = vperm.xlu0 %4273, %v4269
        %v4275 = vpop.permute.xlu0 %4274
        %v4276 = vlaneseq
        %v4277 = vshrl.u32 %v4276, 7
        %v4278 = vadd.s32 %v4277, 8
        %4279 = vset.pattern.permute.xlu0 %v4278
        %4280 = vperm.xlu0 %4279, %v4269
        %v4281 = vpop.permute.xlu0 %4280
        %v4282 = vperm.slane %v4083, 6
        %v4283 = vlaneseq
        %v4284 = vshrl.u32 %v4283, 7
        %4286 = vset.pattern.permute.xlu0 %v4284
        %4287 = vperm.xlu0 %4286, %v4282
        %v4288 = vpop.permute.xlu0 %4287
        %v4289 = vlaneseq
        %v4290 = vshrl.u32 %v4289, 7
        %v4291 = vadd.s32 %v4290, 8
        %4292 = vset.pattern.permute.xlu0 %v4291
        %4293 = vperm.xlu0 %4292, %v4282
        %v4294 = vpop.permute.xlu0 %4293
        %v4295 = vperm.slane %v4083, 7
        %v4296 = vlaneseq
        %v4297 = vshrl.u32 %v4296, 7
        %4299 = vset.pattern.permute.xlu0 %v4297
        %4300 = vperm.xlu0 %4299, %v4295
        %v4301 = vpop.permute.xlu0 %4300
        %v4302 = vlaneseq
        %v4303 = vshrl.u32 %v4302, 7
        %v4304 = vadd.s32 %v4303, 8
        %4305 = vset.pattern.permute.xlu0 %v4304
        %4306 = vperm.xlu0 %4305, %v4295
        %v4307 = vpop.permute.xlu0 %4306
        %v4340 = vadd.f32 %v3780, %v4106
        %v4341 = vadd.f32 %v3783, %v4112
        %v4342 = vadd.f32 %v3786, %v4119
        %v4343 = vadd.f32 %v3789, %v4125
        %v4344 = vadd.f32 %v3792, %v4132
        %v4345 = vadd.f32 %v3795, %v4138
        %v4346 = vadd.f32 %v3798, %v4145
        %v4347 = vadd.f32 %v3801, %v4151
        %v4348 = vadd.f32 %v3804, %v4158
        %v4349 = vadd.f32 %v3807, %v4164
        %v4350 = vadd.f32 %v3810, %v4171
        %v4351 = vadd.f32 %v3813, %v4177
        %v4352 = vadd.f32 %v3816, %v4184
        %v4353 = vadd.f32 %v3819, %v4190
        %v4354 = vadd.f32 %v3822, %v4197
        %v4355 = vadd.f32 %v3825, %v4203
        %v4356 = vadd.f32 %v3828, %v4210
        %v4357 = vadd.f32 %v3831, %v4216
        %v4358 = vadd.f32 %v3834, %v4223
        %v4359 = vadd.f32 %v3837, %v4229
        %v4360 = vadd.f32 %v3840, %v4236
        %v4361 = vadd.f32 %v3843, %v4242
        %v4362 = vadd.f32 %v3846, %v4249
        %v4363 = vadd.f32 %v3849, %v4255
        %v4364 = vadd.f32 %v3852, %v4262
        %v4365 = vadd.f32 %v3855, %v4268
        %v4366 = vadd.f32 %v3858, %v4275
        %v4367 = vadd.f32 %v3861, %v4281
        %v4368 = vadd.f32 %v3864, %v4288
        %v4369 = vadd.f32 %v3867, %v4294
        %v4370 = vadd.f32 %v3870, %v4301
        %v4371 = vadd.f32 %v3873, %v4307
        %v4372 = vrcp.pop %v4340
        %v4373 = vrcp.pop %v4341
        %v4374 = vrcp.pop %v4342
        %v4375 = vrcp.pop %v4343
        %v4376 = vrcp.pop %v4344
        %v4377 = vrcp.pop %v4345
        %v4378 = vrcp.pop %v4346
        %v4379 = vrcp.pop %v4347
        %v4380 = vrcp.pop %v4348
        %v4381 = vrcp.pop %v4349
        %v4382 = vrcp.pop %v4350
        %v4383 = vrcp.pop %v4351
        %v4384 = vrcp.pop %v4352
        %v4385 = vrcp.pop %v4353
        %v4386 = vrcp.pop %v4354
        %v4387 = vrcp.pop %v4355
        %v4388 = vrcp.pop %v4356
        %v4389 = vrcp.pop %v4357
        %v4390 = vrcp.pop %v4358
        %v4391 = vrcp.pop %v4359
        %v4392 = vrcp.pop %v4360
        %v4393 = vrcp.pop %v4361
        %v4394 = vrcp.pop %v4362
        %v4395 = vrcp.pop %v4363
        %v4396 = vrcp.pop %v4364
        %v4397 = vrcp.pop %v4365
        %v4398 = vrcp.pop %v4366
        %v4399 = vrcp.pop %v4367
        %v4400 = vrcp.pop %v4368
        %v4401 = vrcp.pop %v4369
        %v4402 = vrcp.pop %v4370
        %v4403 = vrcp.pop %v4371
        %4405 = vset.pattern.permute.xlu0 0
        %4406 = vperm.xlu0 %4405, %v4372
        %v4407 = vpop.permute.xlu0 %4406
        %4410 = vset.pattern.permute.xlu0 0
        %4411 = vperm.xlu0 %4410, %v4373
        %v4412 = vpop.permute.xlu0 %4411
        %4415 = vset.pattern.permute.xlu0 0
        %4416 = vperm.xlu0 %4415, %v4374
        %v4417 = vpop.permute.xlu0 %4416
        %4420 = vset.pattern.permute.xlu0 0
        %4421 = vperm.xlu0 %4420, %v4375
        %v4422 = vpop.permute.xlu0 %4421
        %4425 = vset.pattern.permute.xlu0 0
        %4426 = vperm.xlu0 %4425, %v4376
        %v4427 = vpop.permute.xlu0 %4426
        %4430 = vset.pattern.permute.xlu0 0
        %4431 = vperm.xlu0 %4430, %v4377
        %v4432 = vpop.permute.xlu0 %4431
        %4435 = vset.pattern.permute.xlu0 0
        %4436 = vperm.xlu0 %4435, %v4378
        %v4437 = vpop.permute.xlu0 %4436
        %4440 = vset.pattern.permute.xlu0 0
        %4441 = vperm.xlu0 %4440, %v4379
        %v4442 = vpop.permute.xlu0 %4441
        %4445 = vset.pattern.permute.xlu0 0
        %4446 = vperm.xlu0 %4445, %v4380
        %v4447 = vpop.permute.xlu0 %4446
        %4450 = vset.pattern.permute.xlu0 0
        %4451 = vperm.xlu0 %4450, %v4381
        %v4452 = vpop.permute.xlu0 %4451
        %4455 = vset.pattern.permute.xlu0 0
        %4456 = vperm.xlu0 %4455, %v4382
        %v4457 = vpop.permute.xlu0 %4456
        %4460 = vset.pattern.permute.xlu0 0
        %4461 = vperm.xlu0 %4460, %v4383
        %v4462 = vpop.permute.xlu0 %4461
        %4465 = vset.pattern.permute.xlu0 0
        %4466 = vperm.xlu0 %4465, %v4384
        %v4467 = vpop.permute.xlu0 %4466
        %4470 = vset.pattern.permute.xlu0 0
        %4471 = vperm.xlu0 %4470, %v4385
        %v4472 = vpop.permute.xlu0 %4471
        %4475 = vset.pattern.permute.xlu0 0
        %4476 = vperm.xlu0 %4475, %v4386
        %v4477 = vpop.permute.xlu0 %4476
        %4480 = vset.pattern.permute.xlu0 0
        %4481 = vperm.xlu0 %4480, %v4387
        %v4482 = vpop.permute.xlu0 %4481
        %4485 = vset.pattern.permute.xlu0 0
        %4486 = vperm.xlu0 %4485, %v4388
        %v4487 = vpop.permute.xlu0 %4486
        %4490 = vset.pattern.permute.xlu0 0
        %4491 = vperm.xlu0 %4490, %v4389
        %v4492 = vpop.permute.xlu0 %4491
        %4495 = vset.pattern.permute.xlu0 0
        %4496 = vperm.xlu0 %4495, %v4390
        %v4497 = vpop.permute.xlu0 %4496
        %4500 = vset.pattern.permute.xlu0 0
        %4501 = vperm.xlu0 %4500, %v4391
        %v4502 = vpop.permute.xlu0 %4501
        %4505 = vset.pattern.permute.xlu0 0
        %4506 = vperm.xlu0 %4505, %v4392
        %v4507 = vpop.permute.xlu0 %4506
        %4510 = vset.pattern.permute.xlu0 0
        %4511 = vperm.xlu0 %4510, %v4393
        %v4512 = vpop.permute.xlu0 %4511
        %4515 = vset.pattern.permute.xlu0 0
        %4516 = vperm.xlu0 %4515, %v4394
        %v4517 = vpop.permute.xlu0 %4516
        %4520 = vset.pattern.permute.xlu0 0
        %4521 = vperm.xlu0 %4520, %v4395
        %v4522 = vpop.permute.xlu0 %4521
        %4525 = vset.pattern.permute.xlu0 0
        %4526 = vperm.xlu0 %4525, %v4396
        %v4527 = vpop.permute.xlu0 %4526
        %4530 = vset.pattern.permute.xlu0 0
        %4531 = vperm.xlu0 %4530, %v4397
        %v4532 = vpop.permute.xlu0 %4531
        %4535 = vset.pattern.permute.xlu0 0
        %4536 = vperm.xlu0 %4535, %v4398
        %v4537 = vpop.permute.xlu0 %4536
        %4540 = vset.pattern.permute.xlu0 0
        %4541 = vperm.xlu0 %4540, %v4399
        %v4542 = vpop.permute.xlu0 %4541
        %4545 = vset.pattern.permute.xlu0 0
        %4546 = vperm.xlu0 %4545, %v4400
        %v4547 = vpop.permute.xlu0 %4546
        %4550 = vset.pattern.permute.xlu0 0
        %4551 = vperm.xlu0 %4550, %v4401
        %v4552 = vpop.permute.xlu0 %4551
        %4555 = vset.pattern.permute.xlu0 0
        %4556 = vperm.xlu0 %4555, %v4402
        %v4557 = vpop.permute.xlu0 %4556
        %4560 = vset.pattern.permute.xlu0 0
        %4561 = vperm.xlu0 %4560, %v4403
        %v4562 = vpop.permute.xlu0 %4561
        %v4564 = vmul.f32 %v3411, %v4407
        %v4565 = vmul.f32 %v3413, %v4412
        %v4566 = vmul.f32 %v3415, %v4417
        %v4567 = vmul.f32 %v3417, %v4422
        %v4568 = vmul.f32 %v3419, %v4427
        %v4569 = vmul.f32 %v3421, %v4432
        %v4570 = vmul.f32 %v3423, %v4437
        %v4571 = vmul.f32 %v3425, %v4442
        %v4572 = vmul.f32 %v3427, %v4447
        %v4573 = vmul.f32 %v3429, %v4452
        %v4574 = vmul.f32 %v3431, %v4457
        %v4575 = vmul.f32 %v3433, %v4462
        %v4576 = vmul.f32 %v3435, %v4467
        %v4577 = vmul.f32 %v3437, %v4472
        %v4578 = vmul.f32 %v3439, %v4477
        %v4579 = vmul.f32 %v3441, %v4482
        %v4580 = vmul.f32 %v3443, %v4487
        %v4581 = vmul.f32 %v3445, %v4492
        %v4582 = vmul.f32 %v3447, %v4497
        %v4583 = vmul.f32 %v3449, %v4502
        %v4584 = vmul.f32 %v3451, %v4507
        %v4585 = vmul.f32 %v3453, %v4512
        %v4586 = vmul.f32 %v3455, %v4517
        %v4587 = vmul.f32 %v3457, %v4522
        %v4588 = vmul.f32 %v3459, %v4527
        %v4589 = vmul.f32 %v3461, %v4532
        %v4590 = vmul.f32 %v3463, %v4537
        %v4591 = vmul.f32 %v3465, %v4542
        %v4592 = vmul.f32 %v3467, %v4547
        %v4593 = vmul.f32 %v3469, %v4552
        %v4594 = vmul.f32 %v3471, %v4557
        %v4595 = vmul.f32 %v3473, %v4562
        %v4596 = vpack.c.bf16 %v4564, %v4564
        %v4597 = vpack.c.bf16 %v4565, %v4565
        %v4598 = vpack.c.bf16 %v4566, %v4566
        %v4599 = vpack.c.bf16 %v4567, %v4567
        %v4600 = vpack.c.bf16 %v4568, %v4568
        %v4601 = vpack.c.bf16 %v4569, %v4569
        %v4602 = vpack.c.bf16 %v4570, %v4570
        %v4603 = vpack.c.bf16 %v4571, %v4571
        %v4604 = vpack.c.bf16 %v4572, %v4572
        %v4605 = vpack.c.bf16 %v4573, %v4573
        %v4606 = vpack.c.bf16 %v4574, %v4574
        %v4607 = vpack.c.bf16 %v4575, %v4575
        %v4608 = vpack.c.bf16 %v4576, %v4576
        %v4609 = vpack.c.bf16 %v4577, %v4577
        %v4610 = vpack.c.bf16 %v4578, %v4578
        %v4611 = vpack.c.bf16 %v4579, %v4579
        %v4612 = vpack.c.bf16 %v4580, %v4580
        %v4613 = vpack.c.bf16 %v4581, %v4581
        %v4614 = vpack.c.bf16 %v4582, %v4582
        %v4615 = vpack.c.bf16 %v4583, %v4583
        %v4616 = vpack.c.bf16 %v4584, %v4584
        %v4617 = vpack.c.bf16 %v4585, %v4585
        %v4618 = vpack.c.bf16 %v4586, %v4586
        %v4619 = vpack.c.bf16 %v4587, %v4587
        %v4620 = vpack.c.bf16 %v4588, %v4588
        %v4621 = vpack.c.bf16 %v4589, %v4589
        %v4622 = vpack.c.bf16 %v4590, %v4590
        %v4623 = vpack.c.bf16 %v4591, %v4591
        %v4624 = vpack.c.bf16 %v4592, %v4592
        %v4625 = vpack.c.bf16 %v4593, %v4593
        %v4626 = vpack.c.bf16 %v4594, %v4594
        %v4627 = vpack.c.bf16 %v4595, %v4595
        %v4628 = vperm.slane %v4407, %v2480
        %v4629 = vperm.slane %v4412, %v2744
        %v4630 = vsel %vm2746, %v4629, %v4628
        %v4631 = vperm.slane %v4417, %v2480
        %v4632 = vperm.slane %v4422, %v2744
        %v4633 = vsel %vm2746, %v4632, %v4631
        %v4634 = vperm.slane %v4427, %v2480
        %v4635 = vperm.slane %v4432, %v2744
        %v4636 = vsel %vm2746, %v4635, %v4634
        %v4637 = vperm.slane %v4437, %v2480
        %v4638 = vperm.slane %v4442, %v2744
        %v4639 = vsel %vm2746, %v4638, %v4637
        %v4640 = vperm.slane %v4447, %v2480
        %v4641 = vperm.slane %v4452, %v2744
        %v4642 = vsel %vm2746, %v4641, %v4640
        %v4643 = vperm.slane %v4457, %v2480
        %v4644 = vperm.slane %v4462, %v2744
        %v4645 = vsel %vm2746, %v4644, %v4643
        %v4646 = vperm.slane %v4467, %v2480
        %v4647 = vperm.slane %v4472, %v2744
        %v4648 = vsel %vm2746, %v4647, %v4646
        %v4649 = vperm.slane %v4477, %v2480
        %v4650 = vperm.slane %v4482, %v2744
        %v4651 = vsel %vm2746, %v4650, %v4649
        %v4652 = vperm.slane %v4487, %v2480
        %v4653 = vperm.slane %v4492, %v2744
        %v4654 = vsel %vm2746, %v4653, %v4652
        %v4655 = vperm.slane %v4497, %v2480
        %v4656 = vperm.slane %v4502, %v2744
        %v4657 = vsel %vm2746, %v4656, %v4655
        %v4658 = vperm.slane %v4507, %v2480
        %v4659 = vperm.slane %v4512, %v2744
        %v4660 = vsel %vm2746, %v4659, %v4658
        %v4661 = vperm.slane %v4517, %v2480
        %v4662 = vperm.slane %v4522, %v2744
        %v4663 = vsel %vm2746, %v4662, %v4661
        %v4664 = vperm.slane %v4527, %v2480
        %v4665 = vperm.slane %v4532, %v2744
        %v4666 = vsel %vm2746, %v4665, %v4664
        %v4667 = vperm.slane %v4537, %v2480
        %v4668 = vperm.slane %v4542, %v2744
        %v4669 = vsel %vm2746, %v4668, %v4667
        %v4670 = vperm.slane %v4547, %v2480
        %v4671 = vperm.slane %v4552, %v2744
        %v4672 = vsel %vm2746, %v4671, %v4670
        %v4673 = vperm.slane %v4557, %v2480
        %v4674 = vperm.slane %v4562, %v2744
        %v4675 = vsel %vm2746, %v4674, %v4673
        %v4676 = vsel %vm2793, %v4633, %v4630
        %v4677 = vsel %vm2795, %v4636, %v4676
        %v4678 = vsel %vm2797, %v4639, %v4677
        %v4679 = vsel %vm2799, %v4642, %v4678
        %v4680 = vsel %vm2801, %v4645, %v4679
        %v4681 = vsel %vm2803, %v4648, %v4680
        %v4682 = vsel %vm2805, %v4651, %v4681
        %v4683 = vsel %vm2793, %v4657, %v4654
        %v4684 = vsel %vm2795, %v4660, %v4683
        %v4685 = vsel %vm2797, %v4663, %v4684
        %v4686 = vsel %vm2799, %v4666, %v4685
        %v4687 = vsel %vm2801, %v4669, %v4686
        %v4688 = vsel %vm2803, %v4672, %v4687
        %v4689 = vsel %vm2805, %v4675, %v4688
        %4692 = vxpose.xlu0.b32.start [1/16] %v4682, 128
        %4693 = vxpose.xlu0.b32.cont [2/16] %v4689, 128
        %4694 = vxpose.xlu0.b32.cont [3/16] 0.0, 128
        %4695 = vxpose.xlu0.b32.cont [4/16] 0.0, 128
        %4696 = vxpose.xlu0.b32.cont [5/16] 0.0, 128
        %4697 = vxpose.xlu0.b32.cont [6/16] 0.0, 128
        %4698 = vxpose.xlu0.b32.cont [7/16] 0.0, 128
        %4699 = vxpose.xlu0.b32.cont [8/16] 0.0, 128
        %4700 = vxpose.xlu0.b32.cont [9/16] 0.0, 128
        %4701 = vxpose.xlu0.b32.cont [10/16] 0.0, 128
        %4702 = vxpose.xlu0.b32.cont [11/16] 0.0, 128
        %4703 = vxpose.xlu0.b32.cont [12/16] 0.0, 128
        %4704 = vxpose.xlu0.b32.cont [13/16] 0.0, 128
        %4705 = vxpose.xlu0.b32.cont [14/16] 0.0, 128
        %4706 = vxpose.xlu0.b32.cont [15/16] 0.0, 128
        %4707 = vxpose.xlu0.b32.end [16/16] 0.0, 128
        %v4708 = vpop.trf.xlu0
        %v4709 = vpop.trf.xlu0
        %v4710 = vpop.trf.xlu0
        %v4711 = vpop.trf.xlu0
        %v4712 = vpop.trf.xlu0
        %v4713 = vpop.trf.xlu0
        %v4714 = vpop.trf.xlu0
        %v4715 = vpop.trf.xlu0
        %v4716 = vpop.trf.xlu0
        %v4717 = vpop.trf.xlu0
        %v4718 = vpop.trf.xlu0
        %v4719 = vpop.trf.xlu0
        %v4720 = vpop.trf.xlu0
        %v4721 = vpop.trf.xlu0
        %v4722 = vpop.trf.xlu0
        %v4723 = vpop.trf.xlu0
        %v4724 = vperm.slane %v4708, 0
        %v4725 = vlaneseq
        %v4726 = vshrl.u32 %v4725, 7
        %4728 = vset.pattern.permute.xlu0 %v4726
        %4729 = vperm.xlu0 %4728, %v4724
        %v4730 = vpop.permute.xlu0 %4729
        %v4731 = vlaneseq
        %v4732 = vshrl.u32 %v4731, 7
        %v4733 = vadd.s32 %v4732, 8
        %4734 = vset.pattern.permute.xlu0 %v4733
        %4735 = vperm.xlu0 %4734, %v4724
        %v4736 = vpop.permute.xlu0 %4735
        %v4737 = vperm.slane %v4708, 1
        %v4738 = vlaneseq
        %v4739 = vshrl.u32 %v4738, 7
        %4741 = vset.pattern.permute.xlu0 %v4739
        %4742 = vperm.xlu0 %4741, %v4737
        %v4743 = vpop.permute.xlu0 %4742
        %v4744 = vlaneseq
        %v4745 = vshrl.u32 %v4744, 7
        %v4746 = vadd.s32 %v4745, 8
        %4747 = vset.pattern.permute.xlu0 %v4746
        %4748 = vperm.xlu0 %4747, %v4737
        %v4749 = vpop.permute.xlu0 %4748
        %v4750 = vperm.slane %v4708, 2
        %v4751 = vlaneseq
        %v4752 = vshrl.u32 %v4751, 7
        %4754 = vset.pattern.permute.xlu0 %v4752
        %4755 = vperm.xlu0 %4754, %v4750
        %v4756 = vpop.permute.xlu0 %4755
        %v4757 = vlaneseq
        %v4758 = vshrl.u32 %v4757, 7
        %v4759 = vadd.s32 %v4758, 8
        %4760 = vset.pattern.permute.xlu0 %v4759
        %4761 = vperm.xlu0 %4760, %v4750
        %v4762 = vpop.permute.xlu0 %4761
        %v4763 = vperm.slane %v4708, 3
        %v4764 = vlaneseq
        %v4765 = vshrl.u32 %v4764, 7
        %4767 = vset.pattern.permute.xlu0 %v4765
        %4768 = vperm.xlu0 %4767, %v4763
        %v4769 = vpop.permute.xlu0 %4768
        %v4770 = vlaneseq
        %v4771 = vshrl.u32 %v4770, 7
        %v4772 = vadd.s32 %v4771, 8
        %4773 = vset.pattern.permute.xlu0 %v4772
        %4774 = vperm.xlu0 %4773, %v4763
        %v4775 = vpop.permute.xlu0 %4774
        %v4776 = vperm.slane %v4708, 4
        %v4777 = vlaneseq
        %v4778 = vshrl.u32 %v4777, 7
        %4780 = vset.pattern.permute.xlu0 %v4778
        %4781 = vperm.xlu0 %4780, %v4776
        %v4782 = vpop.permute.xlu0 %4781
        %v4783 = vlaneseq
        %v4784 = vshrl.u32 %v4783, 7
        %v4785 = vadd.s32 %v4784, 8
        %4786 = vset.pattern.permute.xlu0 %v4785
        %4787 = vperm.xlu0 %4786, %v4776
        %v4788 = vpop.permute.xlu0 %4787
        %v4789 = vperm.slane %v4708, 5
        %v4790 = vlaneseq
        %v4791 = vshrl.u32 %v4790, 7
        %4793 = vset.pattern.permute.xlu0 %v4791
        %4794 = vperm.xlu0 %4793, %v4789
        %v4795 = vpop.permute.xlu0 %4794
        %v4796 = vlaneseq
        %v4797 = vshrl.u32 %v4796, 7
        %v4798 = vadd.s32 %v4797, 8
        %4799 = vset.pattern.permute.xlu0 %v4798
        %4800 = vperm.xlu0 %4799, %v4789
        %v4801 = vpop.permute.xlu0 %4800
        %v4802 = vperm.slane %v4708, 6
        %v4803 = vlaneseq
        %v4804 = vshrl.u32 %v4803, 7
        %4806 = vset.pattern.permute.xlu0 %v4804
        %4807 = vperm.xlu0 %4806, %v4802
        %v4808 = vpop.permute.xlu0 %4807
        %v4809 = vlaneseq
        %v4810 = vshrl.u32 %v4809, 7
        %v4811 = vadd.s32 %v4810, 8
        %4812 = vset.pattern.permute.xlu0 %v4811
        %4813 = vperm.xlu0 %4812, %v4802
        %v4814 = vpop.permute.xlu0 %4813
        %v4815 = vperm.slane %v4708, 7
        %v4816 = vlaneseq
        %v4817 = vshrl.u32 %v4816, 7
        %4819 = vset.pattern.permute.xlu0 %v4817
        %4820 = vperm.xlu0 %4819, %v4815
        %v4821 = vpop.permute.xlu0 %4820
        %v4822 = vlaneseq
        %v4823 = vshrl.u32 %v4822, 7
        %v4824 = vadd.s32 %v4823, 8
        %4825 = vset.pattern.permute.xlu0 %v4824
        %4826 = vperm.xlu0 %4825, %v4815
        %v4827 = vpop.permute.xlu0 %4826
        %v4828 = vperm.slane %v4709, 0
        %v4829 = vlaneseq
        %v4830 = vshrl.u32 %v4829, 7
        %4832 = vset.pattern.permute.xlu0 %v4830
        %4833 = vperm.xlu0 %4832, %v4828
        %v4834 = vpop.permute.xlu0 %4833
        %v4835 = vlaneseq
        %v4836 = vshrl.u32 %v4835, 7
        %v4837 = vadd.s32 %v4836, 8
        %4838 = vset.pattern.permute.xlu0 %v4837
        %4839 = vperm.xlu0 %4838, %v4828
        %v4840 = vpop.permute.xlu0 %4839
        %v4841 = vperm.slane %v4709, 1
        %v4842 = vlaneseq
        %v4843 = vshrl.u32 %v4842, 7
        %4845 = vset.pattern.permute.xlu0 %v4843
        %4846 = vperm.xlu0 %4845, %v4841
        %v4847 = vpop.permute.xlu0 %4846
        %v4848 = vlaneseq
        %v4849 = vshrl.u32 %v4848, 7
        %v4850 = vadd.s32 %v4849, 8
        %4851 = vset.pattern.permute.xlu0 %v4850
        %4852 = vperm.xlu0 %4851, %v4841
        %v4853 = vpop.permute.xlu0 %4852
        %v4854 = vperm.slane %v4709, 2
        %v4855 = vlaneseq
        %v4856 = vshrl.u32 %v4855, 7
        %4858 = vset.pattern.permute.xlu0 %v4856
        %4859 = vperm.xlu0 %4858, %v4854
        %v4860 = vpop.permute.xlu0 %4859
        %v4861 = vlaneseq
        %v4862 = vshrl.u32 %v4861, 7
        %v4863 = vadd.s32 %v4862, 8
        %4864 = vset.pattern.permute.xlu0 %v4863
        %4865 = vperm.xlu0 %4864, %v4854
        %v4866 = vpop.permute.xlu0 %4865
        %v4867 = vperm.slane %v4709, 3
        %v4868 = vlaneseq
        %v4869 = vshrl.u32 %v4868, 7
        %4871 = vset.pattern.permute.xlu0 %v4869
        %4872 = vperm.xlu0 %4871, %v4867
        %v4873 = vpop.permute.xlu0 %4872
        %v4874 = vlaneseq
        %v4875 = vshrl.u32 %v4874, 7
        %v4876 = vadd.s32 %v4875, 8
        %4877 = vset.pattern.permute.xlu0 %v4876
        %4878 = vperm.xlu0 %4877, %v4867
        %v4879 = vpop.permute.xlu0 %4878
        %v4880 = vperm.slane %v4709, 4
        %v4881 = vlaneseq
        %v4882 = vshrl.u32 %v4881, 7
        %4884 = vset.pattern.permute.xlu0 %v4882
        %4885 = vperm.xlu0 %4884, %v4880
        %v4886 = vpop.permute.xlu0 %4885
        %v4887 = vlaneseq
        %v4888 = vshrl.u32 %v4887, 7
        %v4889 = vadd.s32 %v4888, 8
        %4890 = vset.pattern.permute.xlu0 %v4889
        %4891 = vperm.xlu0 %4890, %v4880
        %v4892 = vpop.permute.xlu0 %4891
        %v4893 = vperm.slane %v4709, 5
        %v4894 = vlaneseq
        %v4895 = vshrl.u32 %v4894, 7
        %4897 = vset.pattern.permute.xlu0 %v4895
        %4898 = vperm.xlu0 %4897, %v4893
        %v4899 = vpop.permute.xlu0 %4898
        %v4900 = vlaneseq
        %v4901 = vshrl.u32 %v4900, 7
        %v4902 = vadd.s32 %v4901, 8
        %4903 = vset.pattern.permute.xlu0 %v4902
        %4904 = vperm.xlu0 %4903, %v4893
        %v4905 = vpop.permute.xlu0 %4904
        %v4906 = vperm.slane %v4709, 6
        %v4907 = vlaneseq
        %v4908 = vshrl.u32 %v4907, 7
        %4910 = vset.pattern.permute.xlu0 %v4908
        %4911 = vperm.xlu0 %4910, %v4906
        %v4912 = vpop.permute.xlu0 %4911
        %v4913 = vlaneseq
        %v4914 = vshrl.u32 %v4913, 7
        %v4915 = vadd.s32 %v4914, 8
        %4916 = vset.pattern.permute.xlu0 %v4915
        %4917 = vperm.xlu0 %4916, %v4906
        %v4918 = vpop.permute.xlu0 %4917
        %v4919 = vperm.slane %v4709, 7
        %v4920 = vlaneseq
        %v4921 = vshrl.u32 %v4920, 7
        %4923 = vset.pattern.permute.xlu0 %v4921
        %4924 = vperm.xlu0 %4923, %v4919
        %v4925 = vpop.permute.xlu0 %4924
        %v4926 = vlaneseq
        %v4927 = vshrl.u32 %v4926, 7
        %v4928 = vadd.s32 %v4927, 8
        %4929 = vset.pattern.permute.xlu0 %v4928
        %4930 = vperm.xlu0 %4929, %v4919
        %v4931 = vpop.permute.xlu0 %4930
        %v4932 = vmul.f32 %v3715, %v4730
        %v4933 = vmul.f32 %v3717, %v4736
        %v4934 = vmul.f32 %v3719, %v4743
        %v4935 = vmul.f32 %v3721, %v4749
        %v4936 = vmul.f32 %v3723, %v4756
        %v4937 = vmul.f32 %v3725, %v4762
        %v4938 = vmul.f32 %v3727, %v4769
        %v4939 = vmul.f32 %v3729, %v4775
        %v4940 = vmul.f32 %v3731, %v4782
        %v4941 = vmul.f32 %v3733, %v4788
        %v4942 = vmul.f32 %v3735, %v4795
        %v4943 = vmul.f32 %v3737, %v4801
        %v4944 = vmul.f32 %v3739, %v4808
        %v4945 = vmul.f32 %v3741, %v4814
        %v4946 = vmul.f32 %v3743, %v4821
        %v4947 = vmul.f32 %v3745, %v4827
        %v4948 = vmul.f32 %v3747, %v4834
        %v4949 = vmul.f32 %v3749, %v4840
        %v4950 = vmul.f32 %v3751, %v4847
        %v4951 = vmul.f32 %v3753, %v4853
        %v4952 = vmul.f32 %v3755, %v4860
        %v4953 = vmul.f32 %v3757, %v4866
        %v4954 = vmul.f32 %v3759, %v4873
        %v4955 = vmul.f32 %v3761, %v4879
        %v4956 = vmul.f32 %v3763, %v4886
        %v4957 = vmul.f32 %v3765, %v4892
        %v4958 = vmul.f32 %v3767, %v4899
        %v4959 = vmul.f32 %v3769, %v4905
        %v4960 = vmul.f32 %v3771, %v4912
        %v4961 = vmul.f32 %v3773, %v4918
        %v4962 = vmul.f32 %v3775, %v4925
        %v4963 = vmul.f32 %v3777, %v4931
        %v4964 = vpack.c.bf16 %v4932, %v4932
        %v4965 = vpack.c.bf16 %v4933, %v4933
        %v4966 = vpack.c.bf16 %v4934, %v4934
        %v4967 = vpack.c.bf16 %v4935, %v4935
        %v4968 = vpack.c.bf16 %v4936, %v4936
        %v4969 = vpack.c.bf16 %v4937, %v4937
        %v4970 = vpack.c.bf16 %v4938, %v4938
        %v4971 = vpack.c.bf16 %v4939, %v4939
        %v4972 = vpack.c.bf16 %v4940, %v4940
        %v4973 = vpack.c.bf16 %v4941, %v4941
        %v4974 = vpack.c.bf16 %v4942, %v4942
        %v4975 = vpack.c.bf16 %v4943, %v4943
        %v4976 = vpack.c.bf16 %v4944, %v4944
        %v4977 = vpack.c.bf16 %v4945, %v4945
        %v4978 = vpack.c.bf16 %v4946, %v4946
        %v4979 = vpack.c.bf16 %v4947, %v4947
        %v4980 = vpack.c.bf16 %v4948, %v4948
        %v4981 = vpack.c.bf16 %v4949, %v4949
        %v4982 = vpack.c.bf16 %v4950, %v4950
        %v4983 = vpack.c.bf16 %v4951, %v4951
        %v4984 = vpack.c.bf16 %v4952, %v4952
        %v4985 = vpack.c.bf16 %v4953, %v4953
        %v4986 = vpack.c.bf16 %v4954, %v4954
        %v4987 = vpack.c.bf16 %v4955, %v4955
        %v4988 = vpack.c.bf16 %v4956, %v4956
        %v4989 = vpack.c.bf16 %v4957, %v4957
        %v4990 = vpack.c.bf16 %v4958, %v4958
        %v4991 = vpack.c.bf16 %v4959, %v4959
        %v4992 = vpack.c.bf16 %v4960, %v4960
        %v4993 = vpack.c.bf16 %v4961, %v4961
        %v4994 = vpack.c.bf16 %v4962, %v4962
        %v4995 = vpack.c.bf16 %v4963, %v4963
        %v4996 = vpack.c.bf16 %v540, %v540
        %v4997 = vpack.c.bf16 %v542, %v542
        %v4998 = vpack.c.bf16 %v545, %v545
        %v4999 = vpack.c.bf16 %v547, %v547
        %v5000 = vpack.c.bf16 %v550, %v550
        %v5001 = vpack.c.bf16 %v552, %v552
        %v5002 = vpack.c.bf16 %v555, %v555
        %v5003 = vpack.c.bf16 %v557, %v557
        %v5004 = vpack.c.bf16 %v560, %v560
        %v5005 = vpack.c.bf16 %v562, %v562
        %v5006 = vpack.c.bf16 %v565, %v565
        %v5007 = vpack.c.bf16 %v567, %v567
        %v5008 = vpack.c.bf16 %v570, %v570
        %v5009 = vpack.c.bf16 %v572, %v572
        %v5010 = vpack.c.bf16 %v575, %v575
        %v5011 = vpack.c.bf16 %v577, %v577
        %v5012 = vpack.c.bf16 %v580, %v580
        %v5013 = vpack.c.bf16 %v582, %v582
        %v5014 = vpack.c.bf16 %v585, %v585
        %v5015 = vpack.c.bf16 %v587, %v587
        %v5016 = vpack.c.bf16 %v590, %v590
        %v5017 = vpack.c.bf16 %v592, %v592
        %v5018 = vpack.c.bf16 %v595, %v595
        %v5019 = vpack.c.bf16 %v597, %v597
        %v5020 = vpack.c.bf16 %v600, %v600
        %v5021 = vpack.c.bf16 %v602, %v602
        %v5022 = vpack.c.bf16 %v605, %v605
        %v5023 = vpack.c.bf16 %v607, %v607
        %v5024 = vpack.c.bf16 %v610, %v610
        %v5025 = vpack.c.bf16 %v612, %v612
        %v5026 = vpack.c.bf16 %v615, %v615
        %v5027 = vpack.c.bf16 %v617, %v617
        %v5028 = vrot.slane %v550, 4
        %v5029 = vsel %vm684, %v5028, %v540
        %v5030 = vrot.slane %v540, 4
        %v5031 = vsel %vm684, %v550, %v5030
        %v5033 = vunpack.c.l.s4 1983009808
        %v5034 = vunpack.c.0.s8 %v5033
        %v5035 = vperm.slane %v5029, %v5034
        %v5037 = vunpack.c.l.s4 1983009808
        %v5038 = vunpack.c.0.s8 %v5037
        %v5039 = vperm.slane %v5031, %v5038
        %v5040 = vrot.slane %v555, 4
        %v5041 = vsel %vm684, %v5040, %v545
        %v5042 = vrot.slane %v545, 4
        %v5043 = vsel %vm684, %v555, %v5042
        %v5045 = vunpack.c.l.s4 1983009808
        %v5046 = vunpack.c.0.s8 %v5045
        %v5047 = vperm.slane %v5041, %v5046
        %v5049 = vunpack.c.l.s4 1983009808
        %v5050 = vunpack.c.0.s8 %v5049
        %v5051 = vperm.slane %v5043, %v5050
        %v5052 = vrot.slane %v570, 4
        %v5053 = vsel %vm684, %v5052, %v560
        %v5054 = vrot.slane %v560, 4
        %v5055 = vsel %vm684, %v570, %v5054
        %v5057 = vunpack.c.l.s4 1983009808
        %v5058 = vunpack.c.0.s8 %v5057
        %v5059 = vperm.slane %v5053, %v5058
        %v5061 = vunpack.c.l.s4 1983009808
        %v5062 = vunpack.c.0.s8 %v5061
        %v5063 = vperm.slane %v5055, %v5062
        %v5064 = vrot.slane %v575, 4
        %v5065 = vsel %vm684, %v5064, %v565
        %v5066 = vrot.slane %v565, 4
        %v5067 = vsel %vm684, %v575, %v5066
        %v5069 = vunpack.c.l.s4 1983009808
        %v5070 = vunpack.c.0.s8 %v5069
        %v5071 = vperm.slane %v5065, %v5070
        %v5073 = vunpack.c.l.s4 1983009808
        %v5074 = vunpack.c.0.s8 %v5073
        %v5075 = vperm.slane %v5067, %v5074
        %v5076 = vrot.slane %v5047, 4
        %v5077 = vsel %vm684, %v5076, %v5035
        %v5078 = vrot.slane %v5035, 4
        %v5079 = vsel %vm684, %v5047, %v5078
        %v5081 = vunpack.c.l.s4 1934713408
        %v5082 = vunpack.c.0.s8 %v5081
        %v5083 = vperm.slane %v5077, %v5082
        %v5085 = vunpack.c.l.s4 1934713408
        %v5086 = vunpack.c.0.s8 %v5085
        %v5087 = vperm.slane %v5079, %v5086
        %v5088 = vrot.slane %v5051, 4
        %v5089 = vsel %vm684, %v5088, %v5039
        %v5090 = vrot.slane %v5039, 4
        %v5091 = vsel %vm684, %v5051, %v5090
        %v5093 = vunpack.c.l.s4 1934713408
        %v5094 = vunpack.c.0.s8 %v5093
        %v5095 = vperm.slane %v5089, %v5094
        %v5097 = vunpack.c.l.s4 1934713408
        %v5098 = vunpack.c.0.s8 %v5097
        %v5099 = vperm.slane %v5091, %v5098
        %v5100 = vrot.slane %v5071, 4
        %v5101 = vsel %vm684, %v5100, %v5059
        %v5102 = vrot.slane %v5059, 4
        %v5103 = vsel %vm684, %v5071, %v5102
        %v5105 = vunpack.c.l.s4 1934713408
        %v5106 = vunpack.c.0.s8 %v5105
        %v5107 = vperm.slane %v5101, %v5106
        %v5109 = vunpack.c.l.s4 1934713408
        %v5110 = vunpack.c.0.s8 %v5109
        %v5111 = vperm.slane %v5103, %v5110
        %v5112 = vrot.slane %v5075, 4
        %v5113 = vsel %vm684, %v5112, %v5063
        %v5114 = vrot.slane %v5063, 4
        %v5115 = vsel %vm684, %v5075, %v5114
        %v5117 = vunpack.c.l.s4 1934713408
        %v5118 = vunpack.c.0.s8 %v5117
        %v5119 = vperm.slane %v5113, %v5118
        %v5121 = vunpack.c.l.s4 1934713408
        %v5122 = vunpack.c.0.s8 %v5121
        %v5123 = vperm.slane %v5115, %v5122
        %v5124 = vrot.slane %v5107, 4
        %v5125 = vsel %vm684, %v5124, %v5083
        %v5126 = vrot.slane %v5083, 4
        %v5127 = vsel %vm684, %v5107, %v5126
        %v5128 = vrot.slane %v5111, 4
        %v5129 = vsel %vm684, %v5128, %v5087
        %v5130 = vrot.slane %v5087, 4
        %v5131 = vsel %vm684, %v5111, %v5130
        %v5132 = vrot.slane %v5119, 4
        %v5133 = vsel %vm684, %v5132, %v5095
        %v5134 = vrot.slane %v5095, 4
        %v5135 = vsel %vm684, %v5119, %v5134
        %v5136 = vrot.slane %v5123, 4
        %v5137 = vsel %vm684, %v5136, %v5099
        %v5138 = vrot.slane %v5099, 4
        %v5139 = vsel %vm684, %v5123, %v5138
        %v5140 = vrot.slane %v590, 4
        %v5141 = vsel %vm684, %v5140, %v580
        %v5142 = vrot.slane %v580, 4
        %v5143 = vsel %vm684, %v590, %v5142
        %v5145 = vunpack.c.l.s4 1983009808
        %v5146 = vunpack.c.0.s8 %v5145
        %v5147 = vperm.slane %v5141, %v5146
        %v5149 = vunpack.c.l.s4 1983009808
        %v5150 = vunpack.c.0.s8 %v5149
        %v5151 = vperm.slane %v5143, %v5150
        %v5152 = vrot.slane %v595, 4
        %v5153 = vsel %vm684, %v5152, %v585
        %v5154 = vrot.slane %v585, 4
        %v5155 = vsel %vm684, %v595, %v5154
        %v5157 = vunpack.c.l.s4 1983009808
        %v5158 = vunpack.c.0.s8 %v5157
        %v5159 = vperm.slane %v5153, %v5158
        %v5161 = vunpack.c.l.s4 1983009808
        %v5162 = vunpack.c.0.s8 %v5161
        %v5163 = vperm.slane %v5155, %v5162
        %v5164 = vrot.slane %v610, 4
        %v5165 = vsel %vm684, %v5164, %v600
        %v5166 = vrot.slane %v600, 4
        %v5167 = vsel %vm684, %v610, %v5166
        %v5169 = vunpack.c.l.s4 1983009808
        %v5170 = vunpack.c.0.s8 %v5169
        %v5171 = vperm.slane %v5165, %v5170
        %v5173 = vunpack.c.l.s4 1983009808
        %v5174 = vunpack.c.0.s8 %v5173
        %v5175 = vperm.slane %v5167, %v5174
        %v5176 = vrot.slane %v615, 4
        %v5177 = vsel %vm684, %v5176, %v605
        %v5178 = vrot.slane %v605, 4
        %v5179 = vsel %vm684, %v615, %v5178
        %v5181 = vunpack.c.l.s4 1983009808
        %v5182 = vunpack.c.0.s8 %v5181
        %v5183 = vperm.slane %v5177, %v5182
        %v5185 = vunpack.c.l.s4 1983009808
        %v5186 = vunpack.c.0.s8 %v5185
        %v5187 = vperm.slane %v5179, %v5186
        %v5188 = vrot.slane %v5159, 4
        %v5189 = vsel %vm684, %v5188, %v5147
        %v5190 = vrot.slane %v5147, 4
        %v5191 = vsel %vm684, %v5159, %v5190
        %v5193 = vunpack.c.l.s4 1934713408
        %v5194 = vunpack.c.0.s8 %v5193
        %v5195 = vperm.slane %v5189, %v5194
        %v5197 = vunpack.c.l.s4 1934713408
        %v5198 = vunpack.c.0.s8 %v5197
        %v5199 = vperm.slane %v5191, %v5198
        %v5200 = vrot.slane %v5163, 4
        %v5201 = vsel %vm684, %v5200, %v5151
        %v5202 = vrot.slane %v5151, 4
        %v5203 = vsel %vm684, %v5163, %v5202
        %v5205 = vunpack.c.l.s4 1934713408
        %v5206 = vunpack.c.0.s8 %v5205
        %v5207 = vperm.slane %v5201, %v5206
        %v5209 = vunpack.c.l.s4 1934713408
        %v5210 = vunpack.c.0.s8 %v5209
        %v5211 = vperm.slane %v5203, %v5210
        %v5212 = vrot.slane %v5183, 4
        %v5213 = vsel %vm684, %v5212, %v5171
        %v5214 = vrot.slane %v5171, 4
        %v5215 = vsel %vm684, %v5183, %v5214
        %v5217 = vunpack.c.l.s4 1934713408
        %v5218 = vunpack.c.0.s8 %v5217
        %v5219 = vperm.slane %v5213, %v5218
        %v5221 = vunpack.c.l.s4 1934713408
        %v5222 = vunpack.c.0.s8 %v5221
        %v5223 = vperm.slane %v5215, %v5222
        %v5224 = vrot.slane %v5187, 4
        %v5225 = vsel %vm684, %v5224, %v5175
        %v5226 = vrot.slane %v5175, 4
        %v5227 = vsel %vm684, %v5187, %v5226
        %v5229 = vunpack.c.l.s4 1934713408
        %v5230 = vunpack.c.0.s8 %v5229
        %v5231 = vperm.slane %v5225, %v5230
        %v5233 = vunpack.c.l.s4 1934713408
        %v5234 = vunpack.c.0.s8 %v5233
        %v5235 = vperm.slane %v5227, %v5234
        %v5236 = vrot.slane %v5219, 4
        %v5237 = vsel %vm684, %v5236, %v5195
        %v5238 = vrot.slane %v5195, 4
        %v5239 = vsel %vm684, %v5219, %v5238
        %v5240 = vrot.slane %v5223, 4
        %v5241 = vsel %vm684, %v5240, %v5199
        %v5242 = vrot.slane %v5199, 4
        %v5243 = vsel %vm684, %v5223, %v5242
        %v5244 = vrot.slane %v5231, 4
        %v5245 = vsel %vm684, %v5244, %v5207
        %v5246 = vrot.slane %v5207, 4
        %v5247 = vsel %vm684, %v5231, %v5246
        %v5248 = vrot.slane %v5235, 4
        %v5249 = vsel %vm684, %v5248, %v5211
        %v5250 = vrot.slane %v5211, 4
        %v5251 = vsel %vm684, %v5235, %v5250
        %v5252 = vrot.slane %v552, 4
        %v5253 = vsel %vm684, %v5252, %v542
        %v5254 = vrot.slane %v542, 4
        %v5255 = vsel %vm684, %v552, %v5254
        %v5257 = vunpack.c.l.s4 1983009808
        %v5258 = vunpack.c.0.s8 %v5257
        %v5259 = vperm.slane %v5253, %v5258
        %v5261 = vunpack.c.l.s4 1983009808
        %v5262 = vunpack.c.0.s8 %v5261
        %v5263 = vperm.slane %v5255, %v5262
        %v5264 = vrot.slane %v557, 4
        %v5265 = vsel %vm684, %v5264, %v547
        %v5266 = vrot.slane %v547, 4
        %v5267 = vsel %vm684, %v557, %v5266
        %v5269 = vunpack.c.l.s4 1983009808
        %v5270 = vunpack.c.0.s8 %v5269
        %v5271 = vperm.slane %v5265, %v5270
        %v5273 = vunpack.c.l.s4 1983009808
        %v5274 = vunpack.c.0.s8 %v5273
        %v5275 = vperm.slane %v5267, %v5274
        %v5276 = vrot.slane %v572, 4
        %v5277 = vsel %vm684, %v5276, %v562
        %v5278 = vrot.slane %v562, 4
        %v5279 = vsel %vm684, %v572, %v5278
        %v5281 = vunpack.c.l.s4 1983009808
        %v5282 = vunpack.c.0.s8 %v5281
        %v5283 = vperm.slane %v5277, %v5282
        %v5285 = vunpack.c.l.s4 1983009808
        %v5286 = vunpack.c.0.s8 %v5285
        %v5287 = vperm.slane %v5279, %v5286
        %v5288 = vrot.slane %v577, 4
        %v5289 = vsel %vm684, %v5288, %v567
        %v5290 = vrot.slane %v567, 4
        %v5291 = vsel %vm684, %v577, %v5290
        %v5293 = vunpack.c.l.s4 1983009808
        %v5294 = vunpack.c.0.s8 %v5293
        %v5295 = vperm.slane %v5289, %v5294
        %v5297 = vunpack.c.l.s4 1983009808
        %v5298 = vunpack.c.0.s8 %v5297
        %v5299 = vperm.slane %v5291, %v5298
        %v5300 = vrot.slane %v5271, 4
        %v5301 = vsel %vm684, %v5300, %v5259
        %v5302 = vrot.slane %v5259, 4
        %v5303 = vsel %vm684, %v5271, %v5302
        %v5305 = vunpack.c.l.s4 1934713408
        %v5306 = vunpack.c.0.s8 %v5305
        %v5307 = vperm.slane %v5301, %v5306
        %v5309 = vunpack.c.l.s4 1934713408
        %v5310 = vunpack.c.0.s8 %v5309
        %v5311 = vperm.slane %v5303, %v5310
        %v5312 = vrot.slane %v5275, 4
        %v5313 = vsel %vm684, %v5312, %v5263
        %v5314 = vrot.slane %v5263, 4
        %v5315 = vsel %vm684, %v5275, %v5314
        %v5317 = vunpack.c.l.s4 1934713408
        %v5318 = vunpack.c.0.s8 %v5317
        %v5319 = vperm.slane %v5313, %v5318
        %v5321 = vunpack.c.l.s4 1934713408
        %v5322 = vunpack.c.0.s8 %v5321
        %v5323 = vperm.slane %v5315, %v5322
        %v5324 = vrot.slane %v5295, 4
        %v5325 = vsel %vm684, %v5324, %v5283
        %v5326 = vrot.slane %v5283, 4
        %v5327 = vsel %vm684, %v5295, %v5326
        %v5329 = vunpack.c.l.s4 1934713408
        %v5330 = vunpack.c.0.s8 %v5329
        %v5331 = vperm.slane %v5325, %v5330
        %v5333 = vunpack.c.l.s4 1934713408
        %v5334 = vunpack.c.0.s8 %v5333
        %v5335 = vperm.slane %v5327, %v5334
        %v5336 = vrot.slane %v5299, 4
        %v5337 = vsel %vm684, %v5336, %v5287
        %v5338 = vrot.slane %v5287, 4
        %v5339 = vsel %vm684, %v5299, %v5338
        %v5341 = vunpack.c.l.s4 1934713408
        %v5342 = vunpack.c.0.s8 %v5341
        %v5343 = vperm.slane %v5337, %v5342
        %v5345 = vunpack.c.l.s4 1934713408
        %v5346 = vunpack.c.0.s8 %v5345
        %v5347 = vperm.slane %v5339, %v5346
        %v5348 = vrot.slane %v5331, 4
        %v5349 = vsel %vm684, %v5348, %v5307
        %v5350 = vrot.slane %v5307, 4
        %v5351 = vsel %vm684, %v5331, %v5350
        %v5352 = vrot.slane %v5335, 4
        %v5353 = vsel %vm684, %v5352, %v5311
        %v5354 = vrot.slane %v5311, 4
        %v5355 = vsel %vm684, %v5335, %v5354
        %v5356 = vrot.slane %v5343, 4
        %v5357 = vsel %vm684, %v5356, %v5319
        %v5358 = vrot.slane %v5319, 4
        %v5359 = vsel %vm684, %v5343, %v5358
        %v5360 = vrot.slane %v5347, 4
        %v5361 = vsel %vm684, %v5360, %v5323
        %v5362 = vrot.slane %v5323, 4
        %v5363 = vsel %vm684, %v5347, %v5362
        %v5364 = vrot.slane %v592, 4
        %v5365 = vsel %vm684, %v5364, %v582
        %v5366 = vrot.slane %v582, 4
        %v5367 = vsel %vm684, %v592, %v5366
        %v5369 = vunpack.c.l.s4 1983009808
        %v5370 = vunpack.c.0.s8 %v5369
        %v5371 = vperm.slane %v5365, %v5370
        %v5373 = vunpack.c.l.s4 1983009808
        %v5374 = vunpack.c.0.s8 %v5373
        %v5375 = vperm.slane %v5367, %v5374
        %v5376 = vrot.slane %v597, 4
        %v5377 = vsel %vm684, %v5376, %v587
        %v5378 = vrot.slane %v587, 4
        %v5379 = vsel %vm684, %v597, %v5378
        %v5381 = vunpack.c.l.s4 1983009808
        %v5382 = vunpack.c.0.s8 %v5381
        %v5383 = vperm.slane %v5377, %v5382
        %v5385 = vunpack.c.l.s4 1983009808
        %v5386 = vunpack.c.0.s8 %v5385
        %v5387 = vperm.slane %v5379, %v5386
        %v5388 = vrot.slane %v612, 4
        %v5389 = vsel %vm684, %v5388, %v602
        %v5390 = vrot.slane %v602, 4
        %v5391 = vsel %vm684, %v612, %v5390
        %v5393 = vunpack.c.l.s4 1983009808
        %v5394 = vunpack.c.0.s8 %v5393
        %v5395 = vperm.slane %v5389, %v5394
        %v5397 = vunpack.c.l.s4 1983009808
        %v5398 = vunpack.c.0.s8 %v5397
        %v5399 = vperm.slane %v5391, %v5398
        %v5400 = vrot.slane %v617, 4
        %v5401 = vsel %vm684, %v5400, %v607
        %v5402 = vrot.slane %v607, 4
        %v5403 = vsel %vm684, %v617, %v5402
        %v5405 = vunpack.c.l.s4 1983009808
        %v5406 = vunpack.c.0.s8 %v5405
        %v5407 = vperm.slane %v5401, %v5406
        %v5409 = vunpack.c.l.s4 1983009808
        %v5410 = vunpack.c.0.s8 %v5409
        %v5411 = vperm.slane %v5403, %v5410
        %v5412 = vrot.slane %v5383, 4
        %v5413 = vsel %vm684, %v5412, %v5371
        %v5414 = vrot.slane %v5371, 4
        %v5415 = vsel %vm684, %v5383, %v5414
        %v5417 = vunpack.c.l.s4 1934713408
        %v5418 = vunpack.c.0.s8 %v5417
        %v5419 = vperm.slane %v5413, %v5418
        %v5421 = vunpack.c.l.s4 1934713408
        %v5422 = vunpack.c.0.s8 %v5421
        %v5423 = vperm.slane %v5415, %v5422
        %v5424 = vrot.slane %v5387, 4
        %v5425 = vsel %vm684, %v5424, %v5375
        %v5426 = vrot.slane %v5375, 4
        %v5427 = vsel %vm684, %v5387, %v5426
        %v5429 = vunpack.c.l.s4 1934713408
        %v5430 = vunpack.c.0.s8 %v5429
        %v5431 = vperm.slane %v5425, %v5430
        %v5433 = vunpack.c.l.s4 1934713408
        %v5434 = vunpack.c.0.s8 %v5433
        %v5435 = vperm.slane %v5427, %v5434
        %v5436 = vrot.slane %v5407, 4
        %v5437 = vsel %vm684, %v5436, %v5395
        %v5438 = vrot.slane %v5395, 4
        %v5439 = vsel %vm684, %v5407, %v5438
        %v5441 = vunpack.c.l.s4 1934713408
        %v5442 = vunpack.c.0.s8 %v5441
        %v5443 = vperm.slane %v5437, %v5442
        %v5445 = vunpack.c.l.s4 1934713408
        %v5446 = vunpack.c.0.s8 %v5445
        %v5447 = vperm.slane %v5439, %v5446
        %v5448 = vrot.slane %v5411, 4
        %v5449 = vsel %vm684, %v5448, %v5399
        %v5450 = vrot.slane %v5399, 4
        %v5451 = vsel %vm684, %v5411, %v5450
        %v5453 = vunpack.c.l.s4 1934713408
        %v5454 = vunpack.c.0.s8 %v5453
        %v5455 = vperm.slane %v5449, %v5454
        %v5457 = vunpack.c.l.s4 1934713408
        %v5458 = vunpack.c.0.s8 %v5457
        %v5459 = vperm.slane %v5451, %v5458
        %v5460 = vrot.slane %v5443, 4
        %v5461 = vsel %vm684, %v5460, %v5419
        %v5462 = vrot.slane %v5419, 4
        %v5463 = vsel %vm684, %v5443, %v5462
        %v5464 = vrot.slane %v5447, 4
        %v5465 = vsel %vm684, %v5464, %v5423
        %v5466 = vrot.slane %v5423, 4
        %v5467 = vsel %vm684, %v5447, %v5466
        %v5468 = vrot.slane %v5455, 4
        %v5469 = vsel %vm684, %v5468, %v5431
        %v5470 = vrot.slane %v5431, 4
        %v5471 = vsel %vm684, %v5455, %v5470
        %v5472 = vrot.slane %v5459, 4
        %v5473 = vsel %vm684, %v5472, %v5435
        %v5474 = vrot.slane %v5435, 4
        %v5475 = vsel %vm684, %v5459, %v5474
        %v5476 = vpack.c.bf16 %v5125, %v5125
        %v5477 = vpack.c.bf16 %v5237, %v5237
        %v5478 = vpack.c.bf16 %v5127, %v5127
        %v5479 = vpack.c.bf16 %v5239, %v5239
        %v5480 = vpack.c.bf16 %v5129, %v5129
        %v5481 = vpack.c.bf16 %v5241, %v5241
        %v5482 = vpack.c.bf16 %v5131, %v5131
        %v5483 = vpack.c.bf16 %v5243, %v5243
        %v5484 = vpack.c.bf16 %v5133, %v5133
        %v5485 = vpack.c.bf16 %v5245, %v5245
        %v5486 = vpack.c.bf16 %v5135, %v5135
        %v5487 = vpack.c.bf16 %v5247, %v5247
        %v5488 = vpack.c.bf16 %v5137, %v5137
        %v5489 = vpack.c.bf16 %v5249, %v5249
        %v5490 = vpack.c.bf16 %v5139, %v5139
        %v5491 = vpack.c.bf16 %v5251, %v5251
        %v5492 = vpack.c.bf16 %v5349, %v5349
        %v5493 = vpack.c.bf16 %v5461, %v5461
        %v5494 = vpack.c.bf16 %v5351, %v5351
        %v5495 = vpack.c.bf16 %v5463, %v5463
        %v5496 = vpack.c.bf16 %v5353, %v5353
        %v5497 = vpack.c.bf16 %v5465, %v5465
        %v5498 = vpack.c.bf16 %v5355, %v5355
        %v5499 = vpack.c.bf16 %v5467, %v5467
        %v5500 = vpack.c.bf16 %v5357, %v5357
        %v5501 = vpack.c.bf16 %v5469, %v5469
        %v5502 = vpack.c.bf16 %v5359, %v5359
        %v5503 = vpack.c.bf16 %v5471, %v5471
        %v5504 = vpack.c.bf16 %v5361, %v5361
        %v5505 = vpack.c.bf16 %v5473, %v5473
        %v5506 = vpack.c.bf16 %v5363, %v5363
        %v5507 = vpack.c.bf16 %v5475, %v5475
        %v5510 = vunpack.c.l.b16 %v4964
        %v5511 = vunpack.c.l.b16 %v4965
        %v5512 = vpack.c.b16 %v5511, %v5510
        %v5515 = vunpack.c.l.b16 %v5476
        %v5516 = vunpack.c.l.b16 %v5477
        %v5517 = vpack.c.b16 %v5516, %v5515
        %v5520 = vsel %vm303, %v5512, 0
        %5522 = vmatpush.bf16.msra.mxu0 0
        %5523 = vmatpush.bf16.msra.mxu0 0
        %5524 = vmatpush.bf16.msra.mxu0 0
        %5525 = vmatpush.bf16.msra.mxu0 0
        %5526 = vmatpush.bf16.msra.mxu0 0
        %5527 = vmatpush.bf16.msra.mxu0 0
        %5528 = vmatpush.bf16.msra.mxu0 0
        %5529 = vmatpush.bf16.msra.mxu0 %v5517
        %5530 = vmatmul.bf16.gmra.mxu0 %v5520
        %v5531 = vpop.f32.mrf.mxu0
        %v5532 = vadd.f32 0.0, %v5531
        %v5533 = vpop.f32.mrf.mxu0
        %v5534 = vadd.f32 0.0, %v5533
        %5535 = vdwg.mxu0
        %v5538 = vunpack.c.l.b16 %v4966
        %v5539 = vunpack.c.l.b16 %v4967
        %v5540 = vpack.c.b16 %v5539, %v5538
        %v5543 = vunpack.c.l.b16 %v5478
        %v5544 = vunpack.c.l.b16 %v5479
        %v5545 = vpack.c.b16 %v5544, %v5543
        %v5548 = vsel %vm303, %v5540, 0
        %5550 = vmatpush.bf16.msra.mxu0 0
        %5551 = vmatpush.bf16.msra.mxu0 0
        %5552 = vmatpush.bf16.msra.mxu0 0
        %5553 = vmatpush.bf16.msra.mxu0 0
        %5554 = vmatpush.bf16.msra.mxu0 0
        %5555 = vmatpush.bf16.msra.mxu0 0
        %5556 = vmatpush.bf16.msra.mxu0 0
        %5557 = vmatpush.bf16.msra.mxu0 %v5545
        %5558 = vmatmul.bf16.gmra.mxu0 %v5548
        %v5559 = vpop.f32.mrf.mxu0
        %v5560 = vadd.f32 0.0, %v5559
        %v5561 = vpop.f32.mrf.mxu0
        %v5562 = vadd.f32 0.0, %v5561
        %5563 = vdwg.mxu0
        %v5566 = vunpack.c.l.b16 %v4968
        %v5567 = vunpack.c.l.b16 %v4969
        %v5568 = vpack.c.b16 %v5567, %v5566
        %v5571 = vunpack.c.l.b16 %v5480
        %v5572 = vunpack.c.l.b16 %v5481
        %v5573 = vpack.c.b16 %v5572, %v5571
        %v5576 = vsel %vm303, %v5568, 0
        %5578 = vmatpush.bf16.msra.mxu0 0
        %5579 = vmatpush.bf16.msra.mxu0 0
        %5580 = vmatpush.bf16.msra.mxu0 0
        %5581 = vmatpush.bf16.msra.mxu0 0
        %5582 = vmatpush.bf16.msra.mxu0 0
        %5583 = vmatpush.bf16.msra.mxu0 0
        %5584 = vmatpush.bf16.msra.mxu0 0
        %5585 = vmatpush.bf16.msra.mxu0 %v5573
        %5586 = vmatmul.bf16.gmra.mxu0 %v5576
        %v5587 = vpop.f32.mrf.mxu0
        %v5588 = vadd.f32 0.0, %v5587
        %v5589 = vpop.f32.mrf.mxu0
        %v5590 = vadd.f32 0.0, %v5589
        %5591 = vdwg.mxu0
        %v5594 = vunpack.c.l.b16 %v4970
        %v5595 = vunpack.c.l.b16 %v4971
        %v5596 = vpack.c.b16 %v5595, %v5594
        %v5599 = vunpack.c.l.b16 %v5482
        %v5600 = vunpack.c.l.b16 %v5483
        %v5601 = vpack.c.b16 %v5600, %v5599
        %v5604 = vsel %vm303, %v5596, 0
        %5606 = vmatpush.bf16.msra.mxu0 0
        %5607 = vmatpush.bf16.msra.mxu0 0
        %5608 = vmatpush.bf16.msra.mxu0 0
        %5609 = vmatpush.bf16.msra.mxu0 0
        %5610 = vmatpush.bf16.msra.mxu0 0
        %5611 = vmatpush.bf16.msra.mxu0 0
        %5612 = vmatpush.bf16.msra.mxu0 0
        %5613 = vmatpush.bf16.msra.mxu0 %v5601
        %5614 = vmatmul.bf16.gmra.mxu0 %v5604
        %v5615 = vpop.f32.mrf.mxu0
        %v5616 = vadd.f32 0.0, %v5615
        %v5617 = vpop.f32.mrf.mxu0
        %v5618 = vadd.f32 0.0, %v5617
        %5619 = vdwg.mxu0
        %v5622 = vunpack.c.l.b16 %v4972
        %v5623 = vunpack.c.l.b16 %v4973
        %v5624 = vpack.c.b16 %v5623, %v5622
        %v5627 = vunpack.c.l.b16 %v5484
        %v5628 = vunpack.c.l.b16 %v5485
        %v5629 = vpack.c.b16 %v5628, %v5627
        %v5632 = vsel %vm303, %v5624, 0
        %5634 = vmatpush.bf16.msra.mxu0 0
        %5635 = vmatpush.bf16.msra.mxu0 0
        %5636 = vmatpush.bf16.msra.mxu0 0
        %5637 = vmatpush.bf16.msra.mxu0 0
        %5638 = vmatpush.bf16.msra.mxu0 0
        %5639 = vmatpush.bf16.msra.mxu0 0
        %5640 = vmatpush.bf16.msra.mxu0 0
        %5641 = vmatpush.bf16.msra.mxu0 %v5629
        %5642 = vmatmul.bf16.gmra.mxu0 %v5632
        %v5643 = vpop.f32.mrf.mxu0
        %v5644 = vadd.f32 0.0, %v5643
        %v5645 = vpop.f32.mrf.mxu0
        %v5646 = vadd.f32 0.0, %v5645
        %5647 = vdwg.mxu0
        %v5650 = vunpack.c.l.b16 %v4974
        %v5651 = vunpack.c.l.b16 %v4975
        %v5652 = vpack.c.b16 %v5651, %v5650
        %v5655 = vunpack.c.l.b16 %v5486
        %v5656 = vunpack.c.l.b16 %v5487
        %v5657 = vpack.c.b16 %v5656, %v5655
        %v5660 = vsel %vm303, %v5652, 0
        %5662 = vmatpush.bf16.msra.mxu0 0
        %5663 = vmatpush.bf16.msra.mxu0 0
        %5664 = vmatpush.bf16.msra.mxu0 0
        %5665 = vmatpush.bf16.msra.mxu0 0
        %5666 = vmatpush.bf16.msra.mxu0 0
        %5667 = vmatpush.bf16.msra.mxu0 0
        %5668 = vmatpush.bf16.msra.mxu0 0
        %5669 = vmatpush.bf16.msra.mxu0 %v5657
        %5670 = vmatmul.bf16.gmra.mxu0 %v5660
        %v5671 = vpop.f32.mrf.mxu0
        %v5672 = vadd.f32 0.0, %v5671
        %v5673 = vpop.f32.mrf.mxu0
        %v5674 = vadd.f32 0.0, %v5673
        %5675 = vdwg.mxu0
        %v5678 = vunpack.c.l.b16 %v4976
        %v5679 = vunpack.c.l.b16 %v4977
        %v5680 = vpack.c.b16 %v5679, %v5678
        %v5683 = vunpack.c.l.b16 %v5488
        %v5684 = vunpack.c.l.b16 %v5489
        %v5685 = vpack.c.b16 %v5684, %v5683
        %v5688 = vsel %vm303, %v5680, 0
        %5690 = vmatpush.bf16.msra.mxu0 0
        %5691 = vmatpush.bf16.msra.mxu0 0
        %5692 = vmatpush.bf16.msra.mxu0 0
        %5693 = vmatpush.bf16.msra.mxu0 0
        %5694 = vmatpush.bf16.msra.mxu0 0
        %5695 = vmatpush.bf16.msra.mxu0 0
        %5696 = vmatpush.bf16.msra.mxu0 0
        %5697 = vmatpush.bf16.msra.mxu0 %v5685
        %5698 = vmatmul.bf16.gmra.mxu0 %v5688
        %v5699 = vpop.f32.mrf.mxu0
        %v5700 = vadd.f32 0.0, %v5699
        %v5701 = vpop.f32.mrf.mxu0
        %v5702 = vadd.f32 0.0, %v5701
        %5703 = vdwg.mxu0
        %v5706 = vunpack.c.l.b16 %v4978
        %v5707 = vunpack.c.l.b16 %v4979
        %v5708 = vpack.c.b16 %v5707, %v5706
        %v5711 = vunpack.c.l.b16 %v5490
        %v5712 = vunpack.c.l.b16 %v5491
        %v5713 = vpack.c.b16 %v5712, %v5711
        %v5716 = vsel %vm303, %v5708, 0
        %5718 = vmatpush.bf16.msra.mxu0 0
        %5719 = vmatpush.bf16.msra.mxu0 0
        %5720 = vmatpush.bf16.msra.mxu0 0
        %5721 = vmatpush.bf16.msra.mxu0 0
        %5722 = vmatpush.bf16.msra.mxu0 0
        %5723 = vmatpush.bf16.msra.mxu0 0
        %5724 = vmatpush.bf16.msra.mxu0 0
        %5725 = vmatpush.bf16.msra.mxu0 %v5713
        %5726 = vmatmul.bf16.gmra.mxu0 %v5716
        %v5727 = vpop.f32.mrf.mxu0
        %v5728 = vadd.f32 0.0, %v5727
        %v5729 = vpop.f32.mrf.mxu0
        %v5730 = vadd.f32 0.0, %v5729
        %5731 = vdwg.mxu0
        %v5734 = vunpack.c.l.b16 %v4980
        %v5735 = vunpack.c.l.b16 %v4981
        %v5736 = vpack.c.b16 %v5735, %v5734
        %v5739 = vunpack.c.l.b16 %v5492
        %v5740 = vunpack.c.l.b16 %v5493
        %v5741 = vpack.c.b16 %v5740, %v5739
        %v5744 = vsel %vm303, %v5736, 0
        %5746 = vmatpush.bf16.msra.mxu0 0
        %5747 = vmatpush.bf16.msra.mxu0 0
        %5748 = vmatpush.bf16.msra.mxu0 0
        %5749 = vmatpush.bf16.msra.mxu0 0
        %5750 = vmatpush.bf16.msra.mxu0 0
        %5751 = vmatpush.bf16.msra.mxu0 0
        %5752 = vmatpush.bf16.msra.mxu0 0
        %5753 = vmatpush.bf16.msra.mxu0 %v5741
        %5754 = vmatmul.bf16.gmra.mxu0 %v5744
        %v5755 = vpop.f32.mrf.mxu0
        %v5756 = vadd.f32 0.0, %v5755
        %v5757 = vpop.f32.mrf.mxu0
        %v5758 = vadd.f32 0.0, %v5757
        %5759 = vdwg.mxu0
        %v5762 = vunpack.c.l.b16 %v4982
        %v5763 = vunpack.c.l.b16 %v4983
        %v5764 = vpack.c.b16 %v5763, %v5762
        %v5767 = vunpack.c.l.b16 %v5494
        %v5768 = vunpack.c.l.b16 %v5495
        %v5769 = vpack.c.b16 %v5768, %v5767
        %v5772 = vsel %vm303, %v5764, 0
        %5774 = vmatpush.bf16.msra.mxu0 0
        %5775 = vmatpush.bf16.msra.mxu0 0
        %5776 = vmatpush.bf16.msra.mxu0 0
        %5777 = vmatpush.bf16.msra.mxu0 0
        %5778 = vmatpush.bf16.msra.mxu0 0
        %5779 = vmatpush.bf16.msra.mxu0 0
        %5780 = vmatpush.bf16.msra.mxu0 0
        %5781 = vmatpush.bf16.msra.mxu0 %v5769
        %5782 = vmatmul.bf16.gmra.mxu0 %v5772
        %v5783 = vpop.f32.mrf.mxu0
        %v5784 = vadd.f32 0.0, %v5783
        %v5785 = vpop.f32.mrf.mxu0
        %v5786 = vadd.f32 0.0, %v5785
        %5787 = vdwg.mxu0
        %v5790 = vunpack.c.l.b16 %v4984
        %v5791 = vunpack.c.l.b16 %v4985
        %v5792 = vpack.c.b16 %v5791, %v5790
        %v5795 = vunpack.c.l.b16 %v5496
        %v5796 = vunpack.c.l.b16 %v5497
        %v5797 = vpack.c.b16 %v5796, %v5795
        %v5800 = vsel %vm303, %v5792, 0
        %5802 = vmatpush.bf16.msra.mxu0 0
        %5803 = vmatpush.bf16.msra.mxu0 0
        %5804 = vmatpush.bf16.msra.mxu0 0
        %5805 = vmatpush.bf16.msra.mxu0 0
        %5806 = vmatpush.bf16.msra.mxu0 0
        %5807 = vmatpush.bf16.msra.mxu0 0
        %5808 = vmatpush.bf16.msra.mxu0 0
        %5809 = vmatpush.bf16.msra.mxu0 %v5797
        %5810 = vmatmul.bf16.gmra.mxu0 %v5800
        %v5811 = vpop.f32.mrf.mxu0
        %v5812 = vadd.f32 0.0, %v5811
        %v5813 = vpop.f32.mrf.mxu0
        %v5814 = vadd.f32 0.0, %v5813
        %5815 = vdwg.mxu0
        %v5818 = vunpack.c.l.b16 %v4986
        %v5819 = vunpack.c.l.b16 %v4987
        %v5820 = vpack.c.b16 %v5819, %v5818
        %v5823 = vunpack.c.l.b16 %v5498
        %v5824 = vunpack.c.l.b16 %v5499
        %v5825 = vpack.c.b16 %v5824, %v5823
        %v5828 = vsel %vm303, %v5820, 0
        %5830 = vmatpush.bf16.msra.mxu0 0
        %5831 = vmatpush.bf16.msra.mxu0 0
        %5832 = vmatpush.bf16.msra.mxu0 0
        %5833 = vmatpush.bf16.msra.mxu0 0
        %5834 = vmatpush.bf16.msra.mxu0 0
        %5835 = vmatpush.bf16.msra.mxu0 0
        %5836 = vmatpush.bf16.msra.mxu0 0
        %5837 = vmatpush.bf16.msra.mxu0 %v5825
        %5838 = vmatmul.bf16.gmra.mxu0 %v5828
        %v5839 = vpop.f32.mrf.mxu0
        %v5840 = vadd.f32 0.0, %v5839
        %v5841 = vpop.f32.mrf.mxu0
        %v5842 = vadd.f32 0.0, %v5841
        %5843 = vdwg.mxu0
        %v5846 = vunpack.c.l.b16 %v4988
        %v5847 = vunpack.c.l.b16 %v4989
        %v5848 = vpack.c.b16 %v5847, %v5846
        %v5851 = vunpack.c.l.b16 %v5500
        %v5852 = vunpack.c.l.b16 %v5501
        %v5853 = vpack.c.b16 %v5852, %v5851
        %v5856 = vsel %vm303, %v5848, 0
        %5858 = vmatpush.bf16.msra.mxu0 0
        %5859 = vmatpush.bf16.msra.mxu0 0
        %5860 = vmatpush.bf16.msra.mxu0 0
        %5861 = vmatpush.bf16.msra.mxu0 0
        %5862 = vmatpush.bf16.msra.mxu0 0
        %5863 = vmatpush.bf16.msra.mxu0 0
        %5864 = vmatpush.bf16.msra.mxu0 0
        %5865 = vmatpush.bf16.msra.mxu0 %v5853
        %5866 = vmatmul.bf16.gmra.mxu0 %v5856
        %v5867 = vpop.f32.mrf.mxu0
        %v5868 = vadd.f32 0.0, %v5867
        %v5869 = vpop.f32.mrf.mxu0
        %v5870 = vadd.f32 0.0, %v5869
        %5871 = vdwg.mxu0
        %v5874 = vunpack.c.l.b16 %v4990
        %v5875 = vunpack.c.l.b16 %v4991
        %v5876 = vpack.c.b16 %v5875, %v5874
        %v5879 = vunpack.c.l.b16 %v5502
        %v5880 = vunpack.c.l.b16 %v5503
        %v5881 = vpack.c.b16 %v5880, %v5879
        %v5884 = vsel %vm303, %v5876, 0
        %5886 = vmatpush.bf16.msra.mxu0 0
        %5887 = vmatpush.bf16.msra.mxu0 0
        %5888 = vmatpush.bf16.msra.mxu0 0
        %5889 = vmatpush.bf16.msra.mxu0 0
        %5890 = vmatpush.bf16.msra.mxu0 0
        %5891 = vmatpush.bf16.msra.mxu0 0
        %5892 = vmatpush.bf16.msra.mxu0 0
        %5893 = vmatpush.bf16.msra.mxu0 %v5881
        %5894 = vmatmul.bf16.gmra.mxu0 %v5884
        %v5895 = vpop.f32.mrf.mxu0
        %v5896 = vadd.f32 0.0, %v5895
        %v5897 = vpop.f32.mrf.mxu0
        %v5898 = vadd.f32 0.0, %v5897
        %5899 = vdwg.mxu0
        %v5902 = vunpack.c.l.b16 %v4992
        %v5903 = vunpack.c.l.b16 %v4993
        %v5904 = vpack.c.b16 %v5903, %v5902
        %v5907 = vunpack.c.l.b16 %v5504
        %v5908 = vunpack.c.l.b16 %v5505
        %v5909 = vpack.c.b16 %v5908, %v5907
        %v5912 = vsel %vm303, %v5904, 0
        %5914 = vmatpush.bf16.msra.mxu0 0
        %5915 = vmatpush.bf16.msra.mxu0 0
        %5916 = vmatpush.bf16.msra.mxu0 0
        %5917 = vmatpush.bf16.msra.mxu0 0
        %5918 = vmatpush.bf16.msra.mxu0 0
        %5919 = vmatpush.bf16.msra.mxu0 0
        %5920 = vmatpush.bf16.msra.mxu0 0
        %5921 = vmatpush.bf16.msra.mxu0 %v5909
        %5922 = vmatmul.bf16.gmra.mxu0 %v5912
        %v5923 = vpop.f32.mrf.mxu0
        %v5924 = vadd.f32 0.0, %v5923
        %v5925 = vpop.f32.mrf.mxu0
        %v5926 = vadd.f32 0.0, %v5925
        %5927 = vdwg.mxu0
        %v5930 = vunpack.c.l.b16 %v4994
        %v5931 = vunpack.c.l.b16 %v4995
        %v5932 = vpack.c.b16 %v5931, %v5930
        %v5935 = vunpack.c.l.b16 %v5506
        %v5936 = vunpack.c.l.b16 %v5507
        %v5937 = vpack.c.b16 %v5936, %v5935
        %v5940 = vsel %vm303, %v5932, 0
        %5942 = vmatpush.bf16.msra.mxu0 0
        %5943 = vmatpush.bf16.msra.mxu0 0
        %5944 = vmatpush.bf16.msra.mxu0 0
        %5945 = vmatpush.bf16.msra.mxu0 0
        %5946 = vmatpush.bf16.msra.mxu0 0
        %5947 = vmatpush.bf16.msra.mxu0 0
        %5948 = vmatpush.bf16.msra.mxu0 0
        %5949 = vmatpush.bf16.msra.mxu0 %v5937
        %5950 = vmatmul.bf16.gmra.mxu0 %v5940
        %v5951 = vpop.f32.mrf.mxu0
        %v5952 = vadd.f32 0.0, %v5951
        %v5953 = vpop.f32.mrf.mxu0
        %v5954 = vadd.f32 0.0, %v5953
        %5955 = vdwg.mxu0
        %v5956 = vrot.slane %v5588, 4
        %v5957 = vsel %vm684, %v5956, %v5532
        %v5958 = vrot.slane %v5532, 4
        %v5959 = vsel %vm684, %v5588, %v5958
        %v5961 = vunpack.c.l.s4 1983009808
        %v5962 = vunpack.c.0.s8 %v5961
        %v5963 = vperm.slane %v5957, %v5962
        %v5965 = vunpack.c.l.s4 1983009808
        %v5966 = vunpack.c.0.s8 %v5965
        %v5967 = vperm.slane %v5959, %v5966
        %v5968 = vrot.slane %v5616, 4
        %v5969 = vsel %vm684, %v5968, %v5560
        %v5970 = vrot.slane %v5560, 4
        %v5971 = vsel %vm684, %v5616, %v5970
        %v5973 = vunpack.c.l.s4 1983009808
        %v5974 = vunpack.c.0.s8 %v5973
        %v5975 = vperm.slane %v5969, %v5974
        %v5977 = vunpack.c.l.s4 1983009808
        %v5978 = vunpack.c.0.s8 %v5977
        %v5979 = vperm.slane %v5971, %v5978
        %v5980 = vrot.slane %v5700, 4
        %v5981 = vsel %vm684, %v5980, %v5644
        %v5982 = vrot.slane %v5644, 4
        %v5983 = vsel %vm684, %v5700, %v5982
        %v5985 = vunpack.c.l.s4 1983009808
        %v5986 = vunpack.c.0.s8 %v5985
        %v5987 = vperm.slane %v5981, %v5986
        %v5989 = vunpack.c.l.s4 1983009808
        %v5990 = vunpack.c.0.s8 %v5989
        %v5991 = vperm.slane %v5983, %v5990
        %v5992 = vrot.slane %v5728, 4
        %v5993 = vsel %vm684, %v5992, %v5672
        %v5994 = vrot.slane %v5672, 4
        %v5995 = vsel %vm684, %v5728, %v5994
        %v5997 = vunpack.c.l.s4 1983009808
        %v5998 = vunpack.c.0.s8 %v5997
        %v5999 = vperm.slane %v5993, %v5998
        %v6001 = vunpack.c.l.s4 1983009808
        %v6002 = vunpack.c.0.s8 %v6001
        %v6003 = vperm.slane %v5995, %v6002
        %v6004 = vrot.slane %v5975, 4
        %v6005 = vsel %vm684, %v6004, %v5963
        %v6006 = vrot.slane %v5963, 4
        %v6007 = vsel %vm684, %v5975, %v6006
        %v6009 = vunpack.c.l.s4 1934713408
        %v6010 = vunpack.c.0.s8 %v6009
        %v6011 = vperm.slane %v6005, %v6010
        %v6013 = vunpack.c.l.s4 1934713408
        %v6014 = vunpack.c.0.s8 %v6013
        %v6015 = vperm.slane %v6007, %v6014
        %v6016 = vrot.slane %v5979, 4
        %v6017 = vsel %vm684, %v6016, %v5967
        %v6018 = vrot.slane %v5967, 4
        %v6019 = vsel %vm684, %v5979, %v6018
        %v6021 = vunpack.c.l.s4 1934713408
        %v6022 = vunpack.c.0.s8 %v6021
        %v6023 = vperm.slane %v6017, %v6022
        %v6025 = vunpack.c.l.s4 1934713408
        %v6026 = vunpack.c.0.s8 %v6025
        %v6027 = vperm.slane %v6019, %v6026
        %v6028 = vrot.slane %v5999, 4
        %v6029 = vsel %vm684, %v6028, %v5987
        %v6030 = vrot.slane %v5987, 4
        %v6031 = vsel %vm684, %v5999, %v6030
        %v6033 = vunpack.c.l.s4 1934713408
        %v6034 = vunpack.c.0.s8 %v6033
        %v6035 = vperm.slane %v6029, %v6034
        %v6037 = vunpack.c.l.s4 1934713408
        %v6038 = vunpack.c.0.s8 %v6037
        %v6039 = vperm.slane %v6031, %v6038
        %v6040 = vrot.slane %v6003, 4
        %v6041 = vsel %vm684, %v6040, %v5991
        %v6042 = vrot.slane %v5991, 4
        %v6043 = vsel %vm684, %v6003, %v6042
        %v6045 = vunpack.c.l.s4 1934713408
        %v6046 = vunpack.c.0.s8 %v6045
        %v6047 = vperm.slane %v6041, %v6046
        %v6049 = vunpack.c.l.s4 1934713408
        %v6050 = vunpack.c.0.s8 %v6049
        %v6051 = vperm.slane %v6043, %v6050
        %v6052 = vrot.slane %v6035, 4
        %v6053 = vsel %vm684, %v6052, %v6011
        %v6054 = vrot.slane %v6011, 4
        %v6055 = vsel %vm684, %v6035, %v6054
        %v6056 = vrot.slane %v6039, 4
        %v6057 = vsel %vm684, %v6056, %v6015
        %v6058 = vrot.slane %v6015, 4
        %v6059 = vsel %vm684, %v6039, %v6058
        %v6060 = vrot.slane %v6047, 4
        %v6061 = vsel %vm684, %v6060, %v6023
        %v6062 = vrot.slane %v6023, 4
        %v6063 = vsel %vm684, %v6047, %v6062
        %v6064 = vrot.slane %v6051, 4
        %v6065 = vsel %vm684, %v6064, %v6027
        %v6066 = vrot.slane %v6027, 4
        %v6067 = vsel %vm684, %v6051, %v6066
        %v6068 = vrot.slane %v5812, 4
        %v6069 = vsel %vm684, %v6068, %v5756
        %v6070 = vrot.slane %v5756, 4
        %v6071 = vsel %vm684, %v5812, %v6070
        %v6073 = vunpack.c.l.s4 1983009808
        %v6074 = vunpack.c.0.s8 %v6073
        %v6075 = vperm.slane %v6069, %v6074
        %v6077 = vunpack.c.l.s4 1983009808
        %v6078 = vunpack.c.0.s8 %v6077
        %v6079 = vperm.slane %v6071, %v6078
        %v6080 = vrot.slane %v5840, 4
        %v6081 = vsel %vm684, %v6080, %v5784
        %v6082 = vrot.slane %v5784, 4
        %v6083 = vsel %vm684, %v5840, %v6082
        %v6085 = vunpack.c.l.s4 1983009808
        %v6086 = vunpack.c.0.s8 %v6085
        %v6087 = vperm.slane %v6081, %v6086
        %v6089 = vunpack.c.l.s4 1983009808
        %v6090 = vunpack.c.0.s8 %v6089
        %v6091 = vperm.slane %v6083, %v6090
        %v6092 = vrot.slane %v5924, 4
        %v6093 = vsel %vm684, %v6092, %v5868
        %v6094 = vrot.slane %v5868, 4
        %v6095 = vsel %vm684, %v5924, %v6094
        %v6097 = vunpack.c.l.s4 1983009808
        %v6098 = vunpack.c.0.s8 %v6097
        %v6099 = vperm.slane %v6093, %v6098
        %v6101 = vunpack.c.l.s4 1983009808
        %v6102 = vunpack.c.0.s8 %v6101
        %v6103 = vperm.slane %v6095, %v6102
        %v6104 = vrot.slane %v5952, 4
        %v6105 = vsel %vm684, %v6104, %v5896
        %v6106 = vrot.slane %v5896, 4
        %v6107 = vsel %vm684, %v5952, %v6106
        %v6109 = vunpack.c.l.s4 1983009808
        %v6110 = vunpack.c.0.s8 %v6109
        %v6111 = vperm.slane %v6105, %v6110
        %v6113 = vunpack.c.l.s4 1983009808
        %v6114 = vunpack.c.0.s8 %v6113
        %v6115 = vperm.slane %v6107, %v6114
        %v6116 = vrot.slane %v6087, 4
        %v6117 = vsel %vm684, %v6116, %v6075
        %v6118 = vrot.slane %v6075, 4
        %v6119 = vsel %vm684, %v6087, %v6118
        %v6121 = vunpack.c.l.s4 1934713408
        %v6122 = vunpack.c.0.s8 %v6121
        %v6123 = vperm.slane %v6117, %v6122
        %v6125 = vunpack.c.l.s4 1934713408
        %v6126 = vunpack.c.0.s8 %v6125
        %v6127 = vperm.slane %v6119, %v6126
        %v6128 = vrot.slane %v6091, 4
        %v6129 = vsel %vm684, %v6128, %v6079
        %v6130 = vrot.slane %v6079, 4
        %v6131 = vsel %vm684, %v6091, %v6130
        %v6133 = vunpack.c.l.s4 1934713408
        %v6134 = vunpack.c.0.s8 %v6133
        %v6135 = vperm.slane %v6129, %v6134
        %v6137 = vunpack.c.l.s4 1934713408
        %v6138 = vunpack.c.0.s8 %v6137
        %v6139 = vperm.slane %v6131, %v6138
        %v6140 = vrot.slane %v6111, 4
        %v6141 = vsel %vm684, %v6140, %v6099
        %v6142 = vrot.slane %v6099, 4
        %v6143 = vsel %vm684, %v6111, %v6142
        %v6145 = vunpack.c.l.s4 1934713408
        %v6146 = vunpack.c.0.s8 %v6145
        %v6147 = vperm.slane %v6141, %v6146
        %v6149 = vunpack.c.l.s4 1934713408
        %v6150 = vunpack.c.0.s8 %v6149
        %v6151 = vperm.slane %v6143, %v6150
        %v6152 = vrot.slane %v6115, 4
        %v6153 = vsel %vm684, %v6152, %v6103
        %v6154 = vrot.slane %v6103, 4
        %v6155 = vsel %vm684, %v6115, %v6154
        %v6157 = vunpack.c.l.s4 1934713408
        %v6158 = vunpack.c.0.s8 %v6157
        %v6159 = vperm.slane %v6153, %v6158
        %v6161 = vunpack.c.l.s4 1934713408
        %v6162 = vunpack.c.0.s8 %v6161
        %v6163 = vperm.slane %v6155, %v6162
        %v6164 = vrot.slane %v6147, 4
        %v6165 = vsel %vm684, %v6164, %v6123
        %v6166 = vrot.slane %v6123, 4
        %v6167 = vsel %vm684, %v6147, %v6166
        %v6168 = vrot.slane %v6151, 4
        %v6169 = vsel %vm684, %v6168, %v6127
        %v6170 = vrot.slane %v6127, 4
        %v6171 = vsel %vm684, %v6151, %v6170
        %v6172 = vrot.slane %v6159, 4
        %v6173 = vsel %vm684, %v6172, %v6135
        %v6174 = vrot.slane %v6135, 4
        %v6175 = vsel %vm684, %v6159, %v6174
        %v6176 = vrot.slane %v6163, 4
        %v6177 = vsel %vm684, %v6176, %v6139
        %v6178 = vrot.slane %v6139, 4
        %v6179 = vsel %vm684, %v6163, %v6178
        %v6180 = vrot.slane %v5590, 4
        %v6181 = vsel %vm684, %v6180, %v5534
        %v6182 = vrot.slane %v5534, 4
        %v6183 = vsel %vm684, %v5590, %v6182
        %v6185 = vunpack.c.l.s4 1983009808
        %v6186 = vunpack.c.0.s8 %v6185
        %v6187 = vperm.slane %v6181, %v6186
        %v6189 = vunpack.c.l.s4 1983009808
        %v6190 = vunpack.c.0.s8 %v6189
        %v6191 = vperm.slane %v6183, %v6190
        %v6192 = vrot.slane %v5618, 4
        %v6193 = vsel %vm684, %v6192, %v5562
        %v6194 = vrot.slane %v5562, 4
        %v6195 = vsel %vm684, %v5618, %v6194
        %v6197 = vunpack.c.l.s4 1983009808
        %v6198 = vunpack.c.0.s8 %v6197
        %v6199 = vperm.slane %v6193, %v6198
        %v6201 = vunpack.c.l.s4 1983009808
        %v6202 = vunpack.c.0.s8 %v6201
        %v6203 = vperm.slane %v6195, %v6202
        %v6204 = vrot.slane %v5702, 4
        %v6205 = vsel %vm684, %v6204, %v5646
        %v6206 = vrot.slane %v5646, 4
        %v6207 = vsel %vm684, %v5702, %v6206
        %v6209 = vunpack.c.l.s4 1983009808
        %v6210 = vunpack.c.0.s8 %v6209
        %v6211 = vperm.slane %v6205, %v6210
        %v6213 = vunpack.c.l.s4 1983009808
        %v6214 = vunpack.c.0.s8 %v6213
        %v6215 = vperm.slane %v6207, %v6214
        %v6216 = vrot.slane %v5730, 4
        %v6217 = vsel %vm684, %v6216, %v5674
        %v6218 = vrot.slane %v5674, 4
        %v6219 = vsel %vm684, %v5730, %v6218
        %v6221 = vunpack.c.l.s4 1983009808
        %v6222 = vunpack.c.0.s8 %v6221
        %v6223 = vperm.slane %v6217, %v6222
        %v6225 = vunpack.c.l.s4 1983009808
        %v6226 = vunpack.c.0.s8 %v6225
        %v6227 = vperm.slane %v6219, %v6226
        %v6228 = vrot.slane %v6199, 4
        %v6229 = vsel %vm684, %v6228, %v6187
        %v6230 = vrot.slane %v6187, 4
        %v6231 = vsel %vm684, %v6199, %v6230
        %v6233 = vunpack.c.l.s4 1934713408
        %v6234 = vunpack.c.0.s8 %v6233
        %v6235 = vperm.slane %v6229, %v6234
        %v6237 = vunpack.c.l.s4 1934713408
        %v6238 = vunpack.c.0.s8 %v6237
        %v6239 = vperm.slane %v6231, %v6238
        %v6240 = vrot.slane %v6203, 4
        %v6241 = vsel %vm684, %v6240, %v6191
        %v6242 = vrot.slane %v6191, 4
        %v6243 = vsel %vm684, %v6203, %v6242
        %v6245 = vunpack.c.l.s4 1934713408
        %v6246 = vunpack.c.0.s8 %v6245
        %v6247 = vperm.slane %v6241, %v6246
        %v6249 = vunpack.c.l.s4 1934713408
        %v6250 = vunpack.c.0.s8 %v6249
        %v6251 = vperm.slane %v6243, %v6250
        %v6252 = vrot.slane %v6223, 4
        %v6253 = vsel %vm684, %v6252, %v6211
        %v6254 = vrot.slane %v6211, 4
        %v6255 = vsel %vm684, %v6223, %v6254
        %v6257 = vunpack.c.l.s4 1934713408
        %v6258 = vunpack.c.0.s8 %v6257
        %v6259 = vperm.slane %v6253, %v6258
        %v6261 = vunpack.c.l.s4 1934713408
        %v6262 = vunpack.c.0.s8 %v6261
        %v6263 = vperm.slane %v6255, %v6262
        %v6264 = vrot.slane %v6227, 4
        %v6265 = vsel %vm684, %v6264, %v6215
        %v6266 = vrot.slane %v6215, 4
        %v6267 = vsel %vm684, %v6227, %v6266
        %v6269 = vunpack.c.l.s4 1934713408
        %v6270 = vunpack.c.0.s8 %v6269
        %v6271 = vperm.slane %v6265, %v6270
        %v6273 = vunpack.c.l.s4 1934713408
        %v6274 = vunpack.c.0.s8 %v6273
        %v6275 = vperm.slane %v6267, %v6274
        %v6276 = vrot.slane %v6259, 4
        %v6277 = vsel %vm684, %v6276, %v6235
        %v6278 = vrot.slane %v6235, 4
        %v6279 = vsel %vm684, %v6259, %v6278
        %v6280 = vrot.slane %v6263, 4
        %v6281 = vsel %vm684, %v6280, %v6239
        %v6282 = vrot.slane %v6239, 4
        %v6283 = vsel %vm684, %v6263, %v6282
        %v6284 = vrot.slane %v6271, 4
        %v6285 = vsel %vm684, %v6284, %v6247
        %v6286 = vrot.slane %v6247, 4
        %v6287 = vsel %vm684, %v6271, %v6286
        %v6288 = vrot.slane %v6275, 4
        %v6289 = vsel %vm684, %v6288, %v6251
        %v6290 = vrot.slane %v6251, 4
        %v6291 = vsel %vm684, %v6275, %v6290
        %v6292 = vrot.slane %v5814, 4
        %v6293 = vsel %vm684, %v6292, %v5758
        %v6294 = vrot.slane %v5758, 4
        %v6295 = vsel %vm684, %v5814, %v6294
        %v6297 = vunpack.c.l.s4 1983009808
        %v6298 = vunpack.c.0.s8 %v6297
        %v6299 = vperm.slane %v6293, %v6298
        %v6301 = vunpack.c.l.s4 1983009808
        %v6302 = vunpack.c.0.s8 %v6301
        %v6303 = vperm.slane %v6295, %v6302
        %v6304 = vrot.slane %v5842, 4
        %v6305 = vsel %vm684, %v6304, %v5786
        %v6306 = vrot.slane %v5786, 4
        %v6307 = vsel %vm684, %v5842, %v6306
        %v6309 = vunpack.c.l.s4 1983009808
        %v6310 = vunpack.c.0.s8 %v6309
        %v6311 = vperm.slane %v6305, %v6310
        %v6313 = vunpack.c.l.s4 1983009808
        %v6314 = vunpack.c.0.s8 %v6313
        %v6315 = vperm.slane %v6307, %v6314
        %v6316 = vrot.slane %v5926, 4
        %v6317 = vsel %vm684, %v6316, %v5870
        %v6318 = vrot.slane %v5870, 4
        %v6319 = vsel %vm684, %v5926, %v6318
        %v6321 = vunpack.c.l.s4 1983009808
        %v6322 = vunpack.c.0.s8 %v6321
        %v6323 = vperm.slane %v6317, %v6322
        %v6325 = vunpack.c.l.s4 1983009808
        %v6326 = vunpack.c.0.s8 %v6325
        %v6327 = vperm.slane %v6319, %v6326
        %v6328 = vrot.slane %v5954, 4
        %v6329 = vsel %vm684, %v6328, %v5898
        %v6330 = vrot.slane %v5898, 4
        %v6331 = vsel %vm684, %v5954, %v6330
        %v6333 = vunpack.c.l.s4 1983009808
        %v6334 = vunpack.c.0.s8 %v6333
        %v6335 = vperm.slane %v6329, %v6334
        %v6337 = vunpack.c.l.s4 1983009808
        %v6338 = vunpack.c.0.s8 %v6337
        %v6339 = vperm.slane %v6331, %v6338
        %v6340 = vrot.slane %v6311, 4
        %v6341 = vsel %vm684, %v6340, %v6299
        %v6342 = vrot.slane %v6299, 4
        %v6343 = vsel %vm684, %v6311, %v6342
        %v6345 = vunpack.c.l.s4 1934713408
        %v6346 = vunpack.c.0.s8 %v6345
        %v6347 = vperm.slane %v6341, %v6346
        %v6349 = vunpack.c.l.s4 1934713408
        %v6350 = vunpack.c.0.s8 %v6349
        %v6351 = vperm.slane %v6343, %v6350
        %v6352 = vrot.slane %v6315, 4
        %v6353 = vsel %vm684, %v6352, %v6303
        %v6354 = vrot.slane %v6303, 4
        %v6355 = vsel %vm684, %v6315, %v6354
        %v6357 = vunpack.c.l.s4 1934713408
        %v6358 = vunpack.c.0.s8 %v6357
        %v6359 = vperm.slane %v6353, %v6358
        %v6361 = vunpack.c.l.s4 1934713408
        %v6362 = vunpack.c.0.s8 %v6361
        %v6363 = vperm.slane %v6355, %v6362
        %v6364 = vrot.slane %v6335, 4
        %v6365 = vsel %vm684, %v6364, %v6323
        %v6366 = vrot.slane %v6323, 4
        %v6367 = vsel %vm684, %v6335, %v6366
        %v6369 = vunpack.c.l.s4 1934713408
        %v6370 = vunpack.c.0.s8 %v6369
        %v6371 = vperm.slane %v6365, %v6370
        %v6373 = vunpack.c.l.s4 1934713408
        %v6374 = vunpack.c.0.s8 %v6373
        %v6375 = vperm.slane %v6367, %v6374
        %v6376 = vrot.slane %v6339, 4
        %v6377 = vsel %vm684, %v6376, %v6327
        %v6378 = vrot.slane %v6327, 4
        %v6379 = vsel %vm684, %v6339, %v6378
        %v6381 = vunpack.c.l.s4 1934713408
        %v6382 = vunpack.c.0.s8 %v6381
        %v6383 = vperm.slane %v6377, %v6382
        %v6385 = vunpack.c.l.s4 1934713408
        %v6386 = vunpack.c.0.s8 %v6385
        %v6387 = vperm.slane %v6379, %v6386
        %v6388 = vrot.slane %v6371, 4
        %v6389 = vsel %vm684, %v6388, %v6347
        %v6390 = vrot.slane %v6347, 4
        %v6391 = vsel %vm684, %v6371, %v6390
        %v6392 = vrot.slane %v6375, 4
        %v6393 = vsel %vm684, %v6392, %v6351
        %v6394 = vrot.slane %v6351, 4
        %v6395 = vsel %vm684, %v6375, %v6394
        %v6396 = vrot.slane %v6383, 4
        %v6397 = vsel %vm684, %v6396, %v6359
        %v6398 = vrot.slane %v6359, 4
        %v6399 = vsel %vm684, %v6383, %v6398
        %v6400 = vrot.slane %v6387, 4
        %v6401 = vsel %vm684, %v6400, %v6363
        %v6402 = vrot.slane %v6363, 4
        %v6403 = vsel %vm684, %v6387, %v6402
        %v6406 = vunpack.c.l.b16 %v4596
        %v6407 = vunpack.c.l.b16 %v4597
        %v6408 = vpack.c.b16 %v6407, %v6406
        %v6411 = vunpack.c.l.b16 %v4996
        %v6412 = vunpack.c.l.b16 %v4997
        %v6413 = vpack.c.b16 %v6412, %v6411
        %v6416 = vsel %vm303, %v6408, 0
        %6418 = vmatpush.bf16.msra.mxu0 0
        %6419 = vmatpush.bf16.msra.mxu0 0
        %6420 = vmatpush.bf16.msra.mxu0 0
        %6421 = vmatpush.bf16.msra.mxu0 0
        %6422 = vmatpush.bf16.msra.mxu0 0
        %6423 = vmatpush.bf16.msra.mxu0 0
        %6424 = vmatpush.bf16.msra.mxu0 0
        %6425 = vmatpush.bf16.msra.mxu0 %v6413
        %6426 = vmatmul.bf16.gmra.mxu0 %v6416
        %v6427 = vpop.f32.mrf.mxu0
        %v6428 = vadd.f32 %v6053, %v6427
        %v6429 = vpop.f32.mrf.mxu0
        %v6430 = vadd.f32 %v6165, %v6429
        %6431 = vdwg.mxu0
        %v6434 = vunpack.c.l.b16 %v4598
        %v6435 = vunpack.c.l.b16 %v4599
        %v6436 = vpack.c.b16 %v6435, %v6434
        %v6439 = vunpack.c.l.b16 %v4998
        %v6440 = vunpack.c.l.b16 %v4999
        %v6441 = vpack.c.b16 %v6440, %v6439
        %v6444 = vsel %vm303, %v6436, 0
        %6446 = vmatpush.bf16.msra.mxu0 0
        %6447 = vmatpush.bf16.msra.mxu0 0
        %6448 = vmatpush.bf16.msra.mxu0 0
        %6449 = vmatpush.bf16.msra.mxu0 0
        %6450 = vmatpush.bf16.msra.mxu0 0
        %6451 = vmatpush.bf16.msra.mxu0 0
        %6452 = vmatpush.bf16.msra.mxu0 0
        %6453 = vmatpush.bf16.msra.mxu0 %v6441
        %6454 = vmatmul.bf16.gmra.mxu0 %v6444
        %v6455 = vpop.f32.mrf.mxu0
        %v6456 = vadd.f32 %v6055, %v6455
        %v6457 = vpop.f32.mrf.mxu0
        %v6458 = vadd.f32 %v6167, %v6457
        %6459 = vdwg.mxu0
        %v6462 = vunpack.c.l.b16 %v4600
        %v6463 = vunpack.c.l.b16 %v4601
        %v6464 = vpack.c.b16 %v6463, %v6462
        %v6467 = vunpack.c.l.b16 %v5000
        %v6468 = vunpack.c.l.b16 %v5001
        %v6469 = vpack.c.b16 %v6468, %v6467
        %v6472 = vsel %vm303, %v6464, 0
        %6474 = vmatpush.bf16.msra.mxu0 0
        %6475 = vmatpush.bf16.msra.mxu0 0
        %6476 = vmatpush.bf16.msra.mxu0 0
        %6477 = vmatpush.bf16.msra.mxu0 0
        %6478 = vmatpush.bf16.msra.mxu0 0
        %6479 = vmatpush.bf16.msra.mxu0 0
        %6480 = vmatpush.bf16.msra.mxu0 0
        %6481 = vmatpush.bf16.msra.mxu0 %v6469
        %6482 = vmatmul.bf16.gmra.mxu0 %v6472
        %v6483 = vpop.f32.mrf.mxu0
        %v6484 = vadd.f32 %v6057, %v6483
        %v6485 = vpop.f32.mrf.mxu0
        %v6486 = vadd.f32 %v6169, %v6485
        %6487 = vdwg.mxu0
        %v6490 = vunpack.c.l.b16 %v4602
        %v6491 = vunpack.c.l.b16 %v4603
        %v6492 = vpack.c.b16 %v6491, %v6490
        %v6495 = vunpack.c.l.b16 %v5002
        %v6496 = vunpack.c.l.b16 %v5003
        %v6497 = vpack.c.b16 %v6496, %v6495
        %v6500 = vsel %vm303, %v6492, 0
        %6502 = vmatpush.bf16.msra.mxu0 0
        %6503 = vmatpush.bf16.msra.mxu0 0
        %6504 = vmatpush.bf16.msra.mxu0 0
        %6505 = vmatpush.bf16.msra.mxu0 0
        %6506 = vmatpush.bf16.msra.mxu0 0
        %6507 = vmatpush.bf16.msra.mxu0 0
        %6508 = vmatpush.bf16.msra.mxu0 0
        %6509 = vmatpush.bf16.msra.mxu0 %v6497
        %6510 = vmatmul.bf16.gmra.mxu0 %v6500
        %v6511 = vpop.f32.mrf.mxu0
        %v6512 = vadd.f32 %v6059, %v6511
        %v6513 = vpop.f32.mrf.mxu0
        %v6514 = vadd.f32 %v6171, %v6513
        %6515 = vdwg.mxu0
        %v6518 = vunpack.c.l.b16 %v4604
        %v6519 = vunpack.c.l.b16 %v4605
        %v6520 = vpack.c.b16 %v6519, %v6518
        %v6523 = vunpack.c.l.b16 %v5004
        %v6524 = vunpack.c.l.b16 %v5005
        %v6525 = vpack.c.b16 %v6524, %v6523
        %v6528 = vsel %vm303, %v6520, 0
        %6530 = vmatpush.bf16.msra.mxu0 0
        %6531 = vmatpush.bf16.msra.mxu0 0
        %6532 = vmatpush.bf16.msra.mxu0 0
        %6533 = vmatpush.bf16.msra.mxu0 0
        %6534 = vmatpush.bf16.msra.mxu0 0
        %6535 = vmatpush.bf16.msra.mxu0 0
        %6536 = vmatpush.bf16.msra.mxu0 0
        %6537 = vmatpush.bf16.msra.mxu0 %v6525
        %6538 = vmatmul.bf16.gmra.mxu0 %v6528
        %v6539 = vpop.f32.mrf.mxu0
        %v6540 = vadd.f32 %v6061, %v6539
        %v6541 = vpop.f32.mrf.mxu0
        %v6542 = vadd.f32 %v6173, %v6541
        %6543 = vdwg.mxu0
        %v6546 = vunpack.c.l.b16 %v4606
        %v6547 = vunpack.c.l.b16 %v4607
        %v6548 = vpack.c.b16 %v6547, %v6546
        %v6551 = vunpack.c.l.b16 %v5006
        %v6552 = vunpack.c.l.b16 %v5007
        %v6553 = vpack.c.b16 %v6552, %v6551
        %v6556 = vsel %vm303, %v6548, 0
        %6558 = vmatpush.bf16.msra.mxu0 0
        %6559 = vmatpush.bf16.msra.mxu0 0
        %6560 = vmatpush.bf16.msra.mxu0 0
        %6561 = vmatpush.bf16.msra.mxu0 0
        %6562 = vmatpush.bf16.msra.mxu0 0
        %6563 = vmatpush.bf16.msra.mxu0 0
        %6564 = vmatpush.bf16.msra.mxu0 0
        %6565 = vmatpush.bf16.msra.mxu0 %v6553
        %6566 = vmatmul.bf16.gmra.mxu0 %v6556
        %v6567 = vpop.f32.mrf.mxu0
        %v6568 = vadd.f32 %v6063, %v6567
        %v6569 = vpop.f32.mrf.mxu0
        %v6570 = vadd.f32 %v6175, %v6569
        %6571 = vdwg.mxu0
        %v6574 = vunpack.c.l.b16 %v4608
        %v6575 = vunpack.c.l.b16 %v4609
        %v6576 = vpack.c.b16 %v6575, %v6574
        %v6579 = vunpack.c.l.b16 %v5008
        %v6580 = vunpack.c.l.b16 %v5009
        %v6581 = vpack.c.b16 %v6580, %v6579
        %v6584 = vsel %vm303, %v6576, 0
        %6586 = vmatpush.bf16.msra.mxu0 0
        %6587 = vmatpush.bf16.msra.mxu0 0
        %6588 = vmatpush.bf16.msra.mxu0 0
        %6589 = vmatpush.bf16.msra.mxu0 0
        %6590 = vmatpush.bf16.msra.mxu0 0
        %6591 = vmatpush.bf16.msra.mxu0 0
        %6592 = vmatpush.bf16.msra.mxu0 0
        %6593 = vmatpush.bf16.msra.mxu0 %v6581
        %6594 = vmatmul.bf16.gmra.mxu0 %v6584
        %v6595 = vpop.f32.mrf.mxu0
        %v6596 = vadd.f32 %v6065, %v6595
        %v6597 = vpop.f32.mrf.mxu0
        %v6598 = vadd.f32 %v6177, %v6597
        %6599 = vdwg.mxu0
        %v6602 = vunpack.c.l.b16 %v4610
        %v6603 = vunpack.c.l.b16 %v4611
        %v6604 = vpack.c.b16 %v6603, %v6602
        %v6607 = vunpack.c.l.b16 %v5010
        %v6608 = vunpack.c.l.b16 %v5011
        %v6609 = vpack.c.b16 %v6608, %v6607
        %v6612 = vsel %vm303, %v6604, 0
        %6614 = vmatpush.bf16.msra.mxu0 0
        %6615 = vmatpush.bf16.msra.mxu0 0
        %6616 = vmatpush.bf16.msra.mxu0 0
        %6617 = vmatpush.bf16.msra.mxu0 0
        %6618 = vmatpush.bf16.msra.mxu0 0
        %6619 = vmatpush.bf16.msra.mxu0 0
        %6620 = vmatpush.bf16.msra.mxu0 0
        %6621 = vmatpush.bf16.msra.mxu0 %v6609
        %6622 = vmatmul.bf16.gmra.mxu0 %v6612
        %v6623 = vpop.f32.mrf.mxu0
        %v6624 = vadd.f32 %v6067, %v6623
        %v6625 = vpop.f32.mrf.mxu0
        %v6626 = vadd.f32 %v6179, %v6625
        %6627 = vdwg.mxu0
        %v6630 = vunpack.c.l.b16 %v4612
        %v6631 = vunpack.c.l.b16 %v4613
        %v6632 = vpack.c.b16 %v6631, %v6630
        %v6635 = vunpack.c.l.b16 %v5012
        %v6636 = vunpack.c.l.b16 %v5013
        %v6637 = vpack.c.b16 %v6636, %v6635
        %v6640 = vsel %vm303, %v6632, 0
        %6642 = vmatpush.bf16.msra.mxu0 0
        %6643 = vmatpush.bf16.msra.mxu0 0
        %6644 = vmatpush.bf16.msra.mxu0 0
        %6645 = vmatpush.bf16.msra.mxu0 0
        %6646 = vmatpush.bf16.msra.mxu0 0
        %6647 = vmatpush.bf16.msra.mxu0 0
        %6648 = vmatpush.bf16.msra.mxu0 0
        %6649 = vmatpush.bf16.msra.mxu0 %v6637
        %6650 = vmatmul.bf16.gmra.mxu0 %v6640
        %v6651 = vpop.f32.mrf.mxu0
        %v6652 = vadd.f32 %v6277, %v6651
        %v6653 = vpop.f32.mrf.mxu0
        %v6654 = vadd.f32 %v6389, %v6653
        %6655 = vdwg.mxu0
        %v6658 = vunpack.c.l.b16 %v4614
        %v6659 = vunpack.c.l.b16 %v4615
        %v6660 = vpack.c.b16 %v6659, %v6658
        %v6663 = vunpack.c.l.b16 %v5014
        %v6664 = vunpack.c.l.b16 %v5015
        %v6665 = vpack.c.b16 %v6664, %v6663
        %v6668 = vsel %vm303, %v6660, 0
        %6670 = vmatpush.bf16.msra.mxu0 0
        %6671 = vmatpush.bf16.msra.mxu0 0
        %6672 = vmatpush.bf16.msra.mxu0 0
        %6673 = vmatpush.bf16.msra.mxu0 0
        %6674 = vmatpush.bf16.msra.mxu0 0
        %6675 = vmatpush.bf16.msra.mxu0 0
        %6676 = vmatpush.bf16.msra.mxu0 0
        %6677 = vmatpush.bf16.msra.mxu0 %v6665
        %6678 = vmatmul.bf16.gmra.mxu0 %v6668
        %v6679 = vpop.f32.mrf.mxu0
        %v6680 = vadd.f32 %v6279, %v6679
        %v6681 = vpop.f32.mrf.mxu0
        %v6682 = vadd.f32 %v6391, %v6681
        %6683 = vdwg.mxu0
        %v6686 = vunpack.c.l.b16 %v4616
        %v6687 = vunpack.c.l.b16 %v4617
        %v6688 = vpack.c.b16 %v6687, %v6686
        %v6691 = vunpack.c.l.b16 %v5016
        %v6692 = vunpack.c.l.b16 %v5017
        %v6693 = vpack.c.b16 %v6692, %v6691
        %v6696 = vsel %vm303, %v6688, 0
        %6698 = vmatpush.bf16.msra.mxu0 0
        %6699 = vmatpush.bf16.msra.mxu0 0
        %6700 = vmatpush.bf16.msra.mxu0 0
        %6701 = vmatpush.bf16.msra.mxu0 0
        %6702 = vmatpush.bf16.msra.mxu0 0
        %6703 = vmatpush.bf16.msra.mxu0 0
        %6704 = vmatpush.bf16.msra.mxu0 0
        %6705 = vmatpush.bf16.msra.mxu0 %v6693
        %6706 = vmatmul.bf16.gmra.mxu0 %v6696
        %v6707 = vpop.f32.mrf.mxu0
        %v6708 = vadd.f32 %v6281, %v6707
        %v6709 = vpop.f32.mrf.mxu0
        %v6710 = vadd.f32 %v6393, %v6709
        %6711 = vdwg.mxu0
        %v6714 = vunpack.c.l.b16 %v4618
        %v6715 = vunpack.c.l.b16 %v4619
        %v6716 = vpack.c.b16 %v6715, %v6714
        %v6719 = vunpack.c.l.b16 %v5018
        %v6720 = vunpack.c.l.b16 %v5019
        %v6721 = vpack.c.b16 %v6720, %v6719
        %v6724 = vsel %vm303, %v6716, 0
        %6726 = vmatpush.bf16.msra.mxu0 0
        %6727 = vmatpush.bf16.msra.mxu0 0
        %6728 = vmatpush.bf16.msra.mxu0 0
        %6729 = vmatpush.bf16.msra.mxu0 0
        %6730 = vmatpush.bf16.msra.mxu0 0
        %6731 = vmatpush.bf16.msra.mxu0 0
        %6732 = vmatpush.bf16.msra.mxu0 0
        %6733 = vmatpush.bf16.msra.mxu0 %v6721
        %6734 = vmatmul.bf16.gmra.mxu0 %v6724
        %v6735 = vpop.f32.mrf.mxu0
        %v6736 = vadd.f32 %v6283, %v6735
        %v6737 = vpop.f32.mrf.mxu0
        %v6738 = vadd.f32 %v6395, %v6737
        %6739 = vdwg.mxu0
        %v6742 = vunpack.c.l.b16 %v4620
        %v6743 = vunpack.c.l.b16 %v4621
        %v6744 = vpack.c.b16 %v6743, %v6742
        %v6747 = vunpack.c.l.b16 %v5020
        %v6748 = vunpack.c.l.b16 %v5021
        %v6749 = vpack.c.b16 %v6748, %v6747
        %v6752 = vsel %vm303, %v6744, 0
        %6754 = vmatpush.bf16.msra.mxu0 0
        %6755 = vmatpush.bf16.msra.mxu0 0
        %6756 = vmatpush.bf16.msra.mxu0 0
        %6757 = vmatpush.bf16.msra.mxu0 0
        %6758 = vmatpush.bf16.msra.mxu0 0
        %6759 = vmatpush.bf16.msra.mxu0 0
        %6760 = vmatpush.bf16.msra.mxu0 0
        %6761 = vmatpush.bf16.msra.mxu0 %v6749
        %6762 = vmatmul.bf16.gmra.mxu0 %v6752
        %v6763 = vpop.f32.mrf.mxu0
        %v6764 = vadd.f32 %v6285, %v6763
        %v6765 = vpop.f32.mrf.mxu0
        %v6766 = vadd.f32 %v6397, %v6765
        %6767 = vdwg.mxu0
        %v6770 = vunpack.c.l.b16 %v4622
        %v6771 = vunpack.c.l.b16 %v4623
        %v6772 = vpack.c.b16 %v6771, %v6770
        %v6775 = vunpack.c.l.b16 %v5022
        %v6776 = vunpack.c.l.b16 %v5023
        %v6777 = vpack.c.b16 %v6776, %v6775
        %v6780 = vsel %vm303, %v6772, 0
        %6782 = vmatpush.bf16.msra.mxu0 0
        %6783 = vmatpush.bf16.msra.mxu0 0
        %6784 = vmatpush.bf16.msra.mxu0 0
        %6785 = vmatpush.bf16.msra.mxu0 0
        %6786 = vmatpush.bf16.msra.mxu0 0
        %6787 = vmatpush.bf16.msra.mxu0 0
        %6788 = vmatpush.bf16.msra.mxu0 0
        %6789 = vmatpush.bf16.msra.mxu0 %v6777
        %6790 = vmatmul.bf16.gmra.mxu0 %v6780
        %v6791 = vpop.f32.mrf.mxu0
        %v6792 = vadd.f32 %v6287, %v6791
        %v6793 = vpop.f32.mrf.mxu0
        %v6794 = vadd.f32 %v6399, %v6793
        %6795 = vdwg.mxu0
        %v6798 = vunpack.c.l.b16 %v4624
        %v6799 = vunpack.c.l.b16 %v4625
        %v6800 = vpack.c.b16 %v6799, %v6798
        %v6803 = vunpack.c.l.b16 %v5024
        %v6804 = vunpack.c.l.b16 %v5025
        %v6805 = vpack.c.b16 %v6804, %v6803
        %v6808 = vsel %vm303, %v6800, 0
        %6810 = vmatpush.bf16.msra.mxu0 0
        %6811 = vmatpush.bf16.msra.mxu0 0
        %6812 = vmatpush.bf16.msra.mxu0 0
        %6813 = vmatpush.bf16.msra.mxu0 0
        %6814 = vmatpush.bf16.msra.mxu0 0
        %6815 = vmatpush.bf16.msra.mxu0 0
        %6816 = vmatpush.bf16.msra.mxu0 0
        %6817 = vmatpush.bf16.msra.mxu0 %v6805
        %6818 = vmatmul.bf16.gmra.mxu0 %v6808
        %v6819 = vpop.f32.mrf.mxu0
        %v6820 = vadd.f32 %v6289, %v6819
        %v6821 = vpop.f32.mrf.mxu0
        %v6822 = vadd.f32 %v6401, %v6821
        %6823 = vdwg.mxu0
        %v6826 = vunpack.c.l.b16 %v4626
        %v6827 = vunpack.c.l.b16 %v4627
        %v6828 = vpack.c.b16 %v6827, %v6826
        %v6831 = vunpack.c.l.b16 %v5026
        %v6832 = vunpack.c.l.b16 %v5027
        %v6833 = vpack.c.b16 %v6832, %v6831
        %v6836 = vsel %vm303, %v6828, 0
        %6838 = vmatpush.bf16.msra.mxu0 0
        %6839 = vmatpush.bf16.msra.mxu0 0
        %6840 = vmatpush.bf16.msra.mxu0 0
        %6841 = vmatpush.bf16.msra.mxu0 0
        %6842 = vmatpush.bf16.msra.mxu0 0
        %6843 = vmatpush.bf16.msra.mxu0 0
        %6844 = vmatpush.bf16.msra.mxu0 0
        %6845 = vmatpush.bf16.msra.mxu0 %v6833
        %6846 = vmatmul.bf16.gmra.mxu0 %v6836
        %v6847 = vpop.f32.mrf.mxu0
        %v6848 = vadd.f32 %v6291, %v6847
        %v6849 = vpop.f32.mrf.mxu0
        %v6850 = vadd.f32 %v6403, %v6849
        %6851 = vdwg.mxu0
        %s6852 = sld [smem:[#allocation2]]
        %v6853 = vstv %s6852
        %v6854 = vmul.f32 %v6853, %v6428
        %v6855 = vmul.f32 %v6853, %v6430
        %v6856 = vmul.f32 %v6853, %v6456
        %v6857 = vmul.f32 %v6853, %v6458
        %v6858 = vmul.f32 %v6853, %v6484
        %v6859 = vmul.f32 %v6853, %v6486
        %v6860 = vmul.f32 %v6853, %v6512
        %v6861 = vmul.f32 %v6853, %v6514
        %v6862 = vmul.f32 %v6853, %v6540
        %v6863 = vmul.f32 %v6853, %v6542
        %v6864 = vmul.f32 %v6853, %v6568
        %v6865 = vmul.f32 %v6853, %v6570
        %v6866 = vmul.f32 %v6853, %v6596
        %v6867 = vmul.f32 %v6853, %v6598
        %v6868 = vmul.f32 %v6853, %v6624
        %v6869 = vmul.f32 %v6853, %v6626
        %v6870 = vmul.f32 %v6853, %v6652
        %v6871 = vmul.f32 %v6853, %v6654
        %v6872 = vmul.f32 %v6853, %v6680
        %v6873 = vmul.f32 %v6853, %v6682
        %v6874 = vmul.f32 %v6853, %v6708
        %v6875 = vmul.f32 %v6853, %v6710
        %v6876 = vmul.f32 %v6853, %v6736
        %v6877 = vmul.f32 %v6853, %v6738
        %v6878 = vmul.f32 %v6853, %v6764
        %v6879 = vmul.f32 %v6853, %v6766
        %v6880 = vmul.f32 %v6853, %v6792
        %v6881 = vmul.f32 %v6853, %v6794
        %v6882 = vmul.f32 %v6853, %v6820
        %v6883 = vmul.f32 %v6853, %v6822
        %v6884 = vmul.f32 %v6853, %v6848
        %v6885 = vmul.f32 %v6853, %v6850
        %6886 = vst.msk [vmem:[%s237] sm:$0xff] %vm303, %v6854
        %6887 = vst.msk [vmem:[%s237 + $0x8] sm:$0xff] %vm303, %v6855
        %6888 = vst.msk [vmem:[%s237 + $0x10] sm:$0xff] %vm303, %v6856
        %6889 = vst.msk [vmem:[%s237 + $0x18] sm:$0xff] %vm303, %v6857
        %6890 = vst.msk [vmem:[%s237 + $0x20] sm:$0xff] %vm303, %v6858
        %6891 = vst.msk [vmem:[%s237 + $0x28] sm:$0xff] %vm303, %v6859
        %6892 = vst.msk [vmem:[%s237 + $0x30] sm:$0xff] %vm303, %v6860
        %6893 = vst.msk [vmem:[%s237 + $0x38] sm:$0xff] %vm303, %v6861
        %6894 = vst.msk [vmem:[%s237 + $0x40] sm:$0xff] %vm303, %v6862
        %6895 = vst.msk [vmem:[%s237 + $0x48] sm:$0xff] %vm303, %v6863
        %6896 = vst.msk [vmem:[%s237 + $0x50] sm:$0xff] %vm303, %v6864
        %6897 = vst.msk [vmem:[%s237 + $0x58] sm:$0xff] %vm303, %v6865
        %6898 = vst.msk [vmem:[%s237 + $0x60] sm:$0xff] %vm303, %v6866
        %6899 = vst.msk [vmem:[%s237 + $0x68] sm:$0xff] %vm303, %v6867
        %6900 = vst.msk [vmem:[%s237 + $0x70] sm:$0xff] %vm303, %v6868
        %6901 = vst.msk [vmem:[%s237 + $0x78] sm:$0xff] %vm303, %v6869
        %6902 = vst.msk [vmem:[%s237 + $0x80] sm:$0xff] %vm303, %v6870
        %6903 = vst.msk [vmem:[%s237 + $0x88] sm:$0xff] %vm303, %v6871
        %6904 = vst.msk [vmem:[%s237 + $0x90] sm:$0xff] %vm303, %v6872
        %6905 = vst.msk [vmem:[%s237 + $0x98] sm:$0xff] %vm303, %v6873
        %6906 = vst.msk [vmem:[%s237 + $0xa0] sm:$0xff] %vm303, %v6874
        %6907 = vst.msk [vmem:[%s237 + $0xa8] sm:$0xff] %vm303, %v6875
        %6908 = vst.msk [vmem:[%s237 + $0xb0] sm:$0xff] %vm303, %v6876
        %6909 = vst.msk [vmem:[%s237 + $0xb8] sm:$0xff] %vm303, %v6877
        %6910 = vst.msk [vmem:[%s237 + $0xc0] sm:$0xff] %vm303, %v6878
        %6911 = vst.msk [vmem:[%s237 + $0xc8] sm:$0xff] %vm303, %v6879
        %6912 = vst.msk [vmem:[%s237 + $0xd0] sm:$0xff] %vm303, %v6880
        %6913 = vst.msk [vmem:[%s237 + $0xd8] sm:$0xff] %vm303, %v6881
        %6914 = vst.msk [vmem:[%s237 + $0xe0] sm:$0xff] %vm303, %v6882
        %6915 = vst.msk [vmem:[%s237 + $0xe8] sm:$0xff] %vm303, %v6883
        %6916 = vst.msk [vmem:[%s237 + $0xf0] sm:$0xff] %vm303, %v6884
        %6917 = vst.msk [vmem:[%s237 + $0xf8] sm:$0xff] %vm303, %v6885
        %p6918 = scmp.lt.s32.totalorder %s20, 1
        %s6919 = scalar_select %p6918, %s20, 1
        %s6920 = smul.addr %s6919, 32
        %s6921 = smul.addr %s6920, 8
        %s6922 = scalar_lea.vmem %s4, %s6921
        // Predicated region
        $region45: #{tpu_custom_call.1} parent=35 // pred_check
          %p6923 = pneg %p127
        $region46: #{tpu_custom_call.1} parent=35 // pred_check_branch
          %6925 = sbr.rel (%p6923) target = $region48
        $region47: #{tpu_custom_call.1} parent=35 // pred_region
          _
        $region48: #{tpu_custom_call.1} parent=35 // pred_fallthru
          _
      $region36: #{tpu_custom_call.1} parent=5 // pred_fallthru
        _
      %p6926 = scmp.le.s32.totalorder 2, %s15
      // Predicated region
      $region49: #{tpu_custom_call.1} parent=5 // pred_check
        %p6927 = pneg %p6926
      $region50: #{tpu_custom_call.1} parent=5 // pred_check_branch
        %6929 = sbr.rel (%p6927) target = $region52
      $region51: #{tpu_custom_call.1} parent=5 // pred_region
        %s6930 = ssub.s32 %s15, 2
        // Predicated region
        $region53: #{tpu_custom_call.1} parent=51 // pred_check
          %p6931 = pneg %p133
        $region54: #{tpu_custom_call.1} parent=51 // pred_check_branch
          %6933 = sbr.rel (%p6931) target = $region56
        $region55: #{tpu_custom_call.1} parent=51 // pred_region
          %p6934 = scmp.lt.s32.totalorder %s21, 1
          %s6935 = scalar_select %p6934, %s21, 1
          %s6936 = smul.addr %s6935, 32
          %s6937 = smul.addr %s6936, 8
          %s6938 = scalar_lea.vmem %s4, %s6937
        $region56: #{tpu_custom_call.1} parent=51 // pred_fallthru
          _
      $region52: #{tpu_custom_call.1} parent=5 // pred_fallthru
        _
    $region6: #{tpu_custom_call.1} parent=1 // loop_footer
      %s19 = sadd.s32 1, %s15
    $region7: #{tpu_custom_call.1} parent=1 // loop_footer_branch
      %14 = sbr.rel target = $region3
    $region8: #{tpu_custom_call.1} parent=1 // loop_exit
      _
    %6939 = vsyncpa [#allocation4], 1
    %s6940 = scalar_lea.sflag [#allocation4], 1
    %6941 = vsyncpa %s6940, 1
    %6942 = vsyncpa [#allocation6], 1

</llo_original>
